<compile_context>
chip_gen: v5e
topology: v5e:2x2
jax: 0.10.0
libtpu: 0.0.40
codegen_flags: <defaults>
</compile_context>

<pallas_src>
import jax
import jax.numpy as jnp
from jax.experimental import pallas as pl
from jax.experimental.pallas import tpu as pltpu

EPS = 1e-3  # BatchNorm2d(..., eps=0.001) as specified by the module.


def _sigmoid(x):
    # Single-EUP-pass formulation (identical math to torch.Sigmoid /
    # jax.nn.sigmoid); shared with the reference so the tight self-check is
    # not polluted by gate-implementation differences.
    return 0.5 * (jnp.tanh(0.5 * x) + 1.0)


def _fused_kernel(gate_ref, x_ref, w_ref, gb_ref, o_ref):
    # gate_ref: (C_in, 1)  f32   pre-sigmoid SE gate (column -> broadcasts over P lanes)
    # x_ref:    (C_in, P)  f32   input feature map, native NCHW channel-major view
    # w_ref:    (TCO, C_in) bf16 1x1-conv weight tile, native OIHW view
    # gb_ref:   (TCO, 2)   f32   [:, 0] = BN gamma, [:, 1] = BN beta
    # o_ref:    (TCO, P)   f32
    #
    # Gate X (small operand) so the bf16 weight tile goes straight to the MXU
    # with no per-step gated-weight VMEM temp.
    s = _sigmoid(gate_ref[...])                               # (C_in, 1)   EUP
    xg = (s * x_ref[...]).astype(jnp.bfloat16)                # (C_in, P)   VPU

    # 1x1 conv == matmul over channels; bf16 x bf16 -> f32 accumulation (MXU).
    y = jnp.dot(w_ref[...], xg,
                preferred_element_type=jnp.float32)           # (TCO, P)

    # Training-mode BatchNorm over the P spatial positions (batch == 1).
    # Two-pass mean/variance (review correctness note), affine folded into a
    # single per-channel scale + shift.
    inv_p = 1.0 / y.shape[1]
    mean = jnp.sum(y, axis=1, keepdims=True) * inv_p          # (TCO, 1)
    centered = y - mean
    var = jnp.sum(centered * centered, axis=1, keepdims=True) * inv_p
    gb = gb_ref[...]
    scale = gb[:, 0:1] * jax.lax.rsqrt(var + EPS)             # gamma / sqrt(var+eps)
    o_ref[...] = centered * scale + gb[:, 1:2]                # one mul + one add / elem


def _pick_c_out_tile(c_out):
    # v7x has 2 TensorCores per chip -> split C_out across them (grid=2,
    # "parallel").  Single-TC chips (v5e/v6e): one grid step (no per-step
    # pipeline overhead; with bf16 weights there is no compute worth hiding).
    # TODO(synk): verify in an xprof trace that the "parallel" axis is really
    # sharded across both v7x TensorCores; if not, force CORE_PARALLEL.
    try:
        kind = jax.devices()[0].device_kind.lower()
    except Exception:  # pragma: no cover - defensive; perf-only decision
        kind = ""
    multi_core = ("v7" in kind) or ("tpu7" in kind)
    tile = 128 if multi_core else 256
    tile = min(tile, c_out)
    while c_out % tile:          # not hit for this module (C_out = 256)
        tile //= 2
    return max(tile, 8)


def fused_sigmoid_mul_conv_bn(x401, x405, weight, gamma, beta, *, c_out_tile=None):
    """x401: (1, C_in, H, W) f32; x405: (1, C_in, 1, 1) f32;
    weight: (C_out, C_in, 1, 1) f32 or bf16 (bf16 storage recommended);
    gamma/beta: (C_out,) f32.  Returns (1, C_out, H, W) f32."""
    n, c_in, h, w = x401.shape
    c_out = weight.shape[0]
    assert n == 1, "kernel written for batch size 1 (as in the reference module)"

    if c_out_tile is None:
        c_out_tile = _pick_c_out_tile(c_out)
    assert c_out % c_out_tile == 0

    p = h * w
    x_kp = x401.reshape(c_in, p)            # free view (N=1, NCHW is channel-major)
    gate_col = x405.reshape(c_in, 1)        # free view -> column (broadcasts over P)
    w_oc = weight.reshape(c_out, c_in)      # free view (1x1 kernel)
    if w_oc.dtype != jnp.bfloat16:          # bf16 weight storage (review item #1)
        w_oc = w_oc.astype(jnp.bfloat16)
    gb = jnp.stack([gamma.astype(jnp.float32),
                    beta.astype(jnp.float32)], axis=-1)   # (C_out, 2)

    grid = (c_out // c_out_tile,)
    flops = 2 * c_out * c_in * p
    bytes_accessed = (w_oc.size * w_oc.dtype.itemsize
                      + x_kp.size * x_kp.dtype.itemsize
                      + gate_col.size * gate_col.dtype.itemsize
                      + gb.size * gb.dtype.itemsize
                      + c_out * p * 4)

    out = pl.pallas_call(
        _fused_kernel,
        out_shape=jax.ShapeDtypeStruct((c_out, p), jnp.float32),
        grid=grid,
        in_specs=[
            pl.BlockSpec((c_in, 1), lambda i: (0, 0)),            # gate (shared)
            pl.BlockSpec((c_in, p), lambda i: (0, 0)),            # x    (shared)
            pl.BlockSpec((c_out_tile, c_in), lambda i: (i, 0)),   # weight tile (bf16)
            pl.BlockSpec((c_out_tile, 2), lambda i: (i, 0)),      # gamma/beta tile
        ],
        out_specs=pl.BlockSpec((c_out_tile, p), lambda i: (i, 0)),
        compiler_params=pltpu.CompilerParams(
            dimension_semantics=("parallel",)),
        cost_estimate=pl.CostEstimate(
            flops=flops, transcendentals=c_in, bytes_accessed=bytes_accessed),
    )(gate_col, x_kp, w_oc, gb)

    return out.reshape(n, c_out, h, w)      # free view back to NCHW


def _reference(x401, x405, weight_f32, gamma, beta, *, emulate_bf16):
    s = _sigmoid(x405)
    xg = s * x401                                                   # (1, C_in, H, W)
    w = weight_f32
    if emulate_bf16:
        # Emulate the kernel's bf16 operand rounding (f32 accumulation).
        w = w.astype(jnp.bfloat16).astype(jnp.float32)
        xg = xg.astype(jnp.bfloat16).astype(jnp.float32)
    y = jax.lax.conv_general_dilated(
        xg, w, window_strides=(1, 1), padding="VALID",
        dimension_numbers=("NCHW", "OIHW", "NCHW"),
        precision=jax.lax.Precision.HIGHEST)
    mean = jnp.mean(y, axis=(0, 2, 3), keepdims=True)
    var = jnp.mean((y - mean) ** 2, axis=(0, 2, 3), keepdims=True)
    return (gamma.reshape(1, -1, 1, 1) * (y - mean) * jax.lax.rsqrt(var + EPS)
            + beta.reshape(1, -1, 1, 1))


if __name__ == "__main__":
    key = jax.random.PRNGKey(0)
    k1, k2, k3, k4, k5 = jax.random.split(key, 5)

    # Shapes implied by the module: 1536 -> 256 channels, 7x7 spatial, batch 1.
    N, C_IN, H, W = 1, 1536, 7, 7
    C_OUT = 256

    x401 = jax.random.normal(k1, (N, C_IN, H, W), dtype=jnp.float32)
    x405 = jax.random.normal(k2, (N, C_IN, 1, 1), dtype=jnp.float32)

    # Deterministic parameter init (conv2d128 weight, batchnorm2d84 affine).
    weight_f32 = jax.random.normal(k3, (C_OUT, C_IN, 1, 1), dtype=jnp.float32) * 0.02
    gamma = 0.5 + jax.random.uniform(k4, (C_OUT,), dtype=jnp.float32)
    beta = 0.1 * jax.random.normal(k5, (C_OUT,), dtype=jnp.float32)

    # Weight is *stored* in bf16 (done once, outside the per-call path).
    weight = weight_f32.astype(jnp.bfloat16)

    out = fused_sigmoid_mul_conv_bn(x401, x405, weight, gamma, beta)
    out = jax.block_until_ready(out)
    assert out.shape == (N, C_OUT, H, W)

    # Tight check: reference with the same bf16 operand rounding the kernel uses
    # -> validates the sigmoid/gate/conv/BN fusion itself.
    ref_q = _reference(x401, x405, weight_f32, gamma, beta, emulate_bf16=True)
    assert jnp.allclose(out, ref_q, atol=3e-3, rtol=3e-3), \
        "mismatch vs bf16-emulating reference"

    # Loose check: full-f32 module forward; difference is the documented bf16
    # matmul quantization (standard TPU DEFAULT-precision behaviour).
    ref_f32 = _reference(x401, x405, weight_f32, gamma, beta, emulate_bf16=False)
    assert jnp.allclose(out, ref_f32, atol=5e-2, rtol=5e-2), \
        "mismatch vs f32 reference"

    print("KERNEL_OK")
</pallas_src>

<mosaic_0001>
module attributes {stable_mosaic.version = 11 : i64} {
  func.func @_fused_kernel(%arg0: i32, %arg1: memref<1536x1xf32, #tpu.memory_space<vmem>>, %arg2: memref<1536x49xf32, #tpu.memory_space<vmem>>, %arg3: memref<256x1536xbf16, #tpu.memory_space<vmem>>, %arg4: memref<256x2xf32, #tpu.memory_space<vmem>>, %arg5: memref<256x49xf32, #tpu.memory_space<vmem>>) attributes {dimension_semantics = [#tpu.dimension_semantics<parallel>], iteration_bounds = array<i64: 1>, scalar_prefetch = 0 : i64, scratch_operands = 0 : i64, tpu.core_type = #tpu.core_type<tc>, window_params = [{pipeline_mode = #tpu.pipeline_mode<synchronous>, transform_indices = @transform_0, window_bounds = array<i64: 1536, 1>}, {pipeline_mode = #tpu.pipeline_mode<synchronous>, transform_indices = @transform_1, window_bounds = array<i64: 1536, 49>}, {transform_indices = @transform_2, window_bounds = array<i64: 256, 1536>}, {transform_indices = @transform_3, window_bounds = array<i64: 256, 2>}, {transform_indices = @transform_4, window_bounds = array<i64: 256, 49>}]} {
    %c0 = arith.constant 0 : index
    %c0_0 = arith.constant 0 : index
    %0 = vector.load %arg1[%c0, %c0_0] : memref<1536x1xf32, #tpu.memory_space<vmem>>, vector<1536x1xf32>
    %cst = arith.constant 5.000000e-01 : f32
    %1 = vector.broadcast %cst : f32 to vector<1536x1xf32>
    %2 = arith.mulf %1, %0 : vector<1536x1xf32>
    %3 = math.tanh %2 : vector<1536x1xf32>
    %cst_1 = arith.constant 1.000000e+00 : f32
    %4 = vector.broadcast %cst_1 : f32 to vector<1536x1xf32>
    %5 = arith.addf %3, %4 : vector<1536x1xf32>
    %cst_2 = arith.constant 5.000000e-01 : f32
    %6 = vector.broadcast %cst_2 : f32 to vector<1536x1xf32>
    %7 = arith.mulf %6, %5 : vector<1536x1xf32>
    %c0_3 = arith.constant 0 : index
    %c0_4 = arith.constant 0 : index
    %8 = vector.load %arg2[%c0_3, %c0_4] : memref<1536x49xf32, #tpu.memory_space<vmem>>, vector<1536x49xf32>
    %9 = vector.broadcast %7 : vector<1536x1xf32> to vector<1536x49xf32>
    %10 = arith.mulf %9, %8 : vector<1536x49xf32>
    %11 = arith.truncf %10 : vector<1536x49xf32> to vector<1536x49xbf16>
    %c0_5 = arith.constant 0 : index
    %c0_6 = arith.constant 0 : index
    %12 = vector.load %arg3[%c0_5, %c0_6] : memref<256x1536xbf16, #tpu.memory_space<vmem>>, vector<256x1536xbf16>
    %cst_7 = arith.constant dense<0.000000e+00> : vector<256x49xf32>
    %13 = tpu.matmul %12, %11, %cst_7 {dimension_numbers = #tpu.dot_dimension_numbers<[1], [0], [0], [1], [0, 0, 1, 1], [], []>} : vector<256x1536xbf16>, vector<1536x49xbf16>, vector<256x49xf32> -> vector<256x49xf32>
    %cst_8 = arith.constant dense<0.000000e+00> : vector<256xf32>
    %14 = vector.multi_reduction <add>, %13, %cst_8 [1] : vector<256x49xf32> to vector<256xf32>
    %15 = vector.shape_cast %14 : vector<256xf32> to vector<256x1xf32>
    %cst_9 = arith.constant 0.0204081628 : f32
    %16 = vector.broadcast %cst_9 : f32 to vector<256x1xf32>
    %17 = arith.mulf %15, %16 : vector<256x1xf32>
    %18 = vector.broadcast %17 : vector<256x1xf32> to vector<256x49xf32>
    %19 = arith.subf %13, %18 : vector<256x49xf32>
    %20 = arith.mulf %19, %19 : vector<256x49xf32>
    %cst_10 = arith.constant dense<0.000000e+00> : vector<256xf32>
    %21 = vector.multi_reduction <add>, %20, %cst_10 [1] : vector<256x49xf32> to vector<256xf32>
    %22 = vector.shape_cast %21 : vector<256xf32> to vector<256x1xf32>
    %cst_11 = arith.constant 0.0204081628 : f32
    %23 = vector.broadcast %cst_11 : f32 to vector<256x1xf32>
    %24 = arith.mulf %22, %23 : vector<256x1xf32>
    %c0_12 = arith.constant 0 : index
    %c0_13 = arith.constant 0 : index
    %25 = vector.load %arg4[%c0_12, %c0_13] : memref<256x2xf32, #tpu.memory_space<vmem>>, vector<256x2xf32>
    %26 = vector.extract_strided_slice %25 {offsets = [0, 0], sizes = [256, 1], strides = [1, 1]} : vector<256x2xf32> to vector<256x1xf32>
    %cst_14 = arith.constant 1.000000e-03 : f32
    %27 = vector.broadcast %cst_14 : f32 to vector<256x1xf32>
    %28 = arith.addf %24, %27 : vector<256x1xf32>
    %29 = math.rsqrt %28 : vector<256x1xf32>
    %30 = arith.mulf %26, %29 : vector<256x1xf32>
    %31 = vector.broadcast %30 : vector<256x1xf32> to vector<256x49xf32>
    %32 = arith.mulf %19, %31 : vector<256x49xf32>
    %33 = vector.extract_strided_slice %25 {offsets = [0, 1], sizes = [256, 1], strides = [1, 1]} : vector<256x2xf32> to vector<256x1xf32>
    %34 = vector.broadcast %33 : vector<256x1xf32> to vector<256x49xf32>
    %35 = arith.addf %32, %34 : vector<256x49xf32>
    %c0_15 = arith.constant 0 : index
    %c0_16 = arith.constant 0 : index
    %36 = vector.load %arg5[%c0_15, %c0_16] : memref<256x49xf32, #tpu.memory_space<vmem>>, vector<256x49xf32>
    tpu.vector_store %arg5[%c0_15, %c0_16], %35 {strides = array<i32>} : memref<256x49xf32, #tpu.memory_space<vmem>>, vector<256x49xf32>,
    return
  }
  func.func @transform_0(%arg0: i32) -> (i32, i32) {
    %c0_i32 = arith.constant 0 : i32
    %c0_i32_0 = arith.constant 0 : i32
    %c0_i32_1 = arith.constant 0 : i32
    return %c0_i32, %c0_i32_0 : i32, i32
  }
  func.func @transform_1(%arg0: i32) -> (i32, i32) {
    %c0_i32 = arith.constant 0 : i32
    %c0_i32_0 = arith.constant 0 : i32
    %c0_i32_1 = arith.constant 0 : i32
    return %c0_i32, %c0_i32_0 : i32, i32
  }
  func.func @transform_2(%arg0: i32) -> (i32, i32) {
    %c0_i32 = arith.constant 0 : i32
    %c0_i32_0 = arith.constant 0 : i32
    return %arg0, %c0_i32 : i32, i32
  }
  func.func @transform_3(%arg0: i32) -> (i32, i32) {
    %c0_i32 = arith.constant 0 : i32
    %c0_i32_0 = arith.constant 0 : i32
    return %arg0, %c0_i32 : i32, i32
  }
  func.func @transform_4(%arg0: i32) -> (i32, i32) {
    %c0_i32 = arith.constant 0 : i32
    %c0_i32_0 = arith.constant 0 : i32
    return %arg0, %c0_i32 : i32, i32
  }
}

</mosaic_0001>

<llo_original>
// kernel: tpu_custom_call.1
$region0: #{tpu_custom_call.1}
  #allocation0 [shape = 'u32[]', space=smem, size = 0x4, offset = 0x4, fixed_abs, tag = 'smem constant byte address 0x4 - core index']
  #allocation1 [shape = 'u32[72,128]{1,0:T(1,128)}', space=vmem, size = 0x9000, scoped, tag = 'internal scratch']
  %s0 = inlined_call_operand.vmem [shape: f32[1536,1], index: 0, kind: input, shape index: {}]
  %s1 = inlined_call_operand.vmem [shape: f32[1536,49], index: 1, kind: input, shape index: {}]
  %s2 = inlined_call_operand.vmem [shape: bf16[256,1536], index: 2, kind: input, shape index: {}]
  %s3 = inlined_call_operand.vmem [shape: f32[256,2], index: 3, kind: input, shape index: {}]
  %s4 = inlined_call_operand.vmem [shape: f32[256,49], index: 4, kind: output, shape index: {}]
  %s5 = sld [smem:[#allocation0]]
  $region26: #{tpu_custom_call.1} parent=0
    _
  %s7 = ssub.s32 1, %s5
  %s8 = scalar_select 0, %s7, %s5
  // Predicated region
  $region2: #{tpu_custom_call.1} parent=0 // pred_check
    _
  $region3: #{tpu_custom_call.1} parent=0 // pred_check_branch
    %10 = sbr.rel (0) target = $region5
  $region4: #{tpu_custom_call.1} parent=0 // pred_region
    _
  $region5: #{tpu_custom_call.1} parent=0 // pred_fallthru
    _
  // Predicated region
  $region6: #{tpu_custom_call.1} parent=0 // pred_check
    _
  $region7: #{tpu_custom_call.1} parent=0 // pred_check_branch
    %12 = sbr.rel (0) target = $region9
  $region8: #{tpu_custom_call.1} parent=0 // pred_region
    _
  $region9: #{tpu_custom_call.1} parent=0 // pred_fallthru
    _
  // Predicated region
  $region10: #{tpu_custom_call.1} parent=0 // pred_check
    _
  $region11: #{tpu_custom_call.1} parent=0 // pred_check_branch
    %14 = sbr.rel (0) target = $region13
  $region12: #{tpu_custom_call.1} parent=0 // pred_region
    _
  $region13: #{tpu_custom_call.1} parent=0 // pred_fallthru
    _
  // Predicated region
  $region14: #{tpu_custom_call.1} parent=0 // pred_check
    _
  $region15: #{tpu_custom_call.1} parent=0 // pred_check_branch
    %16 = sbr.rel (0) target = $region17
  $region16: #{tpu_custom_call.1} parent=0 // pred_region
    _
  $region17: #{tpu_custom_call.1} parent=0 // pred_fallthru
    _
  %v17 = vld [vmem:[%s0] sm:$0xff]
  %v18 = vld [vmem:[%s0 + $0x8] sm:$0xff]
  %v19 = vld [vmem:[%s0 + $0x10] sm:$0xff]
  %v20 = vld [vmem:[%s0 + $0x18] sm:$0xff]
  %v21 = vld [vmem:[%s0 + $0x20] sm:$0xff]
  %v22 = vld [vmem:[%s0 + $0x28] sm:$0xff]
  %v23 = vld [vmem:[%s0 + $0x30] sm:$0xff]
  %v24 = vld [vmem:[%s0 + $0x38] sm:$0xff]
  %v25 = vld [vmem:[%s0 + $0x40] sm:$0xff]
  %v26 = vld [vmem:[%s0 + $0x48] sm:$0xff]
  %v27 = vld [vmem:[%s0 + $0x50] sm:$0xff]
  %v28 = vld [vmem:[%s0 + $0x58] sm:$0xff]
  %v29 = vld [vmem:[%s0 + $0x60] sm:$0xff]
  %v30 = vld [vmem:[%s0 + $0x68] sm:$0xff]
  %v31 = vld [vmem:[%s0 + $0x70] sm:$0xff]
  %v32 = vld [vmem:[%s0 + $0x78] sm:$0xff]
  %v33 = vld [vmem:[%s0 + $0x80] sm:$0xff]
  %v34 = vld [vmem:[%s0 + $0x88] sm:$0xff]
  %v35 = vld [vmem:[%s0 + $0x90] sm:$0xff]
  %v36 = vld [vmem:[%s0 + $0x98] sm:$0xff]
  %v37 = vld [vmem:[%s0 + $0xa0] sm:$0xff]
  %v38 = vld [vmem:[%s0 + $0xa8] sm:$0xff]
  %v39 = vld [vmem:[%s0 + $0xb0] sm:$0xff]
  %v40 = vld [vmem:[%s0 + $0xb8] sm:$0xff]
  %v41 = vld [vmem:[%s0 + $0xc0] sm:$0xff]
  %v42 = vld [vmem:[%s0 + $0xc8] sm:$0xff]
  %v43 = vld [vmem:[%s0 + $0xd0] sm:$0xff]
  %v44 = vld [vmem:[%s0 + $0xd8] sm:$0xff]
  %v45 = vld [vmem:[%s0 + $0xe0] sm:$0xff]
  %v46 = vld [vmem:[%s0 + $0xe8] sm:$0xff]
  %v47 = vld [vmem:[%s0 + $0xf0] sm:$0xff]
  %v48 = vld [vmem:[%s0 + $0xf8] sm:$0xff]
  %v49 = vld [vmem:[%s0 + $0x100] sm:$0xff]
  %v50 = vld [vmem:[%s0 + $0x108] sm:$0xff]
  %v51 = vld [vmem:[%s0 + $0x110] sm:$0xff]
  %v52 = vld [vmem:[%s0 + $0x118] sm:$0xff]
  %v53 = vld [vmem:[%s0 + $0x120] sm:$0xff]
  %v54 = vld [vmem:[%s0 + $0x128] sm:$0xff]
  %v55 = vld [vmem:[%s0 + $0x130] sm:$0xff]
  %v56 = vld [vmem:[%s0 + $0x138] sm:$0xff]
  %v57 = vld [vmem:[%s0 + $0x140] sm:$0xff]
  %v58 = vld [vmem:[%s0 + $0x148] sm:$0xff]
  %v59 = vld [vmem:[%s0 + $0x150] sm:$0xff]
  %v60 = vld [vmem:[%s0 + $0x158] sm:$0xff]
  %v61 = vld [vmem:[%s0 + $0x160] sm:$0xff]
  %v62 = vld [vmem:[%s0 + $0x168] sm:$0xff]
  %v63 = vld [vmem:[%s0 + $0x170] sm:$0xff]
  %v64 = vld [vmem:[%s0 + $0x178] sm:$0xff]
  %v65 = vld [vmem:[%s0 + $0x180] sm:$0xff]
  %v66 = vld [vmem:[%s0 + $0x188] sm:$0xff]
  %v67 = vld [vmem:[%s0 + $0x190] sm:$0xff]
  %v68 = vld [vmem:[%s0 + $0x198] sm:$0xff]
  %v69 = vld [vmem:[%s0 + $0x1a0] sm:$0xff]
  %v70 = vld [vmem:[%s0 + $0x1a8] sm:$0xff]
  %v71 = vld [vmem:[%s0 + $0x1b0] sm:$0xff]
  %v72 = vld [vmem:[%s0 + $0x1b8] sm:$0xff]
  %v73 = vld [vmem:[%s0 + $0x1c0] sm:$0xff]
  %v74 = vld [vmem:[%s0 + $0x1c8] sm:$0xff]
  %v75 = vld [vmem:[%s0 + $0x1d0] sm:$0xff]
  %v76 = vld [vmem:[%s0 + $0x1d8] sm:$0xff]
  %v77 = vld [vmem:[%s0 + $0x1e0] sm:$0xff]
  %v78 = vld [vmem:[%s0 + $0x1e8] sm:$0xff]
  %v79 = vld [vmem:[%s0 + $0x1f0] sm:$0xff]
  %v80 = vld [vmem:[%s0 + $0x1f8] sm:$0xff]
  %v81 = vld [vmem:[%s0 + $0x200] sm:$0xff]
  %v82 = vld [vmem:[%s0 + $0x208] sm:$0xff]
  %v83 = vld [vmem:[%s0 + $0x210] sm:$0xff]
  %v84 = vld [vmem:[%s0 + $0x218] sm:$0xff]
  %v85 = vld [vmem:[%s0 + $0x220] sm:$0xff]
  %v86 = vld [vmem:[%s0 + $0x228] sm:$0xff]
  %v87 = vld [vmem:[%s0 + $0x230] sm:$0xff]
  %v88 = vld [vmem:[%s0 + $0x238] sm:$0xff]
  %v89 = vld [vmem:[%s0 + $0x240] sm:$0xff]
  %v90 = vld [vmem:[%s0 + $0x248] sm:$0xff]
  %v91 = vld [vmem:[%s0 + $0x250] sm:$0xff]
  %v92 = vld [vmem:[%s0 + $0x258] sm:$0xff]
  %v93 = vld [vmem:[%s0 + $0x260] sm:$0xff]
  %v94 = vld [vmem:[%s0 + $0x268] sm:$0xff]
  %v95 = vld [vmem:[%s0 + $0x270] sm:$0xff]
  %v96 = vld [vmem:[%s0 + $0x278] sm:$0xff]
  %v97 = vld [vmem:[%s0 + $0x280] sm:$0xff]
  %v98 = vld [vmem:[%s0 + $0x288] sm:$0xff]
  %v99 = vld [vmem:[%s0 + $0x290] sm:$0xff]
  %v100 = vld [vmem:[%s0 + $0x298] sm:$0xff]
  %v101 = vld [vmem:[%s0 + $0x2a0] sm:$0xff]
  %v102 = vld [vmem:[%s0 + $0x2a8] sm:$0xff]
  %v103 = vld [vmem:[%s0 + $0x2b0] sm:$0xff]
  %v104 = vld [vmem:[%s0 + $0x2b8] sm:$0xff]
  %v105 = vld [vmem:[%s0 + $0x2c0] sm:$0xff]
  %v106 = vld [vmem:[%s0 + $0x2c8] sm:$0xff]
  %v107 = vld [vmem:[%s0 + $0x2d0] sm:$0xff]
  %v108 = vld [vmem:[%s0 + $0x2d8] sm:$0xff]
  %v109 = vld [vmem:[%s0 + $0x2e0] sm:$0xff]
  %v110 = vld [vmem:[%s0 + $0x2e8] sm:$0xff]
  %v111 = vld [vmem:[%s0 + $0x2f0] sm:$0xff]
  %v112 = vld [vmem:[%s0 + $0x2f8] sm:$0xff]
  %v113 = vld [vmem:[%s0 + $0x300] sm:$0xff]
  %v114 = vld [vmem:[%s0 + $0x308] sm:$0xff]
  %v115 = vld [vmem:[%s0 + $0x310] sm:$0xff]
  %v116 = vld [vmem:[%s0 + $0x318] sm:$0xff]
  %v117 = vld [vmem:[%s0 + $0x320] sm:$0xff]
  %v118 = vld [vmem:[%s0 + $0x328] sm:$0xff]
  %v119 = vld [vmem:[%s0 + $0x330] sm:$0xff]
  %v120 = vld [vmem:[%s0 + $0x338] sm:$0xff]
  %v121 = vld [vmem:[%s0 + $0x340] sm:$0xff]
  %v122 = vld [vmem:[%s0 + $0x348] sm:$0xff]
  %v123 = vld [vmem:[%s0 + $0x350] sm:$0xff]
  %v124 = vld [vmem:[%s0 + $0x358] sm:$0xff]
  %v125 = vld [vmem:[%s0 + $0x360] sm:$0xff]
  %v126 = vld [vmem:[%s0 + $0x368] sm:$0xff]
  %v127 = vld [vmem:[%s0 + $0x370] sm:$0xff]
  %v128 = vld [vmem:[%s0 + $0x378] sm:$0xff]
  %v129 = vld [vmem:[%s0 + $0x380] sm:$0xff]
  %v130 = vld [vmem:[%s0 + $0x388] sm:$0xff]
  %v131 = vld [vmem:[%s0 + $0x390] sm:$0xff]
  %v132 = vld [vmem:[%s0 + $0x398] sm:$0xff]
  %v133 = vld [vmem:[%s0 + $0x3a0] sm:$0xff]
  %v134 = vld [vmem:[%s0 + $0x3a8] sm:$0xff]
  %v135 = vld [vmem:[%s0 + $0x3b0] sm:$0xff]
  %v136 = vld [vmem:[%s0 + $0x3b8] sm:$0xff]
  %v137 = vld [vmem:[%s0 + $0x3c0] sm:$0xff]
  %v138 = vld [vmem:[%s0 + $0x3c8] sm:$0xff]
  %v139 = vld [vmem:[%s0 + $0x3d0] sm:$0xff]
  %v140 = vld [vmem:[%s0 + $0x3d8] sm:$0xff]
  %v141 = vld [vmem:[%s0 + $0x3e0] sm:$0xff]
  %v142 = vld [vmem:[%s0 + $0x3e8] sm:$0xff]
  %v143 = vld [vmem:[%s0 + $0x3f0] sm:$0xff]
  %v144 = vld [vmem:[%s0 + $0x3f8] sm:$0xff]
  %v145 = vld [vmem:[%s0 + $0x400] sm:$0xff]
  %v146 = vld [vmem:[%s0 + $0x408] sm:$0xff]
  %v147 = vld [vmem:[%s0 + $0x410] sm:$0xff]
  %v148 = vld [vmem:[%s0 + $0x418] sm:$0xff]
  %v149 = vld [vmem:[%s0 + $0x420] sm:$0xff]
  %v150 = vld [vmem:[%s0 + $0x428] sm:$0xff]
  %v151 = vld [vmem:[%s0 + $0x430] sm:$0xff]
  %v152 = vld [vmem:[%s0 + $0x438] sm:$0xff]
  %v153 = vld [vmem:[%s0 + $0x440] sm:$0xff]
  %v154 = vld [vmem:[%s0 + $0x448] sm:$0xff]
  %v155 = vld [vmem:[%s0 + $0x450] sm:$0xff]
  %v156 = vld [vmem:[%s0 + $0x458] sm:$0xff]
  %v157 = vld [vmem:[%s0 + $0x460] sm:$0xff]
  %v158 = vld [vmem:[%s0 + $0x468] sm:$0xff]
  %v159 = vld [vmem:[%s0 + $0x470] sm:$0xff]
  %v160 = vld [vmem:[%s0 + $0x478] sm:$0xff]
  %v161 = vld [vmem:[%s0 + $0x480] sm:$0xff]
  %v162 = vld [vmem:[%s0 + $0x488] sm:$0xff]
  %v163 = vld [vmem:[%s0 + $0x490] sm:$0xff]
  %v164 = vld [vmem:[%s0 + $0x498] sm:$0xff]
  %v165 = vld [vmem:[%s0 + $0x4a0] sm:$0xff]
  %v166 = vld [vmem:[%s0 + $0x4a8] sm:$0xff]
  %v167 = vld [vmem:[%s0 + $0x4b0] sm:$0xff]
  %v168 = vld [vmem:[%s0 + $0x4b8] sm:$0xff]
  %v169 = vld [vmem:[%s0 + $0x4c0] sm:$0xff]
  %v170 = vld [vmem:[%s0 + $0x4c8] sm:$0xff]
  %v171 = vld [vmem:[%s0 + $0x4d0] sm:$0xff]
  %v172 = vld [vmem:[%s0 + $0x4d8] sm:$0xff]
  %v173 = vld [vmem:[%s0 + $0x4e0] sm:$0xff]
  %v174 = vld [vmem:[%s0 + $0x4e8] sm:$0xff]
  %v175 = vld [vmem:[%s0 + $0x4f0] sm:$0xff]
  %v176 = vld [vmem:[%s0 + $0x4f8] sm:$0xff]
  %v177 = vld [vmem:[%s0 + $0x500] sm:$0xff]
  %v178 = vld [vmem:[%s0 + $0x508] sm:$0xff]
  %v179 = vld [vmem:[%s0 + $0x510] sm:$0xff]
  %v180 = vld [vmem:[%s0 + $0x518] sm:$0xff]
  %v181 = vld [vmem:[%s0 + $0x520] sm:$0xff]
  %v182 = vld [vmem:[%s0 + $0x528] sm:$0xff]
  %v183 = vld [vmem:[%s0 + $0x530] sm:$0xff]
  %v184 = vld [vmem:[%s0 + $0x538] sm:$0xff]
  %v185 = vld [vmem:[%s0 + $0x540] sm:$0xff]
  %v186 = vld [vmem:[%s0 + $0x548] sm:$0xff]
  %v187 = vld [vmem:[%s0 + $0x550] sm:$0xff]
  %v188 = vld [vmem:[%s0 + $0x558] sm:$0xff]
  %v189 = vld [vmem:[%s0 + $0x560] sm:$0xff]
  %v190 = vld [vmem:[%s0 + $0x568] sm:$0xff]
  %v191 = vld [vmem:[%s0 + $0x570] sm:$0xff]
  %v192 = vld [vmem:[%s0 + $0x578] sm:$0xff]
  %v193 = vld [vmem:[%s0 + $0x580] sm:$0xff]
  %v194 = vld [vmem:[%s0 + $0x588] sm:$0xff]
  %v195 = vld [vmem:[%s0 + $0x590] sm:$0xff]
  %v196 = vld [vmem:[%s0 + $0x598] sm:$0xff]
  %v197 = vld [vmem:[%s0 + $0x5a0] sm:$0xff]
  %v198 = vld [vmem:[%s0 + $0x5a8] sm:$0xff]
  %v199 = vld [vmem:[%s0 + $0x5b0] sm:$0xff]
  %v200 = vld [vmem:[%s0 + $0x5b8] sm:$0xff]
  %v201 = vld [vmem:[%s0 + $0x5c0] sm:$0xff]
  %v202 = vld [vmem:[%s0 + $0x5c8] sm:$0xff]
  %v203 = vld [vmem:[%s0 + $0x5d0] sm:$0xff]
  %v204 = vld [vmem:[%s0 + $0x5d8] sm:$0xff]
  %v205 = vld [vmem:[%s0 + $0x5e0] sm:$0xff]
  %v206 = vld [vmem:[%s0 + $0x5e8] sm:$0xff]
  %v207 = vld [vmem:[%s0 + $0x5f0] sm:$0xff]
  %v208 = vld [vmem:[%s0 + $0x5f8] sm:$0xff]
  %v209 = vmul.f32 %v17, 0.5
  %v210 = vmul.f32 %v18, 0.5
  %v211 = vmul.f32 %v19, 0.5
  %v212 = vmul.f32 %v20, 0.5
  %v213 = vmul.f32 %v21, 0.5
  %v214 = vmul.f32 %v22, 0.5
  %v215 = vmul.f32 %v23, 0.5
  %v216 = vmul.f32 %v24, 0.5
  %v217 = vmul.f32 %v25, 0.5
  %v218 = vmul.f32 %v26, 0.5
  %v219 = vmul.f32 %v27, 0.5
  %v220 = vmul.f32 %v28, 0.5
  %v221 = vmul.f32 %v29, 0.5
  %v222 = vmul.f32 %v30, 0.5
  %v223 = vmul.f32 %v31, 0.5
  %v224 = vmul.f32 %v32, 0.5
  %v225 = vmul.f32 %v33, 0.5
  %v226 = vmul.f32 %v34, 0.5
  %v227 = vmul.f32 %v35, 0.5
  %v228 = vmul.f32 %v36, 0.5
  %v229 = vmul.f32 %v37, 0.5
  %v230 = vmul.f32 %v38, 0.5
  %v231 = vmul.f32 %v39, 0.5
  %v232 = vmul.f32 %v40, 0.5
  %v233 = vmul.f32 %v41, 0.5
  %v234 = vmul.f32 %v42, 0.5
  %v235 = vmul.f32 %v43, 0.5
  %v236 = vmul.f32 %v44, 0.5
  %v237 = vmul.f32 %v45, 0.5
  %v238 = vmul.f32 %v46, 0.5
  %v239 = vmul.f32 %v47, 0.5
  %v240 = vmul.f32 %v48, 0.5
  %v241 = vmul.f32 %v49, 0.5
  %v242 = vmul.f32 %v50, 0.5
  %v243 = vmul.f32 %v51, 0.5
  %v244 = vmul.f32 %v52, 0.5
  %v245 = vmul.f32 %v53, 0.5
  %v246 = vmul.f32 %v54, 0.5
  %v247 = vmul.f32 %v55, 0.5
  %v248 = vmul.f32 %v56, 0.5
  %v249 = vmul.f32 %v57, 0.5
  %v250 = vmul.f32 %v58, 0.5
  %v251 = vmul.f32 %v59, 0.5
  %v252 = vmul.f32 %v60, 0.5
  %v253 = vmul.f32 %v61, 0.5
  %v254 = vmul.f32 %v62, 0.5
  %v255 = vmul.f32 %v63, 0.5
  %v256 = vmul.f32 %v64, 0.5
  %v257 = vmul.f32 %v65, 0.5
  %v258 = vmul.f32 %v66, 0.5
  %v259 = vmul.f32 %v67, 0.5
  %v260 = vmul.f32 %v68, 0.5
  %v261 = vmul.f32 %v69, 0.5
  %v262 = vmul.f32 %v70, 0.5
  %v263 = vmul.f32 %v71, 0.5
  %v264 = vmul.f32 %v72, 0.5
  %v265 = vmul.f32 %v73, 0.5
  %v266 = vmul.f32 %v74, 0.5
  %v267 = vmul.f32 %v75, 0.5
  %v268 = vmul.f32 %v76, 0.5
  %v269 = vmul.f32 %v77, 0.5
  %v270 = vmul.f32 %v78, 0.5
  %v271 = vmul.f32 %v79, 0.5
  %v272 = vmul.f32 %v80, 0.5
  %v273 = vmul.f32 %v81, 0.5
  %v274 = vmul.f32 %v82, 0.5
  %v275 = vmul.f32 %v83, 0.5
  %v276 = vmul.f32 %v84, 0.5
  %v277 = vmul.f32 %v85, 0.5
  %v278 = vmul.f32 %v86, 0.5
  %v279 = vmul.f32 %v87, 0.5
  %v280 = vmul.f32 %v88, 0.5
  %v281 = vmul.f32 %v89, 0.5
  %v282 = vmul.f32 %v90, 0.5
  %v283 = vmul.f32 %v91, 0.5
  %v284 = vmul.f32 %v92, 0.5
  %v285 = vmul.f32 %v93, 0.5
  %v286 = vmul.f32 %v94, 0.5
  %v287 = vmul.f32 %v95, 0.5
  %v288 = vmul.f32 %v96, 0.5
  %v289 = vmul.f32 %v97, 0.5
  %v290 = vmul.f32 %v98, 0.5
  %v291 = vmul.f32 %v99, 0.5
  %v292 = vmul.f32 %v100, 0.5
  %v293 = vmul.f32 %v101, 0.5
  %v294 = vmul.f32 %v102, 0.5
  %v295 = vmul.f32 %v103, 0.5
  %v296 = vmul.f32 %v104, 0.5
  %v297 = vmul.f32 %v105, 0.5
  %v298 = vmul.f32 %v106, 0.5
  %v299 = vmul.f32 %v107, 0.5
  %v300 = vmul.f32 %v108, 0.5
  %v301 = vmul.f32 %v109, 0.5
  %v302 = vmul.f32 %v110, 0.5
  %v303 = vmul.f32 %v111, 0.5
  %v304 = vmul.f32 %v112, 0.5
  %v305 = vmul.f32 %v113, 0.5
  %v306 = vmul.f32 %v114, 0.5
  %v307 = vmul.f32 %v115, 0.5
  %v308 = vmul.f32 %v116, 0.5
  %v309 = vmul.f32 %v117, 0.5
  %v310 = vmul.f32 %v118, 0.5
  %v311 = vmul.f32 %v119, 0.5
  %v312 = vmul.f32 %v120, 0.5
  %v313 = vmul.f32 %v121, 0.5
  %v314 = vmul.f32 %v122, 0.5
  %v315 = vmul.f32 %v123, 0.5
  %v316 = vmul.f32 %v124, 0.5
  %v317 = vmul.f32 %v125, 0.5
  %v318 = vmul.f32 %v126, 0.5
  %v319 = vmul.f32 %v127, 0.5
  %v320 = vmul.f32 %v128, 0.5
  %v321 = vmul.f32 %v129, 0.5
  %v322 = vmul.f32 %v130, 0.5
  %v323 = vmul.f32 %v131, 0.5
  %v324 = vmul.f32 %v132, 0.5
  %v325 = vmul.f32 %v133, 0.5
  %v326 = vmul.f32 %v134, 0.5
  %v327 = vmul.f32 %v135, 0.5
  %v328 = vmul.f32 %v136, 0.5
  %v329 = vmul.f32 %v137, 0.5
  %v330 = vmul.f32 %v138, 0.5
  %v331 = vmul.f32 %v139, 0.5
  %v332 = vmul.f32 %v140, 0.5
  %v333 = vmul.f32 %v141, 0.5
  %v334 = vmul.f32 %v142, 0.5
  %v335 = vmul.f32 %v143, 0.5
  %v336 = vmul.f32 %v144, 0.5
  %v337 = vmul.f32 %v145, 0.5
  %v338 = vmul.f32 %v146, 0.5
  %v339 = vmul.f32 %v147, 0.5
  %v340 = vmul.f32 %v148, 0.5
  %v341 = vmul.f32 %v149, 0.5
  %v342 = vmul.f32 %v150, 0.5
  %v343 = vmul.f32 %v151, 0.5
  %v344 = vmul.f32 %v152, 0.5
  %v345 = vmul.f32 %v153, 0.5
  %v346 = vmul.f32 %v154, 0.5
  %v347 = vmul.f32 %v155, 0.5
  %v348 = vmul.f32 %v156, 0.5
  %v349 = vmul.f32 %v157, 0.5
  %v350 = vmul.f32 %v158, 0.5
  %v351 = vmul.f32 %v159, 0.5
  %v352 = vmul.f32 %v160, 0.5
  %v353 = vmul.f32 %v161, 0.5
  %v354 = vmul.f32 %v162, 0.5
  %v355 = vmul.f32 %v163, 0.5
  %v356 = vmul.f32 %v164, 0.5
  %v357 = vmul.f32 %v165, 0.5
  %v358 = vmul.f32 %v166, 0.5
  %v359 = vmul.f32 %v167, 0.5
  %v360 = vmul.f32 %v168, 0.5
  %v361 = vmul.f32 %v169, 0.5
  %v362 = vmul.f32 %v170, 0.5
  %v363 = vmul.f32 %v171, 0.5
  %v364 = vmul.f32 %v172, 0.5
  %v365 = vmul.f32 %v173, 0.5
  %v366 = vmul.f32 %v174, 0.5
  %v367 = vmul.f32 %v175, 0.5
  %v368 = vmul.f32 %v176, 0.5
  %v369 = vmul.f32 %v177, 0.5
  %v370 = vmul.f32 %v178, 0.5
  %v371 = vmul.f32 %v179, 0.5
  %v372 = vmul.f32 %v180, 0.5
  %v373 = vmul.f32 %v181, 0.5
  %v374 = vmul.f32 %v182, 0.5
  %v375 = vmul.f32 %v183, 0.5
  %v376 = vmul.f32 %v184, 0.5
  %v377 = vmul.f32 %v185, 0.5
  %v378 = vmul.f32 %v186, 0.5
  %v379 = vmul.f32 %v187, 0.5
  %v380 = vmul.f32 %v188, 0.5
  %v381 = vmul.f32 %v189, 0.5
  %v382 = vmul.f32 %v190, 0.5
  %v383 = vmul.f32 %v191, 0.5
  %v384 = vmul.f32 %v192, 0.5
  %v385 = vmul.f32 %v193, 0.5
  %v386 = vmul.f32 %v194, 0.5
  %v387 = vmul.f32 %v195, 0.5
  %v388 = vmul.f32 %v196, 0.5
  %v389 = vmul.f32 %v197, 0.5
  %v390 = vmul.f32 %v198, 0.5
  %v391 = vmul.f32 %v199, 0.5
  %v392 = vmul.f32 %v200, 0.5
  %v393 = vmul.f32 %v201, 0.5
  %v394 = vmul.f32 %v202, 0.5
  %v395 = vmul.f32 %v203, 0.5
  %v396 = vmul.f32 %v204, 0.5
  %v397 = vmul.f32 %v205, 0.5
  %v398 = vmul.f32 %v206, 0.5
  %v399 = vmul.f32 %v207, 0.5
  %v400 = vmul.f32 %v208, 0.5
  %v401 = vtanh.pop %v209
  %v402 = vtanh.pop %v210
  %v403 = vtanh.pop %v211
  %v404 = vtanh.pop %v212
  %v405 = vtanh.pop %v213
  %v406 = vtanh.pop %v214
  %v407 = vtanh.pop %v215
  %v408 = vtanh.pop %v216
  %v409 = vtanh.pop %v217
  %v410 = vtanh.pop %v218
  %v411 = vtanh.pop %v219
  %v412 = vtanh.pop %v220
  %v413 = vtanh.pop %v221
  %v414 = vtanh.pop %v222
  %v415 = vtanh.pop %v223
  %v416 = vtanh.pop %v224
  %v417 = vtanh.pop %v225
  %v418 = vtanh.pop %v226
  %v419 = vtanh.pop %v227
  %v420 = vtanh.pop %v228
  %v421 = vtanh.pop %v229
  %v422 = vtanh.pop %v230
  %v423 = vtanh.pop %v231
  %v424 = vtanh.pop %v232
  %v425 = vtanh.pop %v233
  %v426 = vtanh.pop %v234
  %v427 = vtanh.pop %v235
  %v428 = vtanh.pop %v236
  %v429 = vtanh.pop %v237
  %v430 = vtanh.pop %v238
  %v431 = vtanh.pop %v239
  %v432 = vtanh.pop %v240
  %v433 = vtanh.pop %v241
  %v434 = vtanh.pop %v242
  %v435 = vtanh.pop %v243
  %v436 = vtanh.pop %v244
  %v437 = vtanh.pop %v245
  %v438 = vtanh.pop %v246
  %v439 = vtanh.pop %v247
  %v440 = vtanh.pop %v248
  %v441 = vtanh.pop %v249
  %v442 = vtanh.pop %v250
  %v443 = vtanh.pop %v251
  %v444 = vtanh.pop %v252
  %v445 = vtanh.pop %v253
  %v446 = vtanh.pop %v254
  %v447 = vtanh.pop %v255
  %v448 = vtanh.pop %v256
  %v449 = vtanh.pop %v257
  %v450 = vtanh.pop %v258
  %v451 = vtanh.pop %v259
  %v452 = vtanh.pop %v260
  %v453 = vtanh.pop %v261
  %v454 = vtanh.pop %v262
  %v455 = vtanh.pop %v263
  %v456 = vtanh.pop %v264
  %v457 = vtanh.pop %v265
  %v458 = vtanh.pop %v266
  %v459 = vtanh.pop %v267
  %v460 = vtanh.pop %v268
  %v461 = vtanh.pop %v269
  %v462 = vtanh.pop %v270
  %v463 = vtanh.pop %v271
  %v464 = vtanh.pop %v272
  %v465 = vtanh.pop %v273
  %v466 = vtanh.pop %v274
  %v467 = vtanh.pop %v275
  %v468 = vtanh.pop %v276
  %v469 = vtanh.pop %v277
  %v470 = vtanh.pop %v278
  %v471 = vtanh.pop %v279
  %v472 = vtanh.pop %v280
  %v473 = vtanh.pop %v281
  %v474 = vtanh.pop %v282
  %v475 = vtanh.pop %v283
  %v476 = vtanh.pop %v284
  %v477 = vtanh.pop %v285
  %v478 = vtanh.pop %v286
  %v479 = vtanh.pop %v287
  %v480 = vtanh.pop %v288
  %v481 = vtanh.pop %v289
  %v482 = vtanh.pop %v290
  %v483 = vtanh.pop %v291
  %v484 = vtanh.pop %v292
  %v485 = vtanh.pop %v293
  %v486 = vtanh.pop %v294
  %v487 = vtanh.pop %v295
  %v488 = vtanh.pop %v296
  %v489 = vtanh.pop %v297
  %v490 = vtanh.pop %v298
  %v491 = vtanh.pop %v299
  %v492 = vtanh.pop %v300
  %v493 = vtanh.pop %v301
  %v494 = vtanh.pop %v302
  %v495 = vtanh.pop %v303
  %v496 = vtanh.pop %v304
  %v497 = vtanh.pop %v305
  %v498 = vtanh.pop %v306
  %v499 = vtanh.pop %v307
  %v500 = vtanh.pop %v308
  %v501 = vtanh.pop %v309
  %v502 = vtanh.pop %v310
  %v503 = vtanh.pop %v311
  %v504 = vtanh.pop %v312
  %v505 = vtanh.pop %v313
  %v506 = vtanh.pop %v314
  %v507 = vtanh.pop %v315
  %v508 = vtanh.pop %v316
  %v509 = vtanh.pop %v317
  %v510 = vtanh.pop %v318
  %v511 = vtanh.pop %v319
  %v512 = vtanh.pop %v320
  %v513 = vtanh.pop %v321
  %v514 = vtanh.pop %v322
  %v515 = vtanh.pop %v323
  %v516 = vtanh.pop %v324
  %v517 = vtanh.pop %v325
  %v518 = vtanh.pop %v326
  %v519 = vtanh.pop %v327
  %v520 = vtanh.pop %v328
  %v521 = vtanh.pop %v329
  %v522 = vtanh.pop %v330
  %v523 = vtanh.pop %v331
  %v524 = vtanh.pop %v332
  %v525 = vtanh.pop %v333
  %v526 = vtanh.pop %v334
  %v527 = vtanh.pop %v335
  %v528 = vtanh.pop %v336
  %v529 = vtanh.pop %v337
  %v530 = vtanh.pop %v338
  %v531 = vtanh.pop %v339
  %v532 = vtanh.pop %v340
  %v533 = vtanh.pop %v341
  %v534 = vtanh.pop %v342
  %v535 = vtanh.pop %v343
  %v536 = vtanh.pop %v344
  %v537 = vtanh.pop %v345
  %v538 = vtanh.pop %v346
  %v539 = vtanh.pop %v347
  %v540 = vtanh.pop %v348
  %v541 = vtanh.pop %v349
  %v542 = vtanh.pop %v350
  %v543 = vtanh.pop %v351
  %v544 = vtanh.pop %v352
  %v545 = vtanh.pop %v353
  %v546 = vtanh.pop %v354
  %v547 = vtanh.pop %v355
  %v548 = vtanh.pop %v356
  %v549 = vtanh.pop %v357
  %v550 = vtanh.pop %v358
  %v551 = vtanh.pop %v359
  %v552 = vtanh.pop %v360
  %v553 = vtanh.pop %v361
  %v554 = vtanh.pop %v362
  %v555 = vtanh.pop %v363
  %v556 = vtanh.pop %v364
  %v557 = vtanh.pop %v365
  %v558 = vtanh.pop %v366
  %v559 = vtanh.pop %v367
  %v560 = vtanh.pop %v368
  %v561 = vtanh.pop %v369
  %v562 = vtanh.pop %v370
  %v563 = vtanh.pop %v371
  %v564 = vtanh.pop %v372
  %v565 = vtanh.pop %v373
  %v566 = vtanh.pop %v374
  %v567 = vtanh.pop %v375
  %v568 = vtanh.pop %v376
  %v569 = vtanh.pop %v377
  %v570 = vtanh.pop %v378
  %v571 = vtanh.pop %v379
  %v572 = vtanh.pop %v380
  %v573 = vtanh.pop %v381
  %v574 = vtanh.pop %v382
  %v575 = vtanh.pop %v383
  %v576 = vtanh.pop %v384
  %v577 = vtanh.pop %v385
  %v578 = vtanh.pop %v386
  %v579 = vtanh.pop %v387
  %v580 = vtanh.pop %v388
  %v581 = vtanh.pop %v389
  %v582 = vtanh.pop %v390
  %v583 = vtanh.pop %v391
  %v584 = vtanh.pop %v392
  %v585 = vtanh.pop %v393
  %v586 = vtanh.pop %v394
  %v587 = vtanh.pop %v395
  %v588 = vtanh.pop %v396
  %v589 = vtanh.pop %v397
  %v590 = vtanh.pop %v398
  %v591 = vtanh.pop %v399
  %v592 = vtanh.pop %v400
  %v593 = vadd.f32 %v401, 1.0
  %v594 = vadd.f32 %v402, 1.0
  %v595 = vadd.f32 %v403, 1.0
  %v596 = vadd.f32 %v404, 1.0
  %v597 = vadd.f32 %v405, 1.0
  %v598 = vadd.f32 %v406, 1.0
  %v599 = vadd.f32 %v407, 1.0
  %v600 = vadd.f32 %v408, 1.0
  %v601 = vadd.f32 %v409, 1.0
  %v602 = vadd.f32 %v410, 1.0
  %v603 = vadd.f32 %v411, 1.0
  %v604 = vadd.f32 %v412, 1.0
  %v605 = vadd.f32 %v413, 1.0
  %v606 = vadd.f32 %v414, 1.0
  %v607 = vadd.f32 %v415, 1.0
  %v608 = vadd.f32 %v416, 1.0
  %v609 = vadd.f32 %v417, 1.0
  %v610 = vadd.f32 %v418, 1.0
  %v611 = vadd.f32 %v419, 1.0
  %v612 = vadd.f32 %v420, 1.0
  %v613 = vadd.f32 %v421, 1.0
  %v614 = vadd.f32 %v422, 1.0
  %v615 = vadd.f32 %v423, 1.0
  %v616 = vadd.f32 %v424, 1.0
  %v617 = vadd.f32 %v425, 1.0
  %v618 = vadd.f32 %v426, 1.0
  %v619 = vadd.f32 %v427, 1.0
  %v620 = vadd.f32 %v428, 1.0
  %v621 = vadd.f32 %v429, 1.0
  %v622 = vadd.f32 %v430, 1.0
  %v623 = vadd.f32 %v431, 1.0
  %v624 = vadd.f32 %v432, 1.0
  %v625 = vadd.f32 %v433, 1.0
  %v626 = vadd.f32 %v434, 1.0
  %v627 = vadd.f32 %v435, 1.0
  %v628 = vadd.f32 %v436, 1.0
  %v629 = vadd.f32 %v437, 1.0
  %v630 = vadd.f32 %v438, 1.0
  %v631 = vadd.f32 %v439, 1.0
  %v632 = vadd.f32 %v440, 1.0
  %v633 = vadd.f32 %v441, 1.0
  %v634 = vadd.f32 %v442, 1.0
  %v635 = vadd.f32 %v443, 1.0
  %v636 = vadd.f32 %v444, 1.0
  %v637 = vadd.f32 %v445, 1.0
  %v638 = vadd.f32 %v446, 1.0
  %v639 = vadd.f32 %v447, 1.0
  %v640 = vadd.f32 %v448, 1.0
  %v641 = vadd.f32 %v449, 1.0
  %v642 = vadd.f32 %v450, 1.0
  %v643 = vadd.f32 %v451, 1.0
  %v644 = vadd.f32 %v452, 1.0
  %v645 = vadd.f32 %v453, 1.0
  %v646 = vadd.f32 %v454, 1.0
  %v647 = vadd.f32 %v455, 1.0
  %v648 = vadd.f32 %v456, 1.0
  %v649 = vadd.f32 %v457, 1.0
  %v650 = vadd.f32 %v458, 1.0
  %v651 = vadd.f32 %v459, 1.0
  %v652 = vadd.f32 %v460, 1.0
  %v653 = vadd.f32 %v461, 1.0
  %v654 = vadd.f32 %v462, 1.0
  %v655 = vadd.f32 %v463, 1.0
  %v656 = vadd.f32 %v464, 1.0
  %v657 = vadd.f32 %v465, 1.0
  %v658 = vadd.f32 %v466, 1.0
  %v659 = vadd.f32 %v467, 1.0
  %v660 = vadd.f32 %v468, 1.0
  %v661 = vadd.f32 %v469, 1.0
  %v662 = vadd.f32 %v470, 1.0
  %v663 = vadd.f32 %v471, 1.0
  %v664 = vadd.f32 %v472, 1.0
  %v665 = vadd.f32 %v473, 1.0
  %v666 = vadd.f32 %v474, 1.0
  %v667 = vadd.f32 %v475, 1.0
  %v668 = vadd.f32 %v476, 1.0
  %v669 = vadd.f32 %v477, 1.0
  %v670 = vadd.f32 %v478, 1.0
  %v671 = vadd.f32 %v479, 1.0
  %v672 = vadd.f32 %v480, 1.0
  %v673 = vadd.f32 %v481, 1.0
  %v674 = vadd.f32 %v482, 1.0
  %v675 = vadd.f32 %v483, 1.0
  %v676 = vadd.f32 %v484, 1.0
  %v677 = vadd.f32 %v485, 1.0
  %v678 = vadd.f32 %v486, 1.0
  %v679 = vadd.f32 %v487, 1.0
  %v680 = vadd.f32 %v488, 1.0
  %v681 = vadd.f32 %v489, 1.0
  %v682 = vadd.f32 %v490, 1.0
  %v683 = vadd.f32 %v491, 1.0
  %v684 = vadd.f32 %v492, 1.0
  %v685 = vadd.f32 %v493, 1.0
  %v686 = vadd.f32 %v494, 1.0
  %v687 = vadd.f32 %v495, 1.0
  %v688 = vadd.f32 %v496, 1.0
  %v689 = vadd.f32 %v497, 1.0
  %v690 = vadd.f32 %v498, 1.0
  %v691 = vadd.f32 %v499, 1.0
  %v692 = vadd.f32 %v500, 1.0
  %v693 = vadd.f32 %v501, 1.0
  %v694 = vadd.f32 %v502, 1.0
  %v695 = vadd.f32 %v503, 1.0
  %v696 = vadd.f32 %v504, 1.0
  %v697 = vadd.f32 %v505, 1.0
  %v698 = vadd.f32 %v506, 1.0
  %v699 = vadd.f32 %v507, 1.0
  %v700 = vadd.f32 %v508, 1.0
  %v701 = vadd.f32 %v509, 1.0
  %v702 = vadd.f32 %v510, 1.0
  %v703 = vadd.f32 %v511, 1.0
  %v704 = vadd.f32 %v512, 1.0
  %v705 = vadd.f32 %v513, 1.0
  %v706 = vadd.f32 %v514, 1.0
  %v707 = vadd.f32 %v515, 1.0
  %v708 = vadd.f32 %v516, 1.0
  %v709 = vadd.f32 %v517, 1.0
  %v710 = vadd.f32 %v518, 1.0
  %v711 = vadd.f32 %v519, 1.0
  %v712 = vadd.f32 %v520, 1.0
  %v713 = vadd.f32 %v521, 1.0
  %v714 = vadd.f32 %v522, 1.0
  %v715 = vadd.f32 %v523, 1.0
  %v716 = vadd.f32 %v524, 1.0
  %v717 = vadd.f32 %v525, 1.0
  %v718 = vadd.f32 %v526, 1.0
  %v719 = vadd.f32 %v527, 1.0
  %v720 = vadd.f32 %v528, 1.0
  %v721 = vadd.f32 %v529, 1.0
  %v722 = vadd.f32 %v530, 1.0
  %v723 = vadd.f32 %v531, 1.0
  %v724 = vadd.f32 %v532, 1.0
  %v725 = vadd.f32 %v533, 1.0
  %v726 = vadd.f32 %v534, 1.0
  %v727 = vadd.f32 %v535, 1.0
  %v728 = vadd.f32 %v536, 1.0
  %v729 = vadd.f32 %v537, 1.0
  %v730 = vadd.f32 %v538, 1.0
  %v731 = vadd.f32 %v539, 1.0
  %v732 = vadd.f32 %v540, 1.0
  %v733 = vadd.f32 %v541, 1.0
  %v734 = vadd.f32 %v542, 1.0
  %v735 = vadd.f32 %v543, 1.0
  %v736 = vadd.f32 %v544, 1.0
  %v737 = vadd.f32 %v545, 1.0
  %v738 = vadd.f32 %v546, 1.0
  %v739 = vadd.f32 %v547, 1.0
  %v740 = vadd.f32 %v548, 1.0
  %v741 = vadd.f32 %v549, 1.0
  %v742 = vadd.f32 %v550, 1.0
  %v743 = vadd.f32 %v551, 1.0
  %v744 = vadd.f32 %v552, 1.0
  %v745 = vadd.f32 %v553, 1.0
  %v746 = vadd.f32 %v554, 1.0
  %v747 = vadd.f32 %v555, 1.0
  %v748 = vadd.f32 %v556, 1.0
  %v749 = vadd.f32 %v557, 1.0
  %v750 = vadd.f32 %v558, 1.0
  %v751 = vadd.f32 %v559, 1.0
  %v752 = vadd.f32 %v560, 1.0
  %v753 = vadd.f32 %v561, 1.0
  %v754 = vadd.f32 %v562, 1.0
  %v755 = vadd.f32 %v563, 1.0
  %v756 = vadd.f32 %v564, 1.0
  %v757 = vadd.f32 %v565, 1.0
  %v758 = vadd.f32 %v566, 1.0
  %v759 = vadd.f32 %v567, 1.0
  %v760 = vadd.f32 %v568, 1.0
  %v761 = vadd.f32 %v569, 1.0
  %v762 = vadd.f32 %v570, 1.0
  %v763 = vadd.f32 %v571, 1.0
  %v764 = vadd.f32 %v572, 1.0
  %v765 = vadd.f32 %v573, 1.0
  %v766 = vadd.f32 %v574, 1.0
  %v767 = vadd.f32 %v575, 1.0
  %v768 = vadd.f32 %v576, 1.0
  %v769 = vadd.f32 %v577, 1.0
  %v770 = vadd.f32 %v578, 1.0
  %v771 = vadd.f32 %v579, 1.0
  %v772 = vadd.f32 %v580, 1.0
  %v773 = vadd.f32 %v581, 1.0
  %v774 = vadd.f32 %v582, 1.0
  %v775 = vadd.f32 %v583, 1.0
  %v776 = vadd.f32 %v584, 1.0
  %v777 = vadd.f32 %v585, 1.0
  %v778 = vadd.f32 %v586, 1.0
  %v779 = vadd.f32 %v587, 1.0
  %v780 = vadd.f32 %v588, 1.0
  %v781 = vadd.f32 %v589, 1.0
  %v782 = vadd.f32 %v590, 1.0
  %v783 = vadd.f32 %v591, 1.0
  %v784 = vadd.f32 %v592, 1.0
  %v785 = vmul.f32 %v593, 0.5
  %v786 = vmul.f32 %v594, 0.5
  %v787 = vmul.f32 %v595, 0.5
  %v788 = vmul.f32 %v596, 0.5
  %v789 = vmul.f32 %v597, 0.5
  %v790 = vmul.f32 %v598, 0.5
  %v791 = vmul.f32 %v599, 0.5
  %v792 = vmul.f32 %v600, 0.5
  %v793 = vmul.f32 %v601, 0.5
  %v794 = vmul.f32 %v602, 0.5
  %v795 = vmul.f32 %v603, 0.5
  %v796 = vmul.f32 %v604, 0.5
  %v797 = vmul.f32 %v605, 0.5
  %v798 = vmul.f32 %v606, 0.5
  %v799 = vmul.f32 %v607, 0.5
  %v800 = vmul.f32 %v608, 0.5
  %v801 = vmul.f32 %v609, 0.5
  %v802 = vmul.f32 %v610, 0.5
  %v803 = vmul.f32 %v611, 0.5
  %v804 = vmul.f32 %v612, 0.5
  %v805 = vmul.f32 %v613, 0.5
  %v806 = vmul.f32 %v614, 0.5
  %v807 = vmul.f32 %v615, 0.5
  %v808 = vmul.f32 %v616, 0.5
  %v809 = vmul.f32 %v617, 0.5
  %v810 = vmul.f32 %v618, 0.5
  %v811 = vmul.f32 %v619, 0.5
  %v812 = vmul.f32 %v620, 0.5
  %v813 = vmul.f32 %v621, 0.5
  %v814 = vmul.f32 %v622, 0.5
  %v815 = vmul.f32 %v623, 0.5
  %v816 = vmul.f32 %v624, 0.5
  %v817 = vmul.f32 %v625, 0.5
  %v818 = vmul.f32 %v626, 0.5
  %v819 = vmul.f32 %v627, 0.5
  %v820 = vmul.f32 %v628, 0.5
  %v821 = vmul.f32 %v629, 0.5
  %v822 = vmul.f32 %v630, 0.5
  %v823 = vmul.f32 %v631, 0.5
  %v824 = vmul.f32 %v632, 0.5
  %v825 = vmul.f32 %v633, 0.5
  %v826 = vmul.f32 %v634, 0.5
  %v827 = vmul.f32 %v635, 0.5
  %v828 = vmul.f32 %v636, 0.5
  %v829 = vmul.f32 %v637, 0.5
  %v830 = vmul.f32 %v638, 0.5
  %v831 = vmul.f32 %v639, 0.5
  %v832 = vmul.f32 %v640, 0.5
  %v833 = vmul.f32 %v641, 0.5
  %v834 = vmul.f32 %v642, 0.5
  %v835 = vmul.f32 %v643, 0.5
  %v836 = vmul.f32 %v644, 0.5
  %v837 = vmul.f32 %v645, 0.5
  %v838 = vmul.f32 %v646, 0.5
  %v839 = vmul.f32 %v647, 0.5
  %v840 = vmul.f32 %v648, 0.5
  %v841 = vmul.f32 %v649, 0.5
  %v842 = vmul.f32 %v650, 0.5
  %v843 = vmul.f32 %v651, 0.5
  %v844 = vmul.f32 %v652, 0.5
  %v845 = vmul.f32 %v653, 0.5
  %v846 = vmul.f32 %v654, 0.5
  %v847 = vmul.f32 %v655, 0.5
  %v848 = vmul.f32 %v656, 0.5
  %v849 = vmul.f32 %v657, 0.5
  %v850 = vmul.f32 %v658, 0.5
  %v851 = vmul.f32 %v659, 0.5
  %v852 = vmul.f32 %v660, 0.5
  %v853 = vmul.f32 %v661, 0.5
  %v854 = vmul.f32 %v662, 0.5
  %v855 = vmul.f32 %v663, 0.5
  %v856 = vmul.f32 %v664, 0.5
  %v857 = vmul.f32 %v665, 0.5
  %v858 = vmul.f32 %v666, 0.5
  %v859 = vmul.f32 %v667, 0.5
  %v860 = vmul.f32 %v668, 0.5
  %v861 = vmul.f32 %v669, 0.5
  %v862 = vmul.f32 %v670, 0.5
  %v863 = vmul.f32 %v671, 0.5
  %v864 = vmul.f32 %v672, 0.5
  %v865 = vmul.f32 %v673, 0.5
  %v866 = vmul.f32 %v674, 0.5
  %v867 = vmul.f32 %v675, 0.5
  %v868 = vmul.f32 %v676, 0.5
  %v869 = vmul.f32 %v677, 0.5
  %v870 = vmul.f32 %v678, 0.5
  %v871 = vmul.f32 %v679, 0.5
  %v872 = vmul.f32 %v680, 0.5
  %v873 = vmul.f32 %v681, 0.5
  %v874 = vmul.f32 %v682, 0.5
  %v875 = vmul.f32 %v683, 0.5
  %v876 = vmul.f32 %v684, 0.5
  %v877 = vmul.f32 %v685, 0.5
  %v878 = vmul.f32 %v686, 0.5
  %v879 = vmul.f32 %v687, 0.5
  %v880 = vmul.f32 %v688, 0.5
  %v881 = vmul.f32 %v689, 0.5
  %v882 = vmul.f32 %v690, 0.5
  %v883 = vmul.f32 %v691, 0.5
  %v884 = vmul.f32 %v692, 0.5
  %v885 = vmul.f32 %v693, 0.5
  %v886 = vmul.f32 %v694, 0.5
  %v887 = vmul.f32 %v695, 0.5
  %v888 = vmul.f32 %v696, 0.5
  %v889 = vmul.f32 %v697, 0.5
  %v890 = vmul.f32 %v698, 0.5
  %v891 = vmul.f32 %v699, 0.5
  %v892 = vmul.f32 %v700, 0.5
  %v893 = vmul.f32 %v701, 0.5
  %v894 = vmul.f32 %v702, 0.5
  %v895 = vmul.f32 %v703, 0.5
  %v896 = vmul.f32 %v704, 0.5
  %v897 = vmul.f32 %v705, 0.5
  %v898 = vmul.f32 %v706, 0.5
  %v899 = vmul.f32 %v707, 0.5
  %v900 = vmul.f32 %v708, 0.5
  %v901 = vmul.f32 %v709, 0.5
  %v902 = vmul.f32 %v710, 0.5
  %v903 = vmul.f32 %v711, 0.5
  %v904 = vmul.f32 %v712, 0.5
  %v905 = vmul.f32 %v713, 0.5
  %v906 = vmul.f32 %v714, 0.5
  %v907 = vmul.f32 %v715, 0.5
  %v908 = vmul.f32 %v716, 0.5
  %v909 = vmul.f32 %v717, 0.5
  %v910 = vmul.f32 %v718, 0.5
  %v911 = vmul.f32 %v719, 0.5
  %v912 = vmul.f32 %v720, 0.5
  %v913 = vmul.f32 %v721, 0.5
  %v914 = vmul.f32 %v722, 0.5
  %v915 = vmul.f32 %v723, 0.5
  %v916 = vmul.f32 %v724, 0.5
  %v917 = vmul.f32 %v725, 0.5
  %v918 = vmul.f32 %v726, 0.5
  %v919 = vmul.f32 %v727, 0.5
  %v920 = vmul.f32 %v728, 0.5
  %v921 = vmul.f32 %v729, 0.5
  %v922 = vmul.f32 %v730, 0.5
  %v923 = vmul.f32 %v731, 0.5
  %v924 = vmul.f32 %v732, 0.5
  %v925 = vmul.f32 %v733, 0.5
  %v926 = vmul.f32 %v734, 0.5
  %v927 = vmul.f32 %v735, 0.5
  %v928 = vmul.f32 %v736, 0.5
  %v929 = vmul.f32 %v737, 0.5
  %v930 = vmul.f32 %v738, 0.5
  %v931 = vmul.f32 %v739, 0.5
  %v932 = vmul.f32 %v740, 0.5
  %v933 = vmul.f32 %v741, 0.5
  %v934 = vmul.f32 %v742, 0.5
  %v935 = vmul.f32 %v743, 0.5
  %v936 = vmul.f32 %v744, 0.5
  %v937 = vmul.f32 %v745, 0.5
  %v938 = vmul.f32 %v746, 0.5
  %v939 = vmul.f32 %v747, 0.5
  %v940 = vmul.f32 %v748, 0.5
  %v941 = vmul.f32 %v749, 0.5
  %v942 = vmul.f32 %v750, 0.5
  %v943 = vmul.f32 %v751, 0.5
  %v944 = vmul.f32 %v752, 0.5
  %v945 = vmul.f32 %v753, 0.5
  %v946 = vmul.f32 %v754, 0.5
  %v947 = vmul.f32 %v755, 0.5
  %v948 = vmul.f32 %v756, 0.5
  %v949 = vmul.f32 %v757, 0.5
  %v950 = vmul.f32 %v758, 0.5
  %v951 = vmul.f32 %v759, 0.5
  %v952 = vmul.f32 %v760, 0.5
  %v953 = vmul.f32 %v761, 0.5
  %v954 = vmul.f32 %v762, 0.5
  %v955 = vmul.f32 %v763, 0.5
  %v956 = vmul.f32 %v764, 0.5
  %v957 = vmul.f32 %v765, 0.5
  %v958 = vmul.f32 %v766, 0.5
  %v959 = vmul.f32 %v767, 0.5
  %v960 = vmul.f32 %v768, 0.5
  %v961 = vmul.f32 %v769, 0.5
  %v962 = vmul.f32 %v770, 0.5
  %v963 = vmul.f32 %v771, 0.5
  %v964 = vmul.f32 %v772, 0.5
  %v965 = vmul.f32 %v773, 0.5
  %v966 = vmul.f32 %v774, 0.5
  %v967 = vmul.f32 %v775, 0.5
  %v968 = vmul.f32 %v776, 0.5
  %v969 = vmul.f32 %v777, 0.5
  %v970 = vmul.f32 %v778, 0.5
  %v971 = vmul.f32 %v779, 0.5
  %v972 = vmul.f32 %v780, 0.5
  %v973 = vmul.f32 %v781, 0.5
  %v974 = vmul.f32 %v782, 0.5
  %v975 = vmul.f32 %v783, 0.5
  %v976 = vmul.f32 %v784, 0.5
  %v977 = vld [vmem:[%s1] sm:$0xff]
  %v978 = vld [vmem:[%s1 + $0x8] sm:$0xff]
  %v979 = vld [vmem:[%s1 + $0x10] sm:$0xff]
  %v980 = vld [vmem:[%s1 + $0x18] sm:$0xff]
  %v981 = vld [vmem:[%s1 + $0x20] sm:$0xff]
  %v982 = vld [vmem:[%s1 + $0x28] sm:$0xff]
  %v983 = vld [vmem:[%s1 + $0x30] sm:$0xff]
  %v984 = vld [vmem:[%s1 + $0x38] sm:$0xff]
  %v985 = vld [vmem:[%s1 + $0x40] sm:$0xff]
  %v986 = vld [vmem:[%s1 + $0x48] sm:$0xff]
  %v987 = vld [vmem:[%s1 + $0x50] sm:$0xff]
  %v988 = vld [vmem:[%s1 + $0x58] sm:$0xff]
  %v989 = vld [vmem:[%s1 + $0x60] sm:$0xff]
  %v990 = vld [vmem:[%s1 + $0x68] sm:$0xff]
  %v991 = vld [vmem:[%s1 + $0x70] sm:$0xff]
  %v992 = vld [vmem:[%s1 + $0x78] sm:$0xff]
  %v993 = vld [vmem:[%s1 + $0x80] sm:$0xff]
  %v994 = vld [vmem:[%s1 + $0x88] sm:$0xff]
  %v995 = vld [vmem:[%s1 + $0x90] sm:$0xff]
  %v996 = vld [vmem:[%s1 + $0x98] sm:$0xff]
  %v997 = vld [vmem:[%s1 + $0xa0] sm:$0xff]
  %v998 = vld [vmem:[%s1 + $0xa8] sm:$0xff]
  %v999 = vld [vmem:[%s1 + $0xb0] sm:$0xff]
  %v1000 = vld [vmem:[%s1 + $0xb8] sm:$0xff]
  %v1001 = vld [vmem:[%s1 + $0xc0] sm:$0xff]
  %v1002 = vld [vmem:[%s1 + $0xc8] sm:$0xff]
  %v1003 = vld [vmem:[%s1 + $0xd0] sm:$0xff]
  %v1004 = vld [vmem:[%s1 + $0xd8] sm:$0xff]
  %v1005 = vld [vmem:[%s1 + $0xe0] sm:$0xff]
  %v1006 = vld [vmem:[%s1 + $0xe8] sm:$0xff]
  %v1007 = vld [vmem:[%s1 + $0xf0] sm:$0xff]
  %v1008 = vld [vmem:[%s1 + $0xf8] sm:$0xff]
  %v1009 = vld [vmem:[%s1 + $0x100] sm:$0xff]
  %v1010 = vld [vmem:[%s1 + $0x108] sm:$0xff]
  %v1011 = vld [vmem:[%s1 + $0x110] sm:$0xff]
  %v1012 = vld [vmem:[%s1 + $0x118] sm:$0xff]
  %v1013 = vld [vmem:[%s1 + $0x120] sm:$0xff]
  %v1014 = vld [vmem:[%s1 + $0x128] sm:$0xff]
  %v1015 = vld [vmem:[%s1 + $0x130] sm:$0xff]
  %v1016 = vld [vmem:[%s1 + $0x138] sm:$0xff]
  %v1017 = vld [vmem:[%s1 + $0x140] sm:$0xff]
  %v1018 = vld [vmem:[%s1 + $0x148] sm:$0xff]
  %v1019 = vld [vmem:[%s1 + $0x150] sm:$0xff]
  %v1020 = vld [vmem:[%s1 + $0x158] sm:$0xff]
  %v1021 = vld [vmem:[%s1 + $0x160] sm:$0xff]
  %v1022 = vld [vmem:[%s1 + $0x168] sm:$0xff]
  %v1023 = vld [vmem:[%s1 + $0x170] sm:$0xff]
  %v1024 = vld [vmem:[%s1 + $0x178] sm:$0xff]
  %v1025 = vld [vmem:[%s1 + $0x180] sm:$0xff]
  %v1026 = vld [vmem:[%s1 + $0x188] sm:$0xff]
  %v1027 = vld [vmem:[%s1 + $0x190] sm:$0xff]
  %v1028 = vld [vmem:[%s1 + $0x198] sm:$0xff]
  %v1029 = vld [vmem:[%s1 + $0x1a0] sm:$0xff]
  %v1030 = vld [vmem:[%s1 + $0x1a8] sm:$0xff]
  %v1031 = vld [vmem:[%s1 + $0x1b0] sm:$0xff]
  %v1032 = vld [vmem:[%s1 + $0x1b8] sm:$0xff]
  %v1033 = vld [vmem:[%s1 + $0x1c0] sm:$0xff]
  %v1034 = vld [vmem:[%s1 + $0x1c8] sm:$0xff]
  %v1035 = vld [vmem:[%s1 + $0x1d0] sm:$0xff]
  %v1036 = vld [vmem:[%s1 + $0x1d8] sm:$0xff]
  %v1037 = vld [vmem:[%s1 + $0x1e0] sm:$0xff]
  %v1038 = vld [vmem:[%s1 + $0x1e8] sm:$0xff]
  %v1039 = vld [vmem:[%s1 + $0x1f0] sm:$0xff]
  %v1040 = vld [vmem:[%s1 + $0x1f8] sm:$0xff]
  %v1041 = vld [vmem:[%s1 + $0x200] sm:$0xff]
  %v1042 = vld [vmem:[%s1 + $0x208] sm:$0xff]
  %v1043 = vld [vmem:[%s1 + $0x210] sm:$0xff]
  %v1044 = vld [vmem:[%s1 + $0x218] sm:$0xff]
  %v1045 = vld [vmem:[%s1 + $0x220] sm:$0xff]
  %v1046 = vld [vmem:[%s1 + $0x228] sm:$0xff]
  %v1047 = vld [vmem:[%s1 + $0x230] sm:$0xff]
  %v1048 = vld [vmem:[%s1 + $0x238] sm:$0xff]
  %v1049 = vld [vmem:[%s1 + $0x240] sm:$0xff]
  %v1050 = vld [vmem:[%s1 + $0x248] sm:$0xff]
  %v1051 = vld [vmem:[%s1 + $0x250] sm:$0xff]
  %v1052 = vld [vmem:[%s1 + $0x258] sm:$0xff]
  %v1053 = vld [vmem:[%s1 + $0x260] sm:$0xff]
  %v1054 = vld [vmem:[%s1 + $0x268] sm:$0xff]
  %v1055 = vld [vmem:[%s1 + $0x270] sm:$0xff]
  %v1056 = vld [vmem:[%s1 + $0x278] sm:$0xff]
  %v1057 = vld [vmem:[%s1 + $0x280] sm:$0xff]
  %v1058 = vld [vmem:[%s1 + $0x288] sm:$0xff]
  %v1059 = vld [vmem:[%s1 + $0x290] sm:$0xff]
  %v1060 = vld [vmem:[%s1 + $0x298] sm:$0xff]
  %v1061 = vld [vmem:[%s1 + $0x2a0] sm:$0xff]
  %v1062 = vld [vmem:[%s1 + $0x2a8] sm:$0xff]
  %v1063 = vld [vmem:[%s1 + $0x2b0] sm:$0xff]
  %v1064 = vld [vmem:[%s1 + $0x2b8] sm:$0xff]
  %v1065 = vld [vmem:[%s1 + $0x2c0] sm:$0xff]
  %v1066 = vld [vmem:[%s1 + $0x2c8] sm:$0xff]
  %v1067 = vld [vmem:[%s1 + $0x2d0] sm:$0xff]
  %v1068 = vld [vmem:[%s1 + $0x2d8] sm:$0xff]
  %v1069 = vld [vmem:[%s1 + $0x2e0] sm:$0xff]
  %v1070 = vld [vmem:[%s1 + $0x2e8] sm:$0xff]
  %v1071 = vld [vmem:[%s1 + $0x2f0] sm:$0xff]
  %v1072 = vld [vmem:[%s1 + $0x2f8] sm:$0xff]
  %v1073 = vld [vmem:[%s1 + $0x300] sm:$0xff]
  %v1074 = vld [vmem:[%s1 + $0x308] sm:$0xff]
  %v1075 = vld [vmem:[%s1 + $0x310] sm:$0xff]
  %v1076 = vld [vmem:[%s1 + $0x318] sm:$0xff]
  %v1077 = vld [vmem:[%s1 + $0x320] sm:$0xff]
  %v1078 = vld [vmem:[%s1 + $0x328] sm:$0xff]
  %v1079 = vld [vmem:[%s1 + $0x330] sm:$0xff]
  %v1080 = vld [vmem:[%s1 + $0x338] sm:$0xff]
  %v1081 = vld [vmem:[%s1 + $0x340] sm:$0xff]
  %v1082 = vld [vmem:[%s1 + $0x348] sm:$0xff]
  %v1083 = vld [vmem:[%s1 + $0x350] sm:$0xff]
  %v1084 = vld [vmem:[%s1 + $0x358] sm:$0xff]
  %v1085 = vld [vmem:[%s1 + $0x360] sm:$0xff]
  %v1086 = vld [vmem:[%s1 + $0x368] sm:$0xff]
  %v1087 = vld [vmem:[%s1 + $0x370] sm:$0xff]
  %v1088 = vld [vmem:[%s1 + $0x378] sm:$0xff]
  %v1089 = vld [vmem:[%s1 + $0x380] sm:$0xff]
  %v1090 = vld [vmem:[%s1 + $0x388] sm:$0xff]
  %v1091 = vld [vmem:[%s1 + $0x390] sm:$0xff]
  %v1092 = vld [vmem:[%s1 + $0x398] sm:$0xff]
  %v1093 = vld [vmem:[%s1 + $0x3a0] sm:$0xff]
  %v1094 = vld [vmem:[%s1 + $0x3a8] sm:$0xff]
  %v1095 = vld [vmem:[%s1 + $0x3b0] sm:$0xff]
  %v1096 = vld [vmem:[%s1 + $0x3b8] sm:$0xff]
  %v1097 = vld [vmem:[%s1 + $0x3c0] sm:$0xff]
  %v1098 = vld [vmem:[%s1 + $0x3c8] sm:$0xff]
  %v1099 = vld [vmem:[%s1 + $0x3d0] sm:$0xff]
  %v1100 = vld [vmem:[%s1 + $0x3d8] sm:$0xff]
  %v1101 = vld [vmem:[%s1 + $0x3e0] sm:$0xff]
  %v1102 = vld [vmem:[%s1 + $0x3e8] sm:$0xff]
  %v1103 = vld [vmem:[%s1 + $0x3f0] sm:$0xff]
  %v1104 = vld [vmem:[%s1 + $0x3f8] sm:$0xff]
  %v1105 = vld [vmem:[%s1 + $0x400] sm:$0xff]
  %v1106 = vld [vmem:[%s1 + $0x408] sm:$0xff]
  %v1107 = vld [vmem:[%s1 + $0x410] sm:$0xff]
  %v1108 = vld [vmem:[%s1 + $0x418] sm:$0xff]
  %v1109 = vld [vmem:[%s1 + $0x420] sm:$0xff]
  %v1110 = vld [vmem:[%s1 + $0x428] sm:$0xff]
  %v1111 = vld [vmem:[%s1 + $0x430] sm:$0xff]
  %v1112 = vld [vmem:[%s1 + $0x438] sm:$0xff]
  %v1113 = vld [vmem:[%s1 + $0x440] sm:$0xff]
  %v1114 = vld [vmem:[%s1 + $0x448] sm:$0xff]
  %v1115 = vld [vmem:[%s1 + $0x450] sm:$0xff]
  %v1116 = vld [vmem:[%s1 + $0x458] sm:$0xff]
  %v1117 = vld [vmem:[%s1 + $0x460] sm:$0xff]
  %v1118 = vld [vmem:[%s1 + $0x468] sm:$0xff]
  %v1119 = vld [vmem:[%s1 + $0x470] sm:$0xff]
  %v1120 = vld [vmem:[%s1 + $0x478] sm:$0xff]
  %v1121 = vld [vmem:[%s1 + $0x480] sm:$0xff]
  %v1122 = vld [vmem:[%s1 + $0x488] sm:$0xff]
  %v1123 = vld [vmem:[%s1 + $0x490] sm:$0xff]
  %v1124 = vld [vmem:[%s1 + $0x498] sm:$0xff]
  %v1125 = vld [vmem:[%s1 + $0x4a0] sm:$0xff]
  %v1126 = vld [vmem:[%s1 + $0x4a8] sm:$0xff]
  %v1127 = vld [vmem:[%s1 + $0x4b0] sm:$0xff]
  %v1128 = vld [vmem:[%s1 + $0x4b8] sm:$0xff]
  %v1129 = vld [vmem:[%s1 + $0x4c0] sm:$0xff]
  %v1130 = vld [vmem:[%s1 + $0x4c8] sm:$0xff]
  %v1131 = vld [vmem:[%s1 + $0x4d0] sm:$0xff]
  %v1132 = vld [vmem:[%s1 + $0x4d8] sm:$0xff]
  %v1133 = vld [vmem:[%s1 + $0x4e0] sm:$0xff]
  %v1134 = vld [vmem:[%s1 + $0x4e8] sm:$0xff]
  %v1135 = vld [vmem:[%s1 + $0x4f0] sm:$0xff]
  %v1136 = vld [vmem:[%s1 + $0x4f8] sm:$0xff]
  %v1137 = vld [vmem:[%s1 + $0x500] sm:$0xff]
  %v1138 = vld [vmem:[%s1 + $0x508] sm:$0xff]
  %v1139 = vld [vmem:[%s1 + $0x510] sm:$0xff]
  %v1140 = vld [vmem:[%s1 + $0x518] sm:$0xff]
  %v1141 = vld [vmem:[%s1 + $0x520] sm:$0xff]
  %v1142 = vld [vmem:[%s1 + $0x528] sm:$0xff]
  %v1143 = vld [vmem:[%s1 + $0x530] sm:$0xff]
  %v1144 = vld [vmem:[%s1 + $0x538] sm:$0xff]
  %v1145 = vld [vmem:[%s1 + $0x540] sm:$0xff]
  %v1146 = vld [vmem:[%s1 + $0x548] sm:$0xff]
  %v1147 = vld [vmem:[%s1 + $0x550] sm:$0xff]
  %v1148 = vld [vmem:[%s1 + $0x558] sm:$0xff]
  %v1149 = vld [vmem:[%s1 + $0x560] sm:$0xff]
  %v1150 = vld [vmem:[%s1 + $0x568] sm:$0xff]
  %v1151 = vld [vmem:[%s1 + $0x570] sm:$0xff]
  %v1152 = vld [vmem:[%s1 + $0x578] sm:$0xff]
  %v1153 = vld [vmem:[%s1 + $0x580] sm:$0xff]
  %v1154 = vld [vmem:[%s1 + $0x588] sm:$0xff]
  %v1155 = vld [vmem:[%s1 + $0x590] sm:$0xff]
  %v1156 = vld [vmem:[%s1 + $0x598] sm:$0xff]
  %v1157 = vld [vmem:[%s1 + $0x5a0] sm:$0xff]
  %v1158 = vld [vmem:[%s1 + $0x5a8] sm:$0xff]
  %v1159 = vld [vmem:[%s1 + $0x5b0] sm:$0xff]
  %v1160 = vld [vmem:[%s1 + $0x5b8] sm:$0xff]
  %v1161 = vld [vmem:[%s1 + $0x5c0] sm:$0xff]
  %v1162 = vld [vmem:[%s1 + $0x5c8] sm:$0xff]
  %v1163 = vld [vmem:[%s1 + $0x5d0] sm:$0xff]
  %v1164 = vld [vmem:[%s1 + $0x5d8] sm:$0xff]
  %v1165 = vld [vmem:[%s1 + $0x5e0] sm:$0xff]
  %v1166 = vld [vmem:[%s1 + $0x5e8] sm:$0xff]
  %v1167 = vld [vmem:[%s1 + $0x5f0] sm:$0xff]
  %v1168 = vld [vmem:[%s1 + $0x5f8] sm:$0xff]
  %1170 = vset.pattern.permute.xlu0 0
  %1171 = vperm.xlu0 %1170, %v785
  %v1172 = vpop.permute.xlu0 %1171
  %1175 = vset.pattern.permute.xlu0 0
  %1176 = vperm.xlu0 %1175, %v786
  %v1177 = vpop.permute.xlu0 %1176
  %1180 = vset.pattern.permute.xlu0 0
  %1181 = vperm.xlu0 %1180, %v787
  %v1182 = vpop.permute.xlu0 %1181
  %1185 = vset.pattern.permute.xlu0 0
  %1186 = vperm.xlu0 %1185, %v788
  %v1187 = vpop.permute.xlu0 %1186
  %1190 = vset.pattern.permute.xlu0 0
  %1191 = vperm.xlu0 %1190, %v789
  %v1192 = vpop.permute.xlu0 %1191
  %1195 = vset.pattern.permute.xlu0 0
  %1196 = vperm.xlu0 %1195, %v790
  %v1197 = vpop.permute.xlu0 %1196
  %1200 = vset.pattern.permute.xlu0 0
  %1201 = vperm.xlu0 %1200, %v791
  %v1202 = vpop.permute.xlu0 %1201
  %1205 = vset.pattern.permute.xlu0 0
  %1206 = vperm.xlu0 %1205, %v792
  %v1207 = vpop.permute.xlu0 %1206
  %1210 = vset.pattern.permute.xlu0 0
  %1211 = vperm.xlu0 %1210, %v793
  %v1212 = vpop.permute.xlu0 %1211
  %1215 = vset.pattern.permute.xlu0 0
  %1216 = vperm.xlu0 %1215, %v794
  %v1217 = vpop.permute.xlu0 %1216
  %1220 = vset.pattern.permute.xlu0 0
  %1221 = vperm.xlu0 %1220, %v795
  %v1222 = vpop.permute.xlu0 %1221
  %1225 = vset.pattern.permute.xlu0 0
  %1226 = vperm.xlu0 %1225, %v796
  %v1227 = vpop.permute.xlu0 %1226
  %1230 = vset.pattern.permute.xlu0 0
  %1231 = vperm.xlu0 %1230, %v797
  %v1232 = vpop.permute.xlu0 %1231
  %1235 = vset.pattern.permute.xlu0 0
  %1236 = vperm.xlu0 %1235, %v798
  %v1237 = vpop.permute.xlu0 %1236
  %1240 = vset.pattern.permute.xlu0 0
  %1241 = vperm.xlu0 %1240, %v799
  %v1242 = vpop.permute.xlu0 %1241
  %1245 = vset.pattern.permute.xlu0 0
  %1246 = vperm.xlu0 %1245, %v800
  %v1247 = vpop.permute.xlu0 %1246
  %1250 = vset.pattern.permute.xlu0 0
  %1251 = vperm.xlu0 %1250, %v801
  %v1252 = vpop.permute.xlu0 %1251
  %1255 = vset.pattern.permute.xlu0 0
  %1256 = vperm.xlu0 %1255, %v802
  %v1257 = vpop.permute.xlu0 %1256
  %1260 = vset.pattern.permute.xlu0 0
  %1261 = vperm.xlu0 %1260, %v803
  %v1262 = vpop.permute.xlu0 %1261
  %1265 = vset.pattern.permute.xlu0 0
  %1266 = vperm.xlu0 %1265, %v804
  %v1267 = vpop.permute.xlu0 %1266
  %1270 = vset.pattern.permute.xlu0 0
  %1271 = vperm.xlu0 %1270, %v805
  %v1272 = vpop.permute.xlu0 %1271
  %1275 = vset.pattern.permute.xlu0 0
  %1276 = vperm.xlu0 %1275, %v806
  %v1277 = vpop.permute.xlu0 %1276
  %1280 = vset.pattern.permute.xlu0 0
  %1281 = vperm.xlu0 %1280, %v807
  %v1282 = vpop.permute.xlu0 %1281
  %1285 = vset.pattern.permute.xlu0 0
  %1286 = vperm.xlu0 %1285, %v808
  %v1287 = vpop.permute.xlu0 %1286
  %1290 = vset.pattern.permute.xlu0 0
  %1291 = vperm.xlu0 %1290, %v809
  %v1292 = vpop.permute.xlu0 %1291
  %1295 = vset.pattern.permute.xlu0 0
  %1296 = vperm.xlu0 %1295, %v810
  %v1297 = vpop.permute.xlu0 %1296
  %1300 = vset.pattern.permute.xlu0 0
  %1301 = vperm.xlu0 %1300, %v811
  %v1302 = vpop.permute.xlu0 %1301
  %1305 = vset.pattern.permute.xlu0 0
  %1306 = vperm.xlu0 %1305, %v812
  %v1307 = vpop.permute.xlu0 %1306
  %1310 = vset.pattern.permute.xlu0 0
  %1311 = vperm.xlu0 %1310, %v813
  %v1312 = vpop.permute.xlu0 %1311
  %1315 = vset.pattern.permute.xlu0 0
  %1316 = vperm.xlu0 %1315, %v814
  %v1317 = vpop.permute.xlu0 %1316
  %1320 = vset.pattern.permute.xlu0 0
  %1321 = vperm.xlu0 %1320, %v815
  %v1322 = vpop.permute.xlu0 %1321
  %1325 = vset.pattern.permute.xlu0 0
  %1326 = vperm.xlu0 %1325, %v816
  %v1327 = vpop.permute.xlu0 %1326
  %1330 = vset.pattern.permute.xlu0 0
  %1331 = vperm.xlu0 %1330, %v817
  %v1332 = vpop.permute.xlu0 %1331
  %1335 = vset.pattern.permute.xlu0 0
  %1336 = vperm.xlu0 %1335, %v818
  %v1337 = vpop.permute.xlu0 %1336
  %1340 = vset.pattern.permute.xlu0 0
  %1341 = vperm.xlu0 %1340, %v819
  %v1342 = vpop.permute.xlu0 %1341
  %1345 = vset.pattern.permute.xlu0 0
  %1346 = vperm.xlu0 %1345, %v820
  %v1347 = vpop.permute.xlu0 %1346
  %1350 = vset.pattern.permute.xlu0 0
  %1351 = vperm.xlu0 %1350, %v821
  %v1352 = vpop.permute.xlu0 %1351
  %1355 = vset.pattern.permute.xlu0 0
  %1356 = vperm.xlu0 %1355, %v822
  %v1357 = vpop.permute.xlu0 %1356
  %1360 = vset.pattern.permute.xlu0 0
  %1361 = vperm.xlu0 %1360, %v823
  %v1362 = vpop.permute.xlu0 %1361
  %1365 = vset.pattern.permute.xlu0 0
  %1366 = vperm.xlu0 %1365, %v824
  %v1367 = vpop.permute.xlu0 %1366
  %1370 = vset.pattern.permute.xlu0 0
  %1371 = vperm.xlu0 %1370, %v825
  %v1372 = vpop.permute.xlu0 %1371
  %1375 = vset.pattern.permute.xlu0 0
  %1376 = vperm.xlu0 %1375, %v826
  %v1377 = vpop.permute.xlu0 %1376
  %1380 = vset.pattern.permute.xlu0 0
  %1381 = vperm.xlu0 %1380, %v827
  %v1382 = vpop.permute.xlu0 %1381
  %1385 = vset.pattern.permute.xlu0 0
  %1386 = vperm.xlu0 %1385, %v828
  %v1387 = vpop.permute.xlu0 %1386
  %1390 = vset.pattern.permute.xlu0 0
  %1391 = vperm.xlu0 %1390, %v829
  %v1392 = vpop.permute.xlu0 %1391
  %1395 = vset.pattern.permute.xlu0 0
  %1396 = vperm.xlu0 %1395, %v830
  %v1397 = vpop.permute.xlu0 %1396
  %1400 = vset.pattern.permute.xlu0 0
  %1401 = vperm.xlu0 %1400, %v831
  %v1402 = vpop.permute.xlu0 %1401
  %1405 = vset.pattern.permute.xlu0 0
  %1406 = vperm.xlu0 %1405, %v832
  %v1407 = vpop.permute.xlu0 %1406
  %1410 = vset.pattern.permute.xlu0 0
  %1411 = vperm.xlu0 %1410, %v833
  %v1412 = vpop.permute.xlu0 %1411
  %1415 = vset.pattern.permute.xlu0 0
  %1416 = vperm.xlu0 %1415, %v834
  %v1417 = vpop.permute.xlu0 %1416
  %1420 = vset.pattern.permute.xlu0 0
  %1421 = vperm.xlu0 %1420, %v835
  %v1422 = vpop.permute.xlu0 %1421
  %1425 = vset.pattern.permute.xlu0 0
  %1426 = vperm.xlu0 %1425, %v836
  %v1427 = vpop.permute.xlu0 %1426
  %1430 = vset.pattern.permute.xlu0 0
  %1431 = vperm.xlu0 %1430, %v837
  %v1432 = vpop.permute.xlu0 %1431
  %1435 = vset.pattern.permute.xlu0 0
  %1436 = vperm.xlu0 %1435, %v838
  %v1437 = vpop.permute.xlu0 %1436
  %1440 = vset.pattern.permute.xlu0 0
  %1441 = vperm.xlu0 %1440, %v839
  %v1442 = vpop.permute.xlu0 %1441
  %1445 = vset.pattern.permute.xlu0 0
  %1446 = vperm.xlu0 %1445, %v840
  %v1447 = vpop.permute.xlu0 %1446
  %1450 = vset.pattern.permute.xlu0 0
  %1451 = vperm.xlu0 %1450, %v841
  %v1452 = vpop.permute.xlu0 %1451
  %1455 = vset.pattern.permute.xlu0 0
  %1456 = vperm.xlu0 %1455, %v842
  %v1457 = vpop.permute.xlu0 %1456
  %1460 = vset.pattern.permute.xlu0 0
  %1461 = vperm.xlu0 %1460, %v843
  %v1462 = vpop.permute.xlu0 %1461
  %1465 = vset.pattern.permute.xlu0 0
  %1466 = vperm.xlu0 %1465, %v844
  %v1467 = vpop.permute.xlu0 %1466
  %1470 = vset.pattern.permute.xlu0 0
  %1471 = vperm.xlu0 %1470, %v845
  %v1472 = vpop.permute.xlu0 %1471
  %1475 = vset.pattern.permute.xlu0 0
  %1476 = vperm.xlu0 %1475, %v846
  %v1477 = vpop.permute.xlu0 %1476
  %1480 = vset.pattern.permute.xlu0 0
  %1481 = vperm.xlu0 %1480, %v847
  %v1482 = vpop.permute.xlu0 %1481
  %1485 = vset.pattern.permute.xlu0 0
  %1486 = vperm.xlu0 %1485, %v848
  %v1487 = vpop.permute.xlu0 %1486
  %1490 = vset.pattern.permute.xlu0 0
  %1491 = vperm.xlu0 %1490, %v849
  %v1492 = vpop.permute.xlu0 %1491
  %1495 = vset.pattern.permute.xlu0 0
  %1496 = vperm.xlu0 %1495, %v850
  %v1497 = vpop.permute.xlu0 %1496
  %1500 = vset.pattern.permute.xlu0 0
  %1501 = vperm.xlu0 %1500, %v851
  %v1502 = vpop.permute.xlu0 %1501
  %1505 = vset.pattern.permute.xlu0 0
  %1506 = vperm.xlu0 %1505, %v852
  %v1507 = vpop.permute.xlu0 %1506
  %1510 = vset.pattern.permute.xlu0 0
  %1511 = vperm.xlu0 %1510, %v853
  %v1512 = vpop.permute.xlu0 %1511
  %1515 = vset.pattern.permute.xlu0 0
  %1516 = vperm.xlu0 %1515, %v854
  %v1517 = vpop.permute.xlu0 %1516
  %1520 = vset.pattern.permute.xlu0 0
  %1521 = vperm.xlu0 %1520, %v855
  %v1522 = vpop.permute.xlu0 %1521
  %1525 = vset.pattern.permute.xlu0 0
  %1526 = vperm.xlu0 %1525, %v856
  %v1527 = vpop.permute.xlu0 %1526
  %1530 = vset.pattern.permute.xlu0 0
  %1531 = vperm.xlu0 %1530, %v857
  %v1532 = vpop.permute.xlu0 %1531
  %1535 = vset.pattern.permute.xlu0 0
  %1536 = vperm.xlu0 %1535, %v858
  %v1537 = vpop.permute.xlu0 %1536
  %1540 = vset.pattern.permute.xlu0 0
  %1541 = vperm.xlu0 %1540, %v859
  %v1542 = vpop.permute.xlu0 %1541
  %1545 = vset.pattern.permute.xlu0 0
  %1546 = vperm.xlu0 %1545, %v860
  %v1547 = vpop.permute.xlu0 %1546
  %1550 = vset.pattern.permute.xlu0 0
  %1551 = vperm.xlu0 %1550, %v861
  %v1552 = vpop.permute.xlu0 %1551
  %1555 = vset.pattern.permute.xlu0 0
  %1556 = vperm.xlu0 %1555, %v862
  %v1557 = vpop.permute.xlu0 %1556
  %1560 = vset.pattern.permute.xlu0 0
  %1561 = vperm.xlu0 %1560, %v863
  %v1562 = vpop.permute.xlu0 %1561
  %1565 = vset.pattern.permute.xlu0 0
  %1566 = vperm.xlu0 %1565, %v864
  %v1567 = vpop.permute.xlu0 %1566
  %1570 = vset.pattern.permute.xlu0 0
  %1571 = vperm.xlu0 %1570, %v865
  %v1572 = vpop.permute.xlu0 %1571
  %1575 = vset.pattern.permute.xlu0 0
  %1576 = vperm.xlu0 %1575, %v866
  %v1577 = vpop.permute.xlu0 %1576
  %1580 = vset.pattern.permute.xlu0 0
  %1581 = vperm.xlu0 %1580, %v867
  %v1582 = vpop.permute.xlu0 %1581
  %1585 = vset.pattern.permute.xlu0 0
  %1586 = vperm.xlu0 %1585, %v868
  %v1587 = vpop.permute.xlu0 %1586
  %1590 = vset.pattern.permute.xlu0 0
  %1591 = vperm.xlu0 %1590, %v869
  %v1592 = vpop.permute.xlu0 %1591
  %1595 = vset.pattern.permute.xlu0 0
  %1596 = vperm.xlu0 %1595, %v870
  %v1597 = vpop.permute.xlu0 %1596
  %1600 = vset.pattern.permute.xlu0 0
  %1601 = vperm.xlu0 %1600, %v871
  %v1602 = vpop.permute.xlu0 %1601
  %1605 = vset.pattern.permute.xlu0 0
  %1606 = vperm.xlu0 %1605, %v872
  %v1607 = vpop.permute.xlu0 %1606
  %1610 = vset.pattern.permute.xlu0 0
  %1611 = vperm.xlu0 %1610, %v873
  %v1612 = vpop.permute.xlu0 %1611
  %1615 = vset.pattern.permute.xlu0 0
  %1616 = vperm.xlu0 %1615, %v874
  %v1617 = vpop.permute.xlu0 %1616
  %1620 = vset.pattern.permute.xlu0 0
  %1621 = vperm.xlu0 %1620, %v875
  %v1622 = vpop.permute.xlu0 %1621
  %1625 = vset.pattern.permute.xlu0 0
  %1626 = vperm.xlu0 %1625, %v876
  %v1627 = vpop.permute.xlu0 %1626
  %1630 = vset.pattern.permute.xlu0 0
  %1631 = vperm.xlu0 %1630, %v877
  %v1632 = vpop.permute.xlu0 %1631
  %1635 = vset.pattern.permute.xlu0 0
  %1636 = vperm.xlu0 %1635, %v878
  %v1637 = vpop.permute.xlu0 %1636
  %1640 = vset.pattern.permute.xlu0 0
  %1641 = vperm.xlu0 %1640, %v879
  %v1642 = vpop.permute.xlu0 %1641
  %1645 = vset.pattern.permute.xlu0 0
  %1646 = vperm.xlu0 %1645, %v880
  %v1647 = vpop.permute.xlu0 %1646
  %1650 = vset.pattern.permute.xlu0 0
  %1651 = vperm.xlu0 %1650, %v881
  %v1652 = vpop.permute.xlu0 %1651
  %1655 = vset.pattern.permute.xlu0 0
  %1656 = vperm.xlu0 %1655, %v882
  %v1657 = vpop.permute.xlu0 %1656
  %1660 = vset.pattern.permute.xlu0 0
  %1661 = vperm.xlu0 %1660, %v883
  %v1662 = vpop.permute.xlu0 %1661
  %1665 = vset.pattern.permute.xlu0 0
  %1666 = vperm.xlu0 %1665, %v884
  %v1667 = vpop.permute.xlu0 %1666
  %1670 = vset.pattern.permute.xlu0 0
  %1671 = vperm.xlu0 %1670, %v885
  %v1672 = vpop.permute.xlu0 %1671
  %1675 = vset.pattern.permute.xlu0 0
  %1676 = vperm.xlu0 %1675, %v886
  %v1677 = vpop.permute.xlu0 %1676
  %1680 = vset.pattern.permute.xlu0 0
  %1681 = vperm.xlu0 %1680, %v887
  %v1682 = vpop.permute.xlu0 %1681
  %1685 = vset.pattern.permute.xlu0 0
  %1686 = vperm.xlu0 %1685, %v888
  %v1687 = vpop.permute.xlu0 %1686
  %1690 = vset.pattern.permute.xlu0 0
  %1691 = vperm.xlu0 %1690, %v889
  %v1692 = vpop.permute.xlu0 %1691
  %1695 = vset.pattern.permute.xlu0 0
  %1696 = vperm.xlu0 %1695, %v890
  %v1697 = vpop.permute.xlu0 %1696
  %1700 = vset.pattern.permute.xlu0 0
  %1701 = vperm.xlu0 %1700, %v891
  %v1702 = vpop.permute.xlu0 %1701
  %1705 = vset.pattern.permute.xlu0 0
  %1706 = vperm.xlu0 %1705, %v892
  %v1707 = vpop.permute.xlu0 %1706
  %1710 = vset.pattern.permute.xlu0 0
  %1711 = vperm.xlu0 %1710, %v893
  %v1712 = vpop.permute.xlu0 %1711
  %1715 = vset.pattern.permute.xlu0 0
  %1716 = vperm.xlu0 %1715, %v894
  %v1717 = vpop.permute.xlu0 %1716
  %1720 = vset.pattern.permute.xlu0 0
  %1721 = vperm.xlu0 %1720, %v895
  %v1722 = vpop.permute.xlu0 %1721
  %1725 = vset.pattern.permute.xlu0 0
  %1726 = vperm.xlu0 %1725, %v896
  %v1727 = vpop.permute.xlu0 %1726
  %1730 = vset.pattern.permute.xlu0 0
  %1731 = vperm.xlu0 %1730, %v897
  %v1732 = vpop.permute.xlu0 %1731
  %1735 = vset.pattern.permute.xlu0 0
  %1736 = vperm.xlu0 %1735, %v898
  %v1737 = vpop.permute.xlu0 %1736
  %1740 = vset.pattern.permute.xlu0 0
  %1741 = vperm.xlu0 %1740, %v899
  %v1742 = vpop.permute.xlu0 %1741
  %1745 = vset.pattern.permute.xlu0 0
  %1746 = vperm.xlu0 %1745, %v900
  %v1747 = vpop.permute.xlu0 %1746
  %1750 = vset.pattern.permute.xlu0 0
  %1751 = vperm.xlu0 %1750, %v901
  %v1752 = vpop.permute.xlu0 %1751
  %1755 = vset.pattern.permute.xlu0 0
  %1756 = vperm.xlu0 %1755, %v902
  %v1757 = vpop.permute.xlu0 %1756
  %1760 = vset.pattern.permute.xlu0 0
  %1761 = vperm.xlu0 %1760, %v903
  %v1762 = vpop.permute.xlu0 %1761
  %1765 = vset.pattern.permute.xlu0 0
  %1766 = vperm.xlu0 %1765, %v904
  %v1767 = vpop.permute.xlu0 %1766
  %1770 = vset.pattern.permute.xlu0 0
  %1771 = vperm.xlu0 %1770, %v905
  %v1772 = vpop.permute.xlu0 %1771
  %1775 = vset.pattern.permute.xlu0 0
  %1776 = vperm.xlu0 %1775, %v906
  %v1777 = vpop.permute.xlu0 %1776
  %1780 = vset.pattern.permute.xlu0 0
  %1781 = vperm.xlu0 %1780, %v907
  %v1782 = vpop.permute.xlu0 %1781
  %1785 = vset.pattern.permute.xlu0 0
  %1786 = vperm.xlu0 %1785, %v908
  %v1787 = vpop.permute.xlu0 %1786
  %1790 = vset.pattern.permute.xlu0 0
  %1791 = vperm.xlu0 %1790, %v909
  %v1792 = vpop.permute.xlu0 %1791
  %1795 = vset.pattern.permute.xlu0 0
  %1796 = vperm.xlu0 %1795, %v910
  %v1797 = vpop.permute.xlu0 %1796
  %1800 = vset.pattern.permute.xlu0 0
  %1801 = vperm.xlu0 %1800, %v911
  %v1802 = vpop.permute.xlu0 %1801
  %1805 = vset.pattern.permute.xlu0 0
  %1806 = vperm.xlu0 %1805, %v912
  %v1807 = vpop.permute.xlu0 %1806
  %1810 = vset.pattern.permute.xlu0 0
  %1811 = vperm.xlu0 %1810, %v913
  %v1812 = vpop.permute.xlu0 %1811
  %1815 = vset.pattern.permute.xlu0 0
  %1816 = vperm.xlu0 %1815, %v914
  %v1817 = vpop.permute.xlu0 %1816
  %1820 = vset.pattern.permute.xlu0 0
  %1821 = vperm.xlu0 %1820, %v915
  %v1822 = vpop.permute.xlu0 %1821
  %1825 = vset.pattern.permute.xlu0 0
  %1826 = vperm.xlu0 %1825, %v916
  %v1827 = vpop.permute.xlu0 %1826
  %1830 = vset.pattern.permute.xlu0 0
  %1831 = vperm.xlu0 %1830, %v917
  %v1832 = vpop.permute.xlu0 %1831
  %1835 = vset.pattern.permute.xlu0 0
  %1836 = vperm.xlu0 %1835, %v918
  %v1837 = vpop.permute.xlu0 %1836
  %1840 = vset.pattern.permute.xlu0 0
  %1841 = vperm.xlu0 %1840, %v919
  %v1842 = vpop.permute.xlu0 %1841
  %1845 = vset.pattern.permute.xlu0 0
  %1846 = vperm.xlu0 %1845, %v920
  %v1847 = vpop.permute.xlu0 %1846
  %1850 = vset.pattern.permute.xlu0 0
  %1851 = vperm.xlu0 %1850, %v921
  %v1852 = vpop.permute.xlu0 %1851
  %1855 = vset.pattern.permute.xlu0 0
  %1856 = vperm.xlu0 %1855, %v922
  %v1857 = vpop.permute.xlu0 %1856
  %1860 = vset.pattern.permute.xlu0 0
  %1861 = vperm.xlu0 %1860, %v923
  %v1862 = vpop.permute.xlu0 %1861
  %1865 = vset.pattern.permute.xlu0 0
  %1866 = vperm.xlu0 %1865, %v924
  %v1867 = vpop.permute.xlu0 %1866
  %1870 = vset.pattern.permute.xlu0 0
  %1871 = vperm.xlu0 %1870, %v925
  %v1872 = vpop.permute.xlu0 %1871
  %1875 = vset.pattern.permute.xlu0 0
  %1876 = vperm.xlu0 %1875, %v926
  %v1877 = vpop.permute.xlu0 %1876
  %1880 = vset.pattern.permute.xlu0 0
  %1881 = vperm.xlu0 %1880, %v927
  %v1882 = vpop.permute.xlu0 %1881
  %1885 = vset.pattern.permute.xlu0 0
  %1886 = vperm.xlu0 %1885, %v928
  %v1887 = vpop.permute.xlu0 %1886
  %1890 = vset.pattern.permute.xlu0 0
  %1891 = vperm.xlu0 %1890, %v929
  %v1892 = vpop.permute.xlu0 %1891
  %1895 = vset.pattern.permute.xlu0 0
  %1896 = vperm.xlu0 %1895, %v930
  %v1897 = vpop.permute.xlu0 %1896
  %1900 = vset.pattern.permute.xlu0 0
  %1901 = vperm.xlu0 %1900, %v931
  %v1902 = vpop.permute.xlu0 %1901
  %1905 = vset.pattern.permute.xlu0 0
  %1906 = vperm.xlu0 %1905, %v932
  %v1907 = vpop.permute.xlu0 %1906
  %1910 = vset.pattern.permute.xlu0 0
  %1911 = vperm.xlu0 %1910, %v933
  %v1912 = vpop.permute.xlu0 %1911
  %1915 = vset.pattern.permute.xlu0 0
  %1916 = vperm.xlu0 %1915, %v934
  %v1917 = vpop.permute.xlu0 %1916
  %1920 = vset.pattern.permute.xlu0 0
  %1921 = vperm.xlu0 %1920, %v935
  %v1922 = vpop.permute.xlu0 %1921
  %1925 = vset.pattern.permute.xlu0 0
  %1926 = vperm.xlu0 %1925, %v936
  %v1927 = vpop.permute.xlu0 %1926
  %1930 = vset.pattern.permute.xlu0 0
  %1931 = vperm.xlu0 %1930, %v937
  %v1932 = vpop.permute.xlu0 %1931
  %1935 = vset.pattern.permute.xlu0 0
  %1936 = vperm.xlu0 %1935, %v938
  %v1937 = vpop.permute.xlu0 %1936
  %1940 = vset.pattern.permute.xlu0 0
  %1941 = vperm.xlu0 %1940, %v939
  %v1942 = vpop.permute.xlu0 %1941
  %1945 = vset.pattern.permute.xlu0 0
  %1946 = vperm.xlu0 %1945, %v940
  %v1947 = vpop.permute.xlu0 %1946
  %1950 = vset.pattern.permute.xlu0 0
  %1951 = vperm.xlu0 %1950, %v941
  %v1952 = vpop.permute.xlu0 %1951
  %1955 = vset.pattern.permute.xlu0 0
  %1956 = vperm.xlu0 %1955, %v942
  %v1957 = vpop.permute.xlu0 %1956
  %1960 = vset.pattern.permute.xlu0 0
  %1961 = vperm.xlu0 %1960, %v943
  %v1962 = vpop.permute.xlu0 %1961
  %1965 = vset.pattern.permute.xlu0 0
  %1966 = vperm.xlu0 %1965, %v944
  %v1967 = vpop.permute.xlu0 %1966
  %1970 = vset.pattern.permute.xlu0 0
  %1971 = vperm.xlu0 %1970, %v945
  %v1972 = vpop.permute.xlu0 %1971
  %1975 = vset.pattern.permute.xlu0 0
  %1976 = vperm.xlu0 %1975, %v946
  %v1977 = vpop.permute.xlu0 %1976
  %1980 = vset.pattern.permute.xlu0 0
  %1981 = vperm.xlu0 %1980, %v947
  %v1982 = vpop.permute.xlu0 %1981
  %1985 = vset.pattern.permute.xlu0 0
  %1986 = vperm.xlu0 %1985, %v948
  %v1987 = vpop.permute.xlu0 %1986
  %1990 = vset.pattern.permute.xlu0 0
  %1991 = vperm.xlu0 %1990, %v949
  %v1992 = vpop.permute.xlu0 %1991
  %1995 = vset.pattern.permute.xlu0 0
  %1996 = vperm.xlu0 %1995, %v950
  %v1997 = vpop.permute.xlu0 %1996
  %2000 = vset.pattern.permute.xlu0 0
  %2001 = vperm.xlu0 %2000, %v951
  %v2002 = vpop.permute.xlu0 %2001
  %2005 = vset.pattern.permute.xlu0 0
  %2006 = vperm.xlu0 %2005, %v952
  %v2007 = vpop.permute.xlu0 %2006
  %2010 = vset.pattern.permute.xlu0 0
  %2011 = vperm.xlu0 %2010, %v953
  %v2012 = vpop.permute.xlu0 %2011
  %2015 = vset.pattern.permute.xlu0 0
  %2016 = vperm.xlu0 %2015, %v954
  %v2017 = vpop.permute.xlu0 %2016
  %2020 = vset.pattern.permute.xlu0 0
  %2021 = vperm.xlu0 %2020, %v955
  %v2022 = vpop.permute.xlu0 %2021
  %2025 = vset.pattern.permute.xlu0 0
  %2026 = vperm.xlu0 %2025, %v956
  %v2027 = vpop.permute.xlu0 %2026
  %2030 = vset.pattern.permute.xlu0 0
  %2031 = vperm.xlu0 %2030, %v957
  %v2032 = vpop.permute.xlu0 %2031
  %2035 = vset.pattern.permute.xlu0 0
  %2036 = vperm.xlu0 %2035, %v958
  %v2037 = vpop.permute.xlu0 %2036
  %2040 = vset.pattern.permute.xlu0 0
  %2041 = vperm.xlu0 %2040, %v959
  %v2042 = vpop.permute.xlu0 %2041
  %2045 = vset.pattern.permute.xlu0 0
  %2046 = vperm.xlu0 %2045, %v960
  %v2047 = vpop.permute.xlu0 %2046
  %2050 = vset.pattern.permute.xlu0 0
  %2051 = vperm.xlu0 %2050, %v961
  %v2052 = vpop.permute.xlu0 %2051
  %2055 = vset.pattern.permute.xlu0 0
  %2056 = vperm.xlu0 %2055, %v962
  %v2057 = vpop.permute.xlu0 %2056
  %2060 = vset.pattern.permute.xlu0 0
  %2061 = vperm.xlu0 %2060, %v963
  %v2062 = vpop.permute.xlu0 %2061
  %2065 = vset.pattern.permute.xlu0 0
  %2066 = vperm.xlu0 %2065, %v964
  %v2067 = vpop.permute.xlu0 %2066
  %2070 = vset.pattern.permute.xlu0 0
  %2071 = vperm.xlu0 %2070, %v965
  %v2072 = vpop.permute.xlu0 %2071
  %2075 = vset.pattern.permute.xlu0 0
  %2076 = vperm.xlu0 %2075, %v966
  %v2077 = vpop.permute.xlu0 %2076
  %2080 = vset.pattern.permute.xlu0 0
  %2081 = vperm.xlu0 %2080, %v967
  %v2082 = vpop.permute.xlu0 %2081
  %2085 = vset.pattern.permute.xlu0 0
  %2086 = vperm.xlu0 %2085, %v968
  %v2087 = vpop.permute.xlu0 %2086
  %2090 = vset.pattern.permute.xlu0 0
  %2091 = vperm.xlu0 %2090, %v969
  %v2092 = vpop.permute.xlu0 %2091
  %2095 = vset.pattern.permute.xlu0 0
  %2096 = vperm.xlu0 %2095, %v970
  %v2097 = vpop.permute.xlu0 %2096
  %2100 = vset.pattern.permute.xlu0 0
  %2101 = vperm.xlu0 %2100, %v971
  %v2102 = vpop.permute.xlu0 %2101
  %2105 = vset.pattern.permute.xlu0 0
  %2106 = vperm.xlu0 %2105, %v972
  %v2107 = vpop.permute.xlu0 %2106
  %2110 = vset.pattern.permute.xlu0 0
  %2111 = vperm.xlu0 %2110, %v973
  %v2112 = vpop.permute.xlu0 %2111
  %2115 = vset.pattern.permute.xlu0 0
  %2116 = vperm.xlu0 %2115, %v974
  %v2117 = vpop.permute.xlu0 %2116
  %2120 = vset.pattern.permute.xlu0 0
  %2121 = vperm.xlu0 %2120, %v975
  %v2122 = vpop.permute.xlu0 %2121
  %2125 = vset.pattern.permute.xlu0 0
  %2126 = vperm.xlu0 %2125, %v976
  %v2127 = vpop.permute.xlu0 %2126
  %v2129 = vmul.f32 %v1172, %v977
  %v2130 = vmul.f32 %v1177, %v978
  %v2131 = vmul.f32 %v1182, %v979
  %v2132 = vmul.f32 %v1187, %v980
  %v2133 = vmul.f32 %v1192, %v981
  %v2134 = vmul.f32 %v1197, %v982
  %v2135 = vmul.f32 %v1202, %v983
  %v2136 = vmul.f32 %v1207, %v984
  %v2137 = vmul.f32 %v1212, %v985
  %v2138 = vmul.f32 %v1217, %v986
  %v2139 = vmul.f32 %v1222, %v987
  %v2140 = vmul.f32 %v1227, %v988
  %v2141 = vmul.f32 %v1232, %v989
  %v2142 = vmul.f32 %v1237, %v990
  %v2143 = vmul.f32 %v1242, %v991
  %v2144 = vmul.f32 %v1247, %v992
  %v2145 = vmul.f32 %v1252, %v993
  %v2146 = vmul.f32 %v1257, %v994
  %v2147 = vmul.f32 %v1262, %v995
  %v2148 = vmul.f32 %v1267, %v996
  %v2149 = vmul.f32 %v1272, %v997
  %v2150 = vmul.f32 %v1277, %v998
  %v2151 = vmul.f32 %v1282, %v999
  %v2152 = vmul.f32 %v1287, %v1000
  %v2153 = vmul.f32 %v1292, %v1001
  %v2154 = vmul.f32 %v1297, %v1002
  %v2155 = vmul.f32 %v1302, %v1003
  %v2156 = vmul.f32 %v1307, %v1004
  %v2157 = vmul.f32 %v1312, %v1005
  %v2158 = vmul.f32 %v1317, %v1006
  %v2159 = vmul.f32 %v1322, %v1007
  %v2160 = vmul.f32 %v1327, %v1008
  %v2161 = vmul.f32 %v1332, %v1009
  %v2162 = vmul.f32 %v1337, %v1010
  %v2163 = vmul.f32 %v1342, %v1011
  %v2164 = vmul.f32 %v1347, %v1012
  %v2165 = vmul.f32 %v1352, %v1013
  %v2166 = vmul.f32 %v1357, %v1014
  %v2167 = vmul.f32 %v1362, %v1015
  %v2168 = vmul.f32 %v1367, %v1016
  %v2169 = vmul.f32 %v1372, %v1017
  %v2170 = vmul.f32 %v1377, %v1018
  %v2171 = vmul.f32 %v1382, %v1019
  %v2172 = vmul.f32 %v1387, %v1020
  %v2173 = vmul.f32 %v1392, %v1021
  %v2174 = vmul.f32 %v1397, %v1022
  %v2175 = vmul.f32 %v1402, %v1023
  %v2176 = vmul.f32 %v1407, %v1024
  %v2177 = vmul.f32 %v1412, %v1025
  %v2178 = vmul.f32 %v1417, %v1026
  %v2179 = vmul.f32 %v1422, %v1027
  %v2180 = vmul.f32 %v1427, %v1028
  %v2181 = vmul.f32 %v1432, %v1029
  %v2182 = vmul.f32 %v1437, %v1030
  %v2183 = vmul.f32 %v1442, %v1031
  %v2184 = vmul.f32 %v1447, %v1032
  %v2185 = vmul.f32 %v1452, %v1033
  %v2186 = vmul.f32 %v1457, %v1034
  %v2187 = vmul.f32 %v1462, %v1035
  %v2188 = vmul.f32 %v1467, %v1036
  %v2189 = vmul.f32 %v1472, %v1037
  %v2190 = vmul.f32 %v1477, %v1038
  %v2191 = vmul.f32 %v1482, %v1039
  %v2192 = vmul.f32 %v1487, %v1040
  %v2193 = vmul.f32 %v1492, %v1041
  %v2194 = vmul.f32 %v1497, %v1042
  %v2195 = vmul.f32 %v1502, %v1043
  %v2196 = vmul.f32 %v1507, %v1044
  %v2197 = vmul.f32 %v1512, %v1045
  %v2198 = vmul.f32 %v1517, %v1046
  %v2199 = vmul.f32 %v1522, %v1047
  %v2200 = vmul.f32 %v1527, %v1048
  %v2201 = vmul.f32 %v1532, %v1049
  %v2202 = vmul.f32 %v1537, %v1050
  %v2203 = vmul.f32 %v1542, %v1051
  %v2204 = vmul.f32 %v1547, %v1052
  %v2205 = vmul.f32 %v1552, %v1053
  %v2206 = vmul.f32 %v1557, %v1054
  %v2207 = vmul.f32 %v1562, %v1055
  %v2208 = vmul.f32 %v1567, %v1056
  %v2209 = vmul.f32 %v1572, %v1057
  %v2210 = vmul.f32 %v1577, %v1058
  %v2211 = vmul.f32 %v1582, %v1059
  %v2212 = vmul.f32 %v1587, %v1060
  %v2213 = vmul.f32 %v1592, %v1061
  %v2214 = vmul.f32 %v1597, %v1062
  %v2215 = vmul.f32 %v1602, %v1063
  %v2216 = vmul.f32 %v1607, %v1064
  %v2217 = vmul.f32 %v1612, %v1065
  %v2218 = vmul.f32 %v1617, %v1066
  %v2219 = vmul.f32 %v1622, %v1067
  %v2220 = vmul.f32 %v1627, %v1068
  %v2221 = vmul.f32 %v1632, %v1069
  %v2222 = vmul.f32 %v1637, %v1070
  %v2223 = vmul.f32 %v1642, %v1071
  %v2224 = vmul.f32 %v1647, %v1072
  %v2225 = vmul.f32 %v1652, %v1073
  %v2226 = vmul.f32 %v1657, %v1074
  %v2227 = vmul.f32 %v1662, %v1075
  %v2228 = vmul.f32 %v1667, %v1076
  %v2229 = vmul.f32 %v1672, %v1077
  %v2230 = vmul.f32 %v1677, %v1078
  %v2231 = vmul.f32 %v1682, %v1079
  %v2232 = vmul.f32 %v1687, %v1080
  %v2233 = vmul.f32 %v1692, %v1081
  %v2234 = vmul.f32 %v1697, %v1082
  %v2235 = vmul.f32 %v1702, %v1083
  %v2236 = vmul.f32 %v1707, %v1084
  %v2237 = vmul.f32 %v1712, %v1085
  %v2238 = vmul.f32 %v1717, %v1086
  %v2239 = vmul.f32 %v1722, %v1087
  %v2240 = vmul.f32 %v1727, %v1088
  %v2241 = vmul.f32 %v1732, %v1089
  %v2242 = vmul.f32 %v1737, %v1090
  %v2243 = vmul.f32 %v1742, %v1091
  %v2244 = vmul.f32 %v1747, %v1092
  %v2245 = vmul.f32 %v1752, %v1093
  %v2246 = vmul.f32 %v1757, %v1094
  %v2247 = vmul.f32 %v1762, %v1095
  %v2248 = vmul.f32 %v1767, %v1096
  %v2249 = vmul.f32 %v1772, %v1097
  %v2250 = vmul.f32 %v1777, %v1098
  %v2251 = vmul.f32 %v1782, %v1099
  %v2252 = vmul.f32 %v1787, %v1100
  %v2253 = vmul.f32 %v1792, %v1101
  %v2254 = vmul.f32 %v1797, %v1102
  %v2255 = vmul.f32 %v1802, %v1103
  %v2256 = vmul.f32 %v1807, %v1104
  %v2257 = vmul.f32 %v1812, %v1105
  %v2258 = vmul.f32 %v1817, %v1106
  %v2259 = vmul.f32 %v1822, %v1107
  %v2260 = vmul.f32 %v1827, %v1108
  %v2261 = vmul.f32 %v1832, %v1109
  %v2262 = vmul.f32 %v1837, %v1110
  %v2263 = vmul.f32 %v1842, %v1111
  %v2264 = vmul.f32 %v1847, %v1112
  %v2265 = vmul.f32 %v1852, %v1113
  %v2266 = vmul.f32 %v1857, %v1114
  %v2267 = vmul.f32 %v1862, %v1115
  %v2268 = vmul.f32 %v1867, %v1116
  %v2269 = vmul.f32 %v1872, %v1117
  %v2270 = vmul.f32 %v1877, %v1118
  %v2271 = vmul.f32 %v1882, %v1119
  %v2272 = vmul.f32 %v1887, %v1120
  %v2273 = vmul.f32 %v1892, %v1121
  %v2274 = vmul.f32 %v1897, %v1122
  %v2275 = vmul.f32 %v1902, %v1123
  %v2276 = vmul.f32 %v1907, %v1124
  %v2277 = vmul.f32 %v1912, %v1125
  %v2278 = vmul.f32 %v1917, %v1126
  %v2279 = vmul.f32 %v1922, %v1127
  %v2280 = vmul.f32 %v1927, %v1128
  %v2281 = vmul.f32 %v1932, %v1129
  %v2282 = vmul.f32 %v1937, %v1130
  %v2283 = vmul.f32 %v1942, %v1131
  %v2284 = vmul.f32 %v1947, %v1132
  %v2285 = vmul.f32 %v1952, %v1133
  %v2286 = vmul.f32 %v1957, %v1134
  %v2287 = vmul.f32 %v1962, %v1135
  %v2288 = vmul.f32 %v1967, %v1136
  %v2289 = vmul.f32 %v1972, %v1137
  %v2290 = vmul.f32 %v1977, %v1138
  %v2291 = vmul.f32 %v1982, %v1139
  %v2292 = vmul.f32 %v1987, %v1140
  %v2293 = vmul.f32 %v1992, %v1141
  %v2294 = vmul.f32 %v1997, %v1142
  %v2295 = vmul.f32 %v2002, %v1143
  %v2296 = vmul.f32 %v2007, %v1144
  %v2297 = vmul.f32 %v2012, %v1145
  %v2298 = vmul.f32 %v2017, %v1146
  %v2299 = vmul.f32 %v2022, %v1147
  %v2300 = vmul.f32 %v2027, %v1148
  %v2301 = vmul.f32 %v2032, %v1149
  %v2302 = vmul.f32 %v2037, %v1150
  %v2303 = vmul.f32 %v2042, %v1151
  %v2304 = vmul.f32 %v2047, %v1152
  %v2305 = vmul.f32 %v2052, %v1153
  %v2306 = vmul.f32 %v2057, %v1154
  %v2307 = vmul.f32 %v2062, %v1155
  %v2308 = vmul.f32 %v2067, %v1156
  %v2309 = vmul.f32 %v2072, %v1157
  %v2310 = vmul.f32 %v2077, %v1158
  %v2311 = vmul.f32 %v2082, %v1159
  %v2312 = vmul.f32 %v2087, %v1160
  %v2313 = vmul.f32 %v2092, %v1161
  %v2314 = vmul.f32 %v2097, %v1162
  %v2315 = vmul.f32 %v2102, %v1163
  %v2316 = vmul.f32 %v2107, %v1164
  %v2317 = vmul.f32 %v2112, %v1165
  %v2318 = vmul.f32 %v2117, %v1166
  %v2319 = vmul.f32 %v2122, %v1167
  %v2320 = vmul.f32 %v2127, %v1168
  %v2321 = vpack.c.bf16 %v2130, %v2129
  %v2322 = vpack.c.bf16 %v2132, %v2131
  %v2323 = vpack.c.bf16 %v2134, %v2133
  %v2324 = vpack.c.bf16 %v2136, %v2135
  %v2325 = vpack.c.bf16 %v2138, %v2137
  %v2326 = vpack.c.bf16 %v2140, %v2139
  %v2327 = vpack.c.bf16 %v2142, %v2141
  %v2328 = vpack.c.bf16 %v2144, %v2143
  %v2329 = vpack.c.bf16 %v2146, %v2145
  %v2330 = vpack.c.bf16 %v2148, %v2147
  %v2331 = vpack.c.bf16 %v2150, %v2149
  %v2332 = vpack.c.bf16 %v2152, %v2151
  %v2333 = vpack.c.bf16 %v2154, %v2153
  %v2334 = vpack.c.bf16 %v2156, %v2155
  %v2335 = vpack.c.bf16 %v2158, %v2157
  %v2336 = vpack.c.bf16 %v2160, %v2159
  %v2337 = vpack.c.bf16 %v2162, %v2161
  %v2338 = vpack.c.bf16 %v2164, %v2163
  %v2339 = vpack.c.bf16 %v2166, %v2165
  %v2340 = vpack.c.bf16 %v2168, %v2167
  %v2341 = vpack.c.bf16 %v2170, %v2169
  %v2342 = vpack.c.bf16 %v2172, %v2171
  %v2343 = vpack.c.bf16 %v2174, %v2173
  %v2344 = vpack.c.bf16 %v2176, %v2175
  %v2345 = vpack.c.bf16 %v2178, %v2177
  %v2346 = vpack.c.bf16 %v2180, %v2179
  %v2347 = vpack.c.bf16 %v2182, %v2181
  %v2348 = vpack.c.bf16 %v2184, %v2183
  %v2349 = vpack.c.bf16 %v2186, %v2185
  %v2350 = vpack.c.bf16 %v2188, %v2187
  %v2351 = vpack.c.bf16 %v2190, %v2189
  %v2352 = vpack.c.bf16 %v2192, %v2191
  %v2353 = vpack.c.bf16 %v2194, %v2193
  %v2354 = vpack.c.bf16 %v2196, %v2195
  %v2355 = vpack.c.bf16 %v2198, %v2197
  %v2356 = vpack.c.bf16 %v2200, %v2199
  %v2357 = vpack.c.bf16 %v2202, %v2201
  %v2358 = vpack.c.bf16 %v2204, %v2203
  %v2359 = vpack.c.bf16 %v2206, %v2205
  %v2360 = vpack.c.bf16 %v2208, %v2207
  %v2361 = vpack.c.bf16 %v2210, %v2209
  %v2362 = vpack.c.bf16 %v2212, %v2211
  %v2363 = vpack.c.bf16 %v2214, %v2213
  %v2364 = vpack.c.bf16 %v2216, %v2215
  %v2365 = vpack.c.bf16 %v2218, %v2217
  %v2366 = vpack.c.bf16 %v2220, %v2219
  %v2367 = vpack.c.bf16 %v2222, %v2221
  %v2368 = vpack.c.bf16 %v2224, %v2223
  %v2369 = vpack.c.bf16 %v2226, %v2225
  %v2370 = vpack.c.bf16 %v2228, %v2227
  %v2371 = vpack.c.bf16 %v2230, %v2229
  %v2372 = vpack.c.bf16 %v2232, %v2231
  %v2373 = vpack.c.bf16 %v2234, %v2233
  %v2374 = vpack.c.bf16 %v2236, %v2235
  %v2375 = vpack.c.bf16 %v2238, %v2237
  %v2376 = vpack.c.bf16 %v2240, %v2239
  %v2377 = vpack.c.bf16 %v2242, %v2241
  %v2378 = vpack.c.bf16 %v2244, %v2243
  %v2379 = vpack.c.bf16 %v2246, %v2245
  %v2380 = vpack.c.bf16 %v2248, %v2247
  %v2381 = vpack.c.bf16 %v2250, %v2249
  %v2382 = vpack.c.bf16 %v2252, %v2251
  %v2383 = vpack.c.bf16 %v2254, %v2253
  %v2384 = vpack.c.bf16 %v2256, %v2255
  %v2385 = vpack.c.bf16 %v2258, %v2257
  %v2386 = vpack.c.bf16 %v2260, %v2259
  %v2387 = vpack.c.bf16 %v2262, %v2261
  %v2388 = vpack.c.bf16 %v2264, %v2263
  %v2389 = vpack.c.bf16 %v2266, %v2265
  %v2390 = vpack.c.bf16 %v2268, %v2267
  %v2391 = vpack.c.bf16 %v2270, %v2269
  %v2392 = vpack.c.bf16 %v2272, %v2271
  %v2393 = vpack.c.bf16 %v2274, %v2273
  %v2394 = vpack.c.bf16 %v2276, %v2275
  %v2395 = vpack.c.bf16 %v2278, %v2277
  %v2396 = vpack.c.bf16 %v2280, %v2279
  %v2397 = vpack.c.bf16 %v2282, %v2281
  %v2398 = vpack.c.bf16 %v2284, %v2283
  %v2399 = vpack.c.bf16 %v2286, %v2285
  %v2400 = vpack.c.bf16 %v2288, %v2287
  %v2401 = vpack.c.bf16 %v2290, %v2289
  %v2402 = vpack.c.bf16 %v2292, %v2291
  %v2403 = vpack.c.bf16 %v2294, %v2293
  %v2404 = vpack.c.bf16 %v2296, %v2295
  %v2405 = vpack.c.bf16 %v2298, %v2297
  %v2406 = vpack.c.bf16 %v2300, %v2299
  %v2407 = vpack.c.bf16 %v2302, %v2301
  %v2408 = vpack.c.bf16 %v2304, %v2303
  %v2409 = vpack.c.bf16 %v2306, %v2305
  %v2410 = vpack.c.bf16 %v2308, %v2307
  %v2411 = vpack.c.bf16 %v2310, %v2309
  %v2412 = vpack.c.bf16 %v2312, %v2311
  %v2413 = vpack.c.bf16 %v2314, %v2313
  %v2414 = vpack.c.bf16 %v2316, %v2315
  %v2415 = vpack.c.bf16 %v2318, %v2317
  %v2416 = vpack.c.bf16 %v2320, %v2319
  %v2417 = vld [vmem:[%s2] sm:$0xff]
  %v2418 = vld [vmem:[%s2 + $0x8] sm:$0xff]
  %v2419 = vld [vmem:[%s2 + $0x10] sm:$0xff]
  %v2420 = vld [vmem:[%s2 + $0x18] sm:$0xff]
  %v2421 = vld [vmem:[%s2 + $0x20] sm:$0xff]
  %v2422 = vld [vmem:[%s2 + $0x28] sm:$0xff]
  %v2423 = vld [vmem:[%s2 + $0x30] sm:$0xff]
  %v2424 = vld [vmem:[%s2 + $0x38] sm:$0xff]
  %v2425 = vld [vmem:[%s2 + $0x40] sm:$0xff]
  %v2426 = vld [vmem:[%s2 + $0x48] sm:$0xff]
  %v2427 = vld [vmem:[%s2 + $0x50] sm:$0xff]
  %v2428 = vld [vmem:[%s2 + $0x58] sm:$0xff]
  %v2429 = vld [vmem:[%s2 + $0x60] sm:$0xff]
  %v2430 = vld [vmem:[%s2 + $0x68] sm:$0xff]
  %v2431 = vld [vmem:[%s2 + $0x70] sm:$0xff]
  %v2432 = vld [vmem:[%s2 + $0x78] sm:$0xff]
  %v2433 = vld [vmem:[%s2 + $0x80] sm:$0xff]
  %v2434 = vld [vmem:[%s2 + $0x88] sm:$0xff]
  %v2435 = vld [vmem:[%s2 + $0x90] sm:$0xff]
  %v2436 = vld [vmem:[%s2 + $0x98] sm:$0xff]
  %v2437 = vld [vmem:[%s2 + $0xa0] sm:$0xff]
  %v2438 = vld [vmem:[%s2 + $0xa8] sm:$0xff]
  %v2439 = vld [vmem:[%s2 + $0xb0] sm:$0xff]
  %v2440 = vld [vmem:[%s2 + $0xb8] sm:$0xff]
  %v2441 = vld [vmem:[%s2 + $0xc0] sm:$0xff]
  %v2442 = vld [vmem:[%s2 + $0xc8] sm:$0xff]
  %v2443 = vld [vmem:[%s2 + $0xd0] sm:$0xff]
  %v2444 = vld [vmem:[%s2 + $0xd8] sm:$0xff]
  %v2445 = vld [vmem:[%s2 + $0xe0] sm:$0xff]
  %v2446 = vld [vmem:[%s2 + $0xe8] sm:$0xff]
  %v2447 = vld [vmem:[%s2 + $0xf0] sm:$0xff]
  %v2448 = vld [vmem:[%s2 + $0xf8] sm:$0xff]
  %v2449 = vld [vmem:[%s2 + $0x100] sm:$0xff]
  %v2450 = vld [vmem:[%s2 + $0x108] sm:$0xff]
  %v2451 = vld [vmem:[%s2 + $0x110] sm:$0xff]
  %v2452 = vld [vmem:[%s2 + $0x118] sm:$0xff]
  %v2453 = vld [vmem:[%s2 + $0x120] sm:$0xff]
  %v2454 = vld [vmem:[%s2 + $0x128] sm:$0xff]
  %v2455 = vld [vmem:[%s2 + $0x130] sm:$0xff]
  %v2456 = vld [vmem:[%s2 + $0x138] sm:$0xff]
  %v2457 = vld [vmem:[%s2 + $0x140] sm:$0xff]
  %v2458 = vld [vmem:[%s2 + $0x148] sm:$0xff]
  %v2459 = vld [vmem:[%s2 + $0x150] sm:$0xff]
  %v2460 = vld [vmem:[%s2 + $0x158] sm:$0xff]
  %v2461 = vld [vmem:[%s2 + $0x160] sm:$0xff]
  %v2462 = vld [vmem:[%s2 + $0x168] sm:$0xff]
  %v2463 = vld [vmem:[%s2 + $0x170] sm:$0xff]
  %v2464 = vld [vmem:[%s2 + $0x178] sm:$0xff]
  %v2465 = vld [vmem:[%s2 + $0x180] sm:$0xff]
  %v2466 = vld [vmem:[%s2 + $0x188] sm:$0xff]
  %v2467 = vld [vmem:[%s2 + $0x190] sm:$0xff]
  %v2468 = vld [vmem:[%s2 + $0x198] sm:$0xff]
  %v2469 = vld [vmem:[%s2 + $0x1a0] sm:$0xff]
  %v2470 = vld [vmem:[%s2 + $0x1a8] sm:$0xff]
  %v2471 = vld [vmem:[%s2 + $0x1b0] sm:$0xff]
  %v2472 = vld [vmem:[%s2 + $0x1b8] sm:$0xff]
  %v2473 = vld [vmem:[%s2 + $0x1c0] sm:$0xff]
  %v2474 = vld [vmem:[%s2 + $0x1c8] sm:$0xff]
  %v2475 = vld [vmem:[%s2 + $0x1d0] sm:$0xff]
  %v2476 = vld [vmem:[%s2 + $0x1d8] sm:$0xff]
  %v2477 = vld [vmem:[%s2 + $0x1e0] sm:$0xff]
  %v2478 = vld [vmem:[%s2 + $0x1e8] sm:$0xff]
  %v2479 = vld [vmem:[%s2 + $0x1f0] sm:$0xff]
  %v2480 = vld [vmem:[%s2 + $0x1f8] sm:$0xff]
  %v2481 = vld [vmem:[%s2 + $0x200] sm:$0xff]
  %v2482 = vld [vmem:[%s2 + $0x208] sm:$0xff]
  %v2483 = vld [vmem:[%s2 + $0x210] sm:$0xff]
  %v2484 = vld [vmem:[%s2 + $0x218] sm:$0xff]
  %v2485 = vld [vmem:[%s2 + $0x220] sm:$0xff]
  %v2486 = vld [vmem:[%s2 + $0x228] sm:$0xff]
  %v2487 = vld [vmem:[%s2 + $0x230] sm:$0xff]
  %v2488 = vld [vmem:[%s2 + $0x238] sm:$0xff]
  %v2489 = vld [vmem:[%s2 + $0x240] sm:$0xff]
  %v2490 = vld [vmem:[%s2 + $0x248] sm:$0xff]
  %v2491 = vld [vmem:[%s2 + $0x250] sm:$0xff]
  %v2492 = vld [vmem:[%s2 + $0x258] sm:$0xff]
  %v2493 = vld [vmem:[%s2 + $0x260] sm:$0xff]
  %v2494 = vld [vmem:[%s2 + $0x268] sm:$0xff]
  %v2495 = vld [vmem:[%s2 + $0x270] sm:$0xff]
  %v2496 = vld [vmem:[%s2 + $0x278] sm:$0xff]
  %v2497 = vld [vmem:[%s2 + $0x280] sm:$0xff]
  %v2498 = vld [vmem:[%s2 + $0x288] sm:$0xff]
  %v2499 = vld [vmem:[%s2 + $0x290] sm:$0xff]
  %v2500 = vld [vmem:[%s2 + $0x298] sm:$0xff]
  %v2501 = vld [vmem:[%s2 + $0x2a0] sm:$0xff]
  %v2502 = vld [vmem:[%s2 + $0x2a8] sm:$0xff]
  %v2503 = vld [vmem:[%s2 + $0x2b0] sm:$0xff]
  %v2504 = vld [vmem:[%s2 + $0x2b8] sm:$0xff]
  %v2505 = vld [vmem:[%s2 + $0x2c0] sm:$0xff]
  %v2506 = vld [vmem:[%s2 + $0x2c8] sm:$0xff]
  %v2507 = vld [vmem:[%s2 + $0x2d0] sm:$0xff]
  %v2508 = vld [vmem:[%s2 + $0x2d8] sm:$0xff]
  %v2509 = vld [vmem:[%s2 + $0x2e0] sm:$0xff]
  %v2510 = vld [vmem:[%s2 + $0x2e8] sm:$0xff]
  %v2511 = vld [vmem:[%s2 + $0x2f0] sm:$0xff]
  %v2512 = vld [vmem:[%s2 + $0x2f8] sm:$0xff]
  %v2513 = vld [vmem:[%s2 + $0x300] sm:$0xff]
  %v2514 = vld [vmem:[%s2 + $0x308] sm:$0xff]
  %v2515 = vld [vmem:[%s2 + $0x310] sm:$0xff]
  %v2516 = vld [vmem:[%s2 + $0x318] sm:$0xff]
  %v2517 = vld [vmem:[%s2 + $0x320] sm:$0xff]
  %v2518 = vld [vmem:[%s2 + $0x328] sm:$0xff]
  %v2519 = vld [vmem:[%s2 + $0x330] sm:$0xff]
  %v2520 = vld [vmem:[%s2 + $0x338] sm:$0xff]
  %v2521 = vld [vmem:[%s2 + $0x340] sm:$0xff]
  %v2522 = vld [vmem:[%s2 + $0x348] sm:$0xff]
  %v2523 = vld [vmem:[%s2 + $0x350] sm:$0xff]
  %v2524 = vld [vmem:[%s2 + $0x358] sm:$0xff]
  %v2525 = vld [vmem:[%s2 + $0x360] sm:$0xff]
  %v2526 = vld [vmem:[%s2 + $0x368] sm:$0xff]
  %v2527 = vld [vmem:[%s2 + $0x370] sm:$0xff]
  %v2528 = vld [vmem:[%s2 + $0x378] sm:$0xff]
  %v2529 = vld [vmem:[%s2 + $0x380] sm:$0xff]
  %v2530 = vld [vmem:[%s2 + $0x388] sm:$0xff]
  %v2531 = vld [vmem:[%s2 + $0x390] sm:$0xff]
  %v2532 = vld [vmem:[%s2 + $0x398] sm:$0xff]
  %v2533 = vld [vmem:[%s2 + $0x3a0] sm:$0xff]
  %v2534 = vld [vmem:[%s2 + $0x3a8] sm:$0xff]
  %v2535 = vld [vmem:[%s2 + $0x3b0] sm:$0xff]
  %v2536 = vld [vmem:[%s2 + $0x3b8] sm:$0xff]
  %v2537 = vld [vmem:[%s2 + $0x3c0] sm:$0xff]
  %v2538 = vld [vmem:[%s2 + $0x3c8] sm:$0xff]
  %v2539 = vld [vmem:[%s2 + $0x3d0] sm:$0xff]
  %v2540 = vld [vmem:[%s2 + $0x3d8] sm:$0xff]
  %v2541 = vld [vmem:[%s2 + $0x3e0] sm:$0xff]
  %v2542 = vld [vmem:[%s2 + $0x3e8] sm:$0xff]
  %v2543 = vld [vmem:[%s2 + $0x3f0] sm:$0xff]
  %v2544 = vld [vmem:[%s2 + $0x3f8] sm:$0xff]
  %v2545 = vld [vmem:[%s2 + $0x400] sm:$0xff]
  %v2546 = vld [vmem:[%s2 + $0x408] sm:$0xff]
  %v2547 = vld [vmem:[%s2 + $0x410] sm:$0xff]
  %v2548 = vld [vmem:[%s2 + $0x418] sm:$0xff]
  %v2549 = vld [vmem:[%s2 + $0x420] sm:$0xff]
  %v2550 = vld [vmem:[%s2 + $0x428] sm:$0xff]
  %v2551 = vld [vmem:[%s2 + $0x430] sm:$0xff]
  %v2552 = vld [vmem:[%s2 + $0x438] sm:$0xff]
  %v2553 = vld [vmem:[%s2 + $0x440] sm:$0xff]
  %v2554 = vld [vmem:[%s2 + $0x448] sm:$0xff]
  %v2555 = vld [vmem:[%s2 + $0x450] sm:$0xff]
  %v2556 = vld [vmem:[%s2 + $0x458] sm:$0xff]
  %v2557 = vld [vmem:[%s2 + $0x460] sm:$0xff]
  %v2558 = vld [vmem:[%s2 + $0x468] sm:$0xff]
  %v2559 = vld [vmem:[%s2 + $0x470] sm:$0xff]
  %v2560 = vld [vmem:[%s2 + $0x478] sm:$0xff]
  %v2561 = vld [vmem:[%s2 + $0x480] sm:$0xff]
  %v2562 = vld [vmem:[%s2 + $0x488] sm:$0xff]
  %v2563 = vld [vmem:[%s2 + $0x490] sm:$0xff]
  %v2564 = vld [vmem:[%s2 + $0x498] sm:$0xff]
  %v2565 = vld [vmem:[%s2 + $0x4a0] sm:$0xff]
  %v2566 = vld [vmem:[%s2 + $0x4a8] sm:$0xff]
  %v2567 = vld [vmem:[%s2 + $0x4b0] sm:$0xff]
  %v2568 = vld [vmem:[%s2 + $0x4b8] sm:$0xff]
  %v2569 = vld [vmem:[%s2 + $0x4c0] sm:$0xff]
  %v2570 = vld [vmem:[%s2 + $0x4c8] sm:$0xff]
  %v2571 = vld [vmem:[%s2 + $0x4d0] sm:$0xff]
  %v2572 = vld [vmem:[%s2 + $0x4d8] sm:$0xff]
  %v2573 = vld [vmem:[%s2 + $0x4e0] sm:$0xff]
  %v2574 = vld [vmem:[%s2 + $0x4e8] sm:$0xff]
  %v2575 = vld [vmem:[%s2 + $0x4f0] sm:$0xff]
  %v2576 = vld [vmem:[%s2 + $0x4f8] sm:$0xff]
  %v2577 = vld [vmem:[%s2 + $0x500] sm:$0xff]
  %v2578 = vld [vmem:[%s2 + $0x508] sm:$0xff]
  %v2579 = vld [vmem:[%s2 + $0x510] sm:$0xff]
  %v2580 = vld [vmem:[%s2 + $0x518] sm:$0xff]
  %v2581 = vld [vmem:[%s2 + $0x520] sm:$0xff]
  %v2582 = vld [vmem:[%s2 + $0x528] sm:$0xff]
  %v2583 = vld [vmem:[%s2 + $0x530] sm:$0xff]
  %v2584 = vld [vmem:[%s2 + $0x538] sm:$0xff]
  %v2585 = vld [vmem:[%s2 + $0x540] sm:$0xff]
  %v2586 = vld [vmem:[%s2 + $0x548] sm:$0xff]
  %v2587 = vld [vmem:[%s2 + $0x550] sm:$0xff]
  %v2588 = vld [vmem:[%s2 + $0x558] sm:$0xff]
  %v2589 = vld [vmem:[%s2 + $0x560] sm:$0xff]
  %v2590 = vld [vmem:[%s2 + $0x568] sm:$0xff]
  %v2591 = vld [vmem:[%s2 + $0x570] sm:$0xff]
  %v2592 = vld [vmem:[%s2 + $0x578] sm:$0xff]
  %v2593 = vld [vmem:[%s2 + $0x580] sm:$0xff]
  %v2594 = vld [vmem:[%s2 + $0x588] sm:$0xff]
  %v2595 = vld [vmem:[%s2 + $0x590] sm:$0xff]
  %v2596 = vld [vmem:[%s2 + $0x598] sm:$0xff]
  %v2597 = vld [vmem:[%s2 + $0x5a0] sm:$0xff]
  %v2598 = vld [vmem:[%s2 + $0x5a8] sm:$0xff]
  %v2599 = vld [vmem:[%s2 + $0x5b0] sm:$0xff]
  %v2600 = vld [vmem:[%s2 + $0x5b8] sm:$0xff]
  %v2601 = vld [vmem:[%s2 + $0x5c0] sm:$0xff]
  %v2602 = vld [vmem:[%s2 + $0x5c8] sm:$0xff]
  %v2603 = vld [vmem:[%s2 + $0x5d0] sm:$0xff]
  %v2604 = vld [vmem:[%s2 + $0x5d8] sm:$0xff]
  %v2605 = vld [vmem:[%s2 + $0x5e0] sm:$0xff]
  %v2606 = vld [vmem:[%s2 + $0x5e8] sm:$0xff]
  %v2607 = vld [vmem:[%s2 + $0x5f0] sm:$0xff]
  %v2608 = vld [vmem:[%s2 + $0x5f8] sm:$0xff]
  %v2801 = vunpack.c.l.b16 %v2417
  %v2802 = vunpack.c.h.b16 %v2417
  %v2803 = vunpack.c.l.b16 %v2418
  %v2804 = vunpack.c.h.b16 %v2418
  %v2805 = vunpack.c.l.b16 %v2419
  %v2806 = vunpack.c.h.b16 %v2419
  %v2807 = vunpack.c.l.b16 %v2420
  %v2808 = vunpack.c.h.b16 %v2420
  %v2809 = vunpack.c.l.b16 %v2421
  %v2810 = vunpack.c.h.b16 %v2421
  %v2811 = vunpack.c.l.b16 %v2422
  %v2812 = vunpack.c.h.b16 %v2422
  %v2813 = vunpack.c.l.b16 %v2423
  %v2814 = vunpack.c.h.b16 %v2423
  %v2815 = vunpack.c.l.b16 %v2424
  %v2816 = vunpack.c.h.b16 %v2424
  %v2817 = vunpack.c.l.b16 %v2425
  %v2818 = vunpack.c.h.b16 %v2425
  %v2819 = vunpack.c.l.b16 %v2426
  %v2820 = vunpack.c.h.b16 %v2426
  %v2821 = vunpack.c.l.b16 %v2427
  %v2822 = vunpack.c.h.b16 %v2427
  %v2823 = vunpack.c.l.b16 %v2428
  %v2824 = vunpack.c.h.b16 %v2428
  %v2825 = vunpack.c.l.b16 %v2429
  %v2826 = vunpack.c.h.b16 %v2429
  %v2827 = vunpack.c.l.b16 %v2430
  %v2828 = vunpack.c.h.b16 %v2430
  %v2829 = vunpack.c.l.b16 %v2431
  %v2830 = vunpack.c.h.b16 %v2431
  %v2831 = vunpack.c.l.b16 %v2432
  %v2832 = vunpack.c.h.b16 %v2432
  %v2833 = vunpack.c.l.b16 %v2433
  %v2834 = vunpack.c.h.b16 %v2433
  %v2835 = vunpack.c.l.b16 %v2434
  %v2836 = vunpack.c.h.b16 %v2434
  %v2837 = vunpack.c.l.b16 %v2435
  %v2838 = vunpack.c.h.b16 %v2435
  %v2839 = vunpack.c.l.b16 %v2436
  %v2840 = vunpack.c.h.b16 %v2436
  %v2841 = vunpack.c.l.b16 %v2437
  %v2842 = vunpack.c.h.b16 %v2437
  %v2843 = vunpack.c.l.b16 %v2438
  %v2844 = vunpack.c.h.b16 %v2438
  %v2845 = vunpack.c.l.b16 %v2439
  %v2846 = vunpack.c.h.b16 %v2439
  %v2847 = vunpack.c.l.b16 %v2440
  %v2848 = vunpack.c.h.b16 %v2440
  %v2849 = vunpack.c.l.b16 %v2441
  %v2850 = vunpack.c.h.b16 %v2441
  %v2851 = vunpack.c.l.b16 %v2442
  %v2852 = vunpack.c.h.b16 %v2442
  %v2853 = vunpack.c.l.b16 %v2443
  %v2854 = vunpack.c.h.b16 %v2443
  %v2855 = vunpack.c.l.b16 %v2444
  %v2856 = vunpack.c.h.b16 %v2444
  %v2857 = vunpack.c.l.b16 %v2445
  %v2858 = vunpack.c.h.b16 %v2445
  %v2859 = vunpack.c.l.b16 %v2446
  %v2860 = vunpack.c.h.b16 %v2446
  %v2861 = vunpack.c.l.b16 %v2447
  %v2862 = vunpack.c.h.b16 %v2447
  %v2863 = vunpack.c.l.b16 %v2448
  %v2864 = vunpack.c.h.b16 %v2448
  %v2865 = vunpack.c.l.b16 %v2449
  %v2866 = vunpack.c.h.b16 %v2449
  %v2867 = vunpack.c.l.b16 %v2450
  %v2868 = vunpack.c.h.b16 %v2450
  %v2869 = vunpack.c.l.b16 %v2451
  %v2870 = vunpack.c.h.b16 %v2451
  %v2871 = vunpack.c.l.b16 %v2452
  %v2872 = vunpack.c.h.b16 %v2452
  %v2873 = vunpack.c.l.b16 %v2453
  %v2874 = vunpack.c.h.b16 %v2453
  %v2875 = vunpack.c.l.b16 %v2454
  %v2876 = vunpack.c.h.b16 %v2454
  %v2877 = vunpack.c.l.b16 %v2455
  %v2878 = vunpack.c.h.b16 %v2455
  %v2879 = vunpack.c.l.b16 %v2456
  %v2880 = vunpack.c.h.b16 %v2456
  %v2881 = vunpack.c.l.b16 %v2457
  %v2882 = vunpack.c.h.b16 %v2457
  %v2883 = vunpack.c.l.b16 %v2458
  %v2884 = vunpack.c.h.b16 %v2458
  %v2885 = vunpack.c.l.b16 %v2459
  %v2886 = vunpack.c.h.b16 %v2459
  %v2887 = vunpack.c.l.b16 %v2460
  %v2888 = vunpack.c.h.b16 %v2460
  %v2889 = vunpack.c.l.b16 %v2461
  %v2890 = vunpack.c.h.b16 %v2461
  %v2891 = vunpack.c.l.b16 %v2462
  %v2892 = vunpack.c.h.b16 %v2462
  %v2893 = vunpack.c.l.b16 %v2463
  %v2894 = vunpack.c.h.b16 %v2463
  %v2895 = vunpack.c.l.b16 %v2464
  %v2896 = vunpack.c.h.b16 %v2464
  %v2897 = vunpack.c.l.b16 %v2465
  %v2898 = vunpack.c.h.b16 %v2465
  %v2899 = vunpack.c.l.b16 %v2466
  %v2900 = vunpack.c.h.b16 %v2466
  %v2901 = vunpack.c.l.b16 %v2467
  %v2902 = vunpack.c.h.b16 %v2467
  %v2903 = vunpack.c.l.b16 %v2468
  %v2904 = vunpack.c.h.b16 %v2468
  %v2905 = vunpack.c.l.b16 %v2469
  %v2906 = vunpack.c.h.b16 %v2469
  %v2907 = vunpack.c.l.b16 %v2470
  %v2908 = vunpack.c.h.b16 %v2470
  %v2909 = vunpack.c.l.b16 %v2471
  %v2910 = vunpack.c.h.b16 %v2471
  %v2911 = vunpack.c.l.b16 %v2472
  %v2912 = vunpack.c.h.b16 %v2472
  %v2913 = vunpack.c.l.b16 %v2473
  %v2914 = vunpack.c.h.b16 %v2473
  %v2915 = vunpack.c.l.b16 %v2474
  %v2916 = vunpack.c.h.b16 %v2474
  %v2917 = vunpack.c.l.b16 %v2475
  %v2918 = vunpack.c.h.b16 %v2475
  %v2919 = vunpack.c.l.b16 %v2476
  %v2920 = vunpack.c.h.b16 %v2476
  %v2921 = vunpack.c.l.b16 %v2477
  %v2922 = vunpack.c.h.b16 %v2477
  %v2923 = vunpack.c.l.b16 %v2478
  %v2924 = vunpack.c.h.b16 %v2478
  %v2925 = vunpack.c.l.b16 %v2479
  %v2926 = vunpack.c.h.b16 %v2479
  %v2927 = vunpack.c.l.b16 %v2480
  %v2928 = vunpack.c.h.b16 %v2480
  %v2929 = vunpack.c.l.b16 %v2481
  %v2930 = vunpack.c.h.b16 %v2481
  %v2931 = vunpack.c.l.b16 %v2482
  %v2932 = vunpack.c.h.b16 %v2482
  %v2933 = vunpack.c.l.b16 %v2483
  %v2934 = vunpack.c.h.b16 %v2483
  %v2935 = vunpack.c.l.b16 %v2484
  %v2936 = vunpack.c.h.b16 %v2484
  %v2937 = vunpack.c.l.b16 %v2485
  %v2938 = vunpack.c.h.b16 %v2485
  %v2939 = vunpack.c.l.b16 %v2486
  %v2940 = vunpack.c.h.b16 %v2486
  %v2941 = vunpack.c.l.b16 %v2487
  %v2942 = vunpack.c.h.b16 %v2487
  %v2943 = vunpack.c.l.b16 %v2488
  %v2944 = vunpack.c.h.b16 %v2488
  %v2945 = vunpack.c.l.b16 %v2489
  %v2946 = vunpack.c.h.b16 %v2489
  %v2947 = vunpack.c.l.b16 %v2490
  %v2948 = vunpack.c.h.b16 %v2490
  %v2949 = vunpack.c.l.b16 %v2491
  %v2950 = vunpack.c.h.b16 %v2491
  %v2951 = vunpack.c.l.b16 %v2492
  %v2952 = vunpack.c.h.b16 %v2492
  %v2953 = vunpack.c.l.b16 %v2493
  %v2954 = vunpack.c.h.b16 %v2493
  %v2955 = vunpack.c.l.b16 %v2494
  %v2956 = vunpack.c.h.b16 %v2494
  %v2957 = vunpack.c.l.b16 %v2495
  %v2958 = vunpack.c.h.b16 %v2495
  %v2959 = vunpack.c.l.b16 %v2496
  %v2960 = vunpack.c.h.b16 %v2496
  %v2961 = vunpack.c.l.b16 %v2497
  %v2962 = vunpack.c.h.b16 %v2497
  %v2963 = vunpack.c.l.b16 %v2498
  %v2964 = vunpack.c.h.b16 %v2498
  %v2965 = vunpack.c.l.b16 %v2499
  %v2966 = vunpack.c.h.b16 %v2499
  %v2967 = vunpack.c.l.b16 %v2500
  %v2968 = vunpack.c.h.b16 %v2500
  %v2969 = vunpack.c.l.b16 %v2501
  %v2970 = vunpack.c.h.b16 %v2501
  %v2971 = vunpack.c.l.b16 %v2502
  %v2972 = vunpack.c.h.b16 %v2502
  %v2973 = vunpack.c.l.b16 %v2503
  %v2974 = vunpack.c.h.b16 %v2503
  %v2975 = vunpack.c.l.b16 %v2504
  %v2976 = vunpack.c.h.b16 %v2504
  %v2977 = vunpack.c.l.b16 %v2505
  %v2978 = vunpack.c.h.b16 %v2505
  %v2979 = vunpack.c.l.b16 %v2506
  %v2980 = vunpack.c.h.b16 %v2506
  %v2981 = vunpack.c.l.b16 %v2507
  %v2982 = vunpack.c.h.b16 %v2507
  %v2983 = vunpack.c.l.b16 %v2508
  %v2984 = vunpack.c.h.b16 %v2508
  %v2985 = vunpack.c.l.b16 %v2509
  %v2986 = vunpack.c.h.b16 %v2509
  %v2987 = vunpack.c.l.b16 %v2510
  %v2988 = vunpack.c.h.b16 %v2510
  %v2989 = vunpack.c.l.b16 %v2511
  %v2990 = vunpack.c.h.b16 %v2511
  %v2991 = vunpack.c.l.b16 %v2512
  %v2992 = vunpack.c.h.b16 %v2512
  %v2993 = vunpack.c.l.b16 %v2513
  %v2994 = vunpack.c.h.b16 %v2513
  %v2995 = vunpack.c.l.b16 %v2514
  %v2996 = vunpack.c.h.b16 %v2514
  %v2997 = vunpack.c.l.b16 %v2515
  %v2998 = vunpack.c.h.b16 %v2515
  %v2999 = vunpack.c.l.b16 %v2516
  %v3000 = vunpack.c.h.b16 %v2516
  %v3001 = vunpack.c.l.b16 %v2517
  %v3002 = vunpack.c.h.b16 %v2517
  %v3003 = vunpack.c.l.b16 %v2518
  %v3004 = vunpack.c.h.b16 %v2518
  %v3005 = vunpack.c.l.b16 %v2519
  %v3006 = vunpack.c.h.b16 %v2519
  %v3007 = vunpack.c.l.b16 %v2520
  %v3008 = vunpack.c.h.b16 %v2520
  %v3009 = vunpack.c.l.b16 %v2521
  %v3010 = vunpack.c.h.b16 %v2521
  %v3011 = vunpack.c.l.b16 %v2522
  %v3012 = vunpack.c.h.b16 %v2522
  %v3013 = vunpack.c.l.b16 %v2523
  %v3014 = vunpack.c.h.b16 %v2523
  %v3015 = vunpack.c.l.b16 %v2524
  %v3016 = vunpack.c.h.b16 %v2524
  %v3017 = vunpack.c.l.b16 %v2525
  %v3018 = vunpack.c.h.b16 %v2525
  %v3019 = vunpack.c.l.b16 %v2526
  %v3020 = vunpack.c.h.b16 %v2526
  %v3021 = vunpack.c.l.b16 %v2527
  %v3022 = vunpack.c.h.b16 %v2527
  %v3023 = vunpack.c.l.b16 %v2528
  %v3024 = vunpack.c.h.b16 %v2528
  %v3025 = vunpack.c.l.b16 %v2529
  %v3026 = vunpack.c.h.b16 %v2529
  %v3027 = vunpack.c.l.b16 %v2530
  %v3028 = vunpack.c.h.b16 %v2530
  %v3029 = vunpack.c.l.b16 %v2531
  %v3030 = vunpack.c.h.b16 %v2531
  %v3031 = vunpack.c.l.b16 %v2532
  %v3032 = vunpack.c.h.b16 %v2532
  %v3033 = vunpack.c.l.b16 %v2533
  %v3034 = vunpack.c.h.b16 %v2533
  %v3035 = vunpack.c.l.b16 %v2534
  %v3036 = vunpack.c.h.b16 %v2534
  %v3037 = vunpack.c.l.b16 %v2535
  %v3038 = vunpack.c.h.b16 %v2535
  %v3039 = vunpack.c.l.b16 %v2536
  %v3040 = vunpack.c.h.b16 %v2536
  %v3041 = vunpack.c.l.b16 %v2537
  %v3042 = vunpack.c.h.b16 %v2537
  %v3043 = vunpack.c.l.b16 %v2538
  %v3044 = vunpack.c.h.b16 %v2538
  %v3045 = vunpack.c.l.b16 %v2539
  %v3046 = vunpack.c.h.b16 %v2539
  %v3047 = vunpack.c.l.b16 %v2540
  %v3048 = vunpack.c.h.b16 %v2540
  %v3049 = vunpack.c.l.b16 %v2541
  %v3050 = vunpack.c.h.b16 %v2541
  %v3051 = vunpack.c.l.b16 %v2542
  %v3052 = vunpack.c.h.b16 %v2542
  %v3053 = vunpack.c.l.b16 %v2543
  %v3054 = vunpack.c.h.b16 %v2543
  %v3055 = vunpack.c.l.b16 %v2544
  %v3056 = vunpack.c.h.b16 %v2544
  %v3057 = vunpack.c.l.b16 %v2545
  %v3058 = vunpack.c.h.b16 %v2545
  %v3059 = vunpack.c.l.b16 %v2546
  %v3060 = vunpack.c.h.b16 %v2546
  %v3061 = vunpack.c.l.b16 %v2547
  %v3062 = vunpack.c.h.b16 %v2547
  %v3063 = vunpack.c.l.b16 %v2548
  %v3064 = vunpack.c.h.b16 %v2548
  %v3065 = vunpack.c.l.b16 %v2549
  %v3066 = vunpack.c.h.b16 %v2549
  %v3067 = vunpack.c.l.b16 %v2550
  %v3068 = vunpack.c.h.b16 %v2550
  %v3069 = vunpack.c.l.b16 %v2551
  %v3070 = vunpack.c.h.b16 %v2551
  %v3071 = vunpack.c.l.b16 %v2552
  %v3072 = vunpack.c.h.b16 %v2552
  %v3073 = vunpack.c.l.b16 %v2553
  %v3074 = vunpack.c.h.b16 %v2553
  %v3075 = vunpack.c.l.b16 %v2554
  %v3076 = vunpack.c.h.b16 %v2554
  %v3077 = vunpack.c.l.b16 %v2555
  %v3078 = vunpack.c.h.b16 %v2555
  %v3079 = vunpack.c.l.b16 %v2556
  %v3080 = vunpack.c.h.b16 %v2556
  %v3081 = vunpack.c.l.b16 %v2557
  %v3082 = vunpack.c.h.b16 %v2557
  %v3083 = vunpack.c.l.b16 %v2558
  %v3084 = vunpack.c.h.b16 %v2558
  %v3085 = vunpack.c.l.b16 %v2559
  %v3086 = vunpack.c.h.b16 %v2559
  %v3087 = vunpack.c.l.b16 %v2560
  %v3088 = vunpack.c.h.b16 %v2560
  %v3089 = vunpack.c.l.b16 %v2561
  %v3090 = vunpack.c.h.b16 %v2561
  %v3091 = vunpack.c.l.b16 %v2562
  %v3092 = vunpack.c.h.b16 %v2562
  %v3093 = vunpack.c.l.b16 %v2563
  %v3094 = vunpack.c.h.b16 %v2563
  %v3095 = vunpack.c.l.b16 %v2564
  %v3096 = vunpack.c.h.b16 %v2564
  %v3097 = vunpack.c.l.b16 %v2565
  %v3098 = vunpack.c.h.b16 %v2565
  %v3099 = vunpack.c.l.b16 %v2566
  %v3100 = vunpack.c.h.b16 %v2566
  %v3101 = vunpack.c.l.b16 %v2567
  %v3102 = vunpack.c.h.b16 %v2567
  %v3103 = vunpack.c.l.b16 %v2568
  %v3104 = vunpack.c.h.b16 %v2568
  %v3105 = vunpack.c.l.b16 %v2569
  %v3106 = vunpack.c.h.b16 %v2569
  %v3107 = vunpack.c.l.b16 %v2570
  %v3108 = vunpack.c.h.b16 %v2570
  %v3109 = vunpack.c.l.b16 %v2571
  %v3110 = vunpack.c.h.b16 %v2571
  %v3111 = vunpack.c.l.b16 %v2572
  %v3112 = vunpack.c.h.b16 %v2572
  %v3113 = vunpack.c.l.b16 %v2573
  %v3114 = vunpack.c.h.b16 %v2573
  %v3115 = vunpack.c.l.b16 %v2574
  %v3116 = vunpack.c.h.b16 %v2574
  %v3117 = vunpack.c.l.b16 %v2575
  %v3118 = vunpack.c.h.b16 %v2575
  %v3119 = vunpack.c.l.b16 %v2576
  %v3120 = vunpack.c.h.b16 %v2576
  %v3121 = vunpack.c.l.b16 %v2577
  %v3122 = vunpack.c.h.b16 %v2577
  %v3123 = vunpack.c.l.b16 %v2578
  %v3124 = vunpack.c.h.b16 %v2578
  %v3125 = vunpack.c.l.b16 %v2579
  %v3126 = vunpack.c.h.b16 %v2579
  %v3127 = vunpack.c.l.b16 %v2580
  %v3128 = vunpack.c.h.b16 %v2580
  %v3129 = vunpack.c.l.b16 %v2581
  %v3130 = vunpack.c.h.b16 %v2581
  %v3131 = vunpack.c.l.b16 %v2582
  %v3132 = vunpack.c.h.b16 %v2582
  %v3133 = vunpack.c.l.b16 %v2583
  %v3134 = vunpack.c.h.b16 %v2583
  %v3135 = vunpack.c.l.b16 %v2584
  %v3136 = vunpack.c.h.b16 %v2584
  %v3137 = vunpack.c.l.b16 %v2585
  %v3138 = vunpack.c.h.b16 %v2585
  %v3139 = vunpack.c.l.b16 %v2586
  %v3140 = vunpack.c.h.b16 %v2586
  %v3141 = vunpack.c.l.b16 %v2587
  %v3142 = vunpack.c.h.b16 %v2587
  %v3143 = vunpack.c.l.b16 %v2588
  %v3144 = vunpack.c.h.b16 %v2588
  %v3145 = vunpack.c.l.b16 %v2589
  %v3146 = vunpack.c.h.b16 %v2589
  %v3147 = vunpack.c.l.b16 %v2590
  %v3148 = vunpack.c.h.b16 %v2590
  %v3149 = vunpack.c.l.b16 %v2591
  %v3150 = vunpack.c.h.b16 %v2591
  %v3151 = vunpack.c.l.b16 %v2592
  %v3152 = vunpack.c.h.b16 %v2592
  %v3153 = vunpack.c.l.b16 %v2593
  %v3154 = vunpack.c.h.b16 %v2593
  %v3155 = vunpack.c.l.b16 %v2594
  %v3156 = vunpack.c.h.b16 %v2594
  %v3157 = vunpack.c.l.b16 %v2595
  %v3158 = vunpack.c.h.b16 %v2595
  %v3159 = vunpack.c.l.b16 %v2596
  %v3160 = vunpack.c.h.b16 %v2596
  %v3161 = vunpack.c.l.b16 %v2597
  %v3162 = vunpack.c.h.b16 %v2597
  %v3163 = vunpack.c.l.b16 %v2598
  %v3164 = vunpack.c.h.b16 %v2598
  %v3165 = vunpack.c.l.b16 %v2599
  %v3166 = vunpack.c.h.b16 %v2599
  %v3167 = vunpack.c.l.b16 %v2600
  %v3168 = vunpack.c.h.b16 %v2600
  %v3169 = vunpack.c.l.b16 %v2601
  %v3170 = vunpack.c.h.b16 %v2601
  %v3171 = vunpack.c.l.b16 %v2602
  %v3172 = vunpack.c.h.b16 %v2602
  %v3173 = vunpack.c.l.b16 %v2603
  %v3174 = vunpack.c.h.b16 %v2603
  %v3175 = vunpack.c.l.b16 %v2604
  %v3176 = vunpack.c.h.b16 %v2604
  %v3177 = vunpack.c.l.b16 %v2605
  %v3178 = vunpack.c.h.b16 %v2605
  %v3179 = vunpack.c.l.b16 %v2606
  %v3180 = vunpack.c.h.b16 %v2606
  %v3181 = vunpack.c.l.b16 %v2607
  %v3182 = vunpack.c.h.b16 %v2607
  %v3183 = vunpack.c.l.b16 %v2608
  %v3184 = vunpack.c.h.b16 %v2608
  %v3185 = vpack.c.b16 %v2813, %v2801
  %v3186 = vpack.c.b16 %v2814, %v2802
  %v3187 = vpack.c.b16 %v2815, %v2803
  %v3188 = vpack.c.b16 %v2816, %v2804
  %v3189 = vpack.c.b16 %v2817, %v2805
  %v3190 = vpack.c.b16 %v2818, %v2806
  %v3191 = vpack.c.b16 %v2819, %v2807
  %v3192 = vpack.c.b16 %v2820, %v2808
  %v3193 = vpack.c.b16 %v2821, %v2809
  %v3194 = vpack.c.b16 %v2822, %v2810
  %v3195 = vpack.c.b16 %v2823, %v2811
  %v3196 = vpack.c.b16 %v2824, %v2812
  %v3197 = vpack.c.b16 %v2837, %v2825
  %v3198 = vpack.c.b16 %v2838, %v2826
  %v3199 = vpack.c.b16 %v2839, %v2827
  %v3200 = vpack.c.b16 %v2840, %v2828
  %v3201 = vpack.c.b16 %v2841, %v2829
  %v3202 = vpack.c.b16 %v2842, %v2830
  %v3203 = vpack.c.b16 %v2843, %v2831
  %v3204 = vpack.c.b16 %v2844, %v2832
  %v3205 = vpack.c.b16 %v2845, %v2833
  %v3206 = vpack.c.b16 %v2846, %v2834
  %v3207 = vpack.c.b16 %v2847, %v2835
  %v3208 = vpack.c.b16 %v2848, %v2836
  %v3209 = vpack.c.b16 %v2861, %v2849
  %v3210 = vpack.c.b16 %v2862, %v2850
  %v3211 = vpack.c.b16 %v2863, %v2851
  %v3212 = vpack.c.b16 %v2864, %v2852
  %v3213 = vpack.c.b16 %v2865, %v2853
  %v3214 = vpack.c.b16 %v2866, %v2854
  %v3215 = vpack.c.b16 %v2867, %v2855
  %v3216 = vpack.c.b16 %v2868, %v2856
  %v3217 = vpack.c.b16 %v2869, %v2857
  %v3218 = vpack.c.b16 %v2870, %v2858
  %v3219 = vpack.c.b16 %v2871, %v2859
  %v3220 = vpack.c.b16 %v2872, %v2860
  %v3221 = vpack.c.b16 %v2885, %v2873
  %v3222 = vpack.c.b16 %v2886, %v2874
  %v3223 = vpack.c.b16 %v2887, %v2875
  %v3224 = vpack.c.b16 %v2888, %v2876
  %v3225 = vpack.c.b16 %v2889, %v2877
  %v3226 = vpack.c.b16 %v2890, %v2878
  %v3227 = vpack.c.b16 %v2891, %v2879
  %v3228 = vpack.c.b16 %v2892, %v2880
  %v3229 = vpack.c.b16 %v2893, %v2881
  %v3230 = vpack.c.b16 %v2894, %v2882
  %v3231 = vpack.c.b16 %v2895, %v2883
  %v3232 = vpack.c.b16 %v2896, %v2884
  %v3233 = vpack.c.b16 %v2909, %v2897
  %v3234 = vpack.c.b16 %v2910, %v2898
  %v3235 = vpack.c.b16 %v2911, %v2899
  %v3236 = vpack.c.b16 %v2912, %v2900
  %v3237 = vpack.c.b16 %v2913, %v2901
  %v3238 = vpack.c.b16 %v2914, %v2902
  %v3239 = vpack.c.b16 %v2915, %v2903
  %v3240 = vpack.c.b16 %v2916, %v2904
  %v3241 = vpack.c.b16 %v2917, %v2905
  %v3242 = vpack.c.b16 %v2918, %v2906
  %v3243 = vpack.c.b16 %v2919, %v2907
  %v3244 = vpack.c.b16 %v2920, %v2908
  %v3245 = vpack.c.b16 %v2933, %v2921
  %v3246 = vpack.c.b16 %v2934, %v2922
  %v3247 = vpack.c.b16 %v2935, %v2923
  %v3248 = vpack.c.b16 %v2936, %v2924
  %v3249 = vpack.c.b16 %v2937, %v2925
  %v3250 = vpack.c.b16 %v2938, %v2926
  %v3251 = vpack.c.b16 %v2939, %v2927
  %v3252 = vpack.c.b16 %v2940, %v2928
  %v3253 = vpack.c.b16 %v2941, %v2929
  %v3254 = vpack.c.b16 %v2942, %v2930
  %v3255 = vpack.c.b16 %v2943, %v2931
  %v3256 = vpack.c.b16 %v2944, %v2932
  %v3257 = vpack.c.b16 %v2957, %v2945
  %v3258 = vpack.c.b16 %v2958, %v2946
  %v3259 = vpack.c.b16 %v2959, %v2947
  %v3260 = vpack.c.b16 %v2960, %v2948
  %v3261 = vpack.c.b16 %v2961, %v2949
  %v3262 = vpack.c.b16 %v2962, %v2950
  %v3263 = vpack.c.b16 %v2963, %v2951
  %v3264 = vpack.c.b16 %v2964, %v2952
  %v3265 = vpack.c.b16 %v2965, %v2953
  %v3266 = vpack.c.b16 %v2966, %v2954
  %v3267 = vpack.c.b16 %v2967, %v2955
  %v3268 = vpack.c.b16 %v2968, %v2956
  %v3269 = vpack.c.b16 %v2981, %v2969
  %v3270 = vpack.c.b16 %v2982, %v2970
  %v3271 = vpack.c.b16 %v2983, %v2971
  %v3272 = vpack.c.b16 %v2984, %v2972
  %v3273 = vpack.c.b16 %v2985, %v2973
  %v3274 = vpack.c.b16 %v2986, %v2974
  %v3275 = vpack.c.b16 %v2987, %v2975
  %v3276 = vpack.c.b16 %v2988, %v2976
  %v3277 = vpack.c.b16 %v2989, %v2977
  %v3278 = vpack.c.b16 %v2990, %v2978
  %v3279 = vpack.c.b16 %v2991, %v2979
  %v3280 = vpack.c.b16 %v2992, %v2980
  %v3281 = vpack.c.b16 %v3005, %v2993
  %v3282 = vpack.c.b16 %v3006, %v2994
  %v3283 = vpack.c.b16 %v3007, %v2995
  %v3284 = vpack.c.b16 %v3008, %v2996
  %v3285 = vpack.c.b16 %v3009, %v2997
  %v3286 = vpack.c.b16 %v3010, %v2998
  %v3287 = vpack.c.b16 %v3011, %v2999
  %v3288 = vpack.c.b16 %v3012, %v3000
  %v3289 = vpack.c.b16 %v3013, %v3001
  %v3290 = vpack.c.b16 %v3014, %v3002
  %v3291 = vpack.c.b16 %v3015, %v3003
  %v3292 = vpack.c.b16 %v3016, %v3004
  %v3293 = vpack.c.b16 %v3029, %v3017
  %v3294 = vpack.c.b16 %v3030, %v3018
  %v3295 = vpack.c.b16 %v3031, %v3019
  %v3296 = vpack.c.b16 %v3032, %v3020
  %v3297 = vpack.c.b16 %v3033, %v3021
  %v3298 = vpack.c.b16 %v3034, %v3022
  %v3299 = vpack.c.b16 %v3035, %v3023
  %v3300 = vpack.c.b16 %v3036, %v3024
  %v3301 = vpack.c.b16 %v3037, %v3025
  %v3302 = vpack.c.b16 %v3038, %v3026
  %v3303 = vpack.c.b16 %v3039, %v3027
  %v3304 = vpack.c.b16 %v3040, %v3028
  %v3305 = vpack.c.b16 %v3053, %v3041
  %v3306 = vpack.c.b16 %v3054, %v3042
  %v3307 = vpack.c.b16 %v3055, %v3043
  %v3308 = vpack.c.b16 %v3056, %v3044
  %v3309 = vpack.c.b16 %v3057, %v3045
  %v3310 = vpack.c.b16 %v3058, %v3046
  %v3311 = vpack.c.b16 %v3059, %v3047
  %v3312 = vpack.c.b16 %v3060, %v3048
  %v3313 = vpack.c.b16 %v3061, %v3049
  %v3314 = vpack.c.b16 %v3062, %v3050
  %v3315 = vpack.c.b16 %v3063, %v3051
  %v3316 = vpack.c.b16 %v3064, %v3052
  %v3317 = vpack.c.b16 %v3077, %v3065
  %v3318 = vpack.c.b16 %v3078, %v3066
  %v3319 = vpack.c.b16 %v3079, %v3067
  %v3320 = vpack.c.b16 %v3080, %v3068
  %v3321 = vpack.c.b16 %v3081, %v3069
  %v3322 = vpack.c.b16 %v3082, %v3070
  %v3323 = vpack.c.b16 %v3083, %v3071
  %v3324 = vpack.c.b16 %v3084, %v3072
  %v3325 = vpack.c.b16 %v3085, %v3073
  %v3326 = vpack.c.b16 %v3086, %v3074
  %v3327 = vpack.c.b16 %v3087, %v3075
  %v3328 = vpack.c.b16 %v3088, %v3076
  %v3329 = vpack.c.b16 %v3101, %v3089
  %v3330 = vpack.c.b16 %v3102, %v3090
  %v3331 = vpack.c.b16 %v3103, %v3091
  %v3332 = vpack.c.b16 %v3104, %v3092
  %v3333 = vpack.c.b16 %v3105, %v3093
  %v3334 = vpack.c.b16 %v3106, %v3094
  %v3335 = vpack.c.b16 %v3107, %v3095
  %v3336 = vpack.c.b16 %v3108, %v3096
  %v3337 = vpack.c.b16 %v3109, %v3097
  %v3338 = vpack.c.b16 %v3110, %v3098
  %v3339 = vpack.c.b16 %v3111, %v3099
  %v3340 = vpack.c.b16 %v3112, %v3100
  %v3341 = vpack.c.b16 %v3125, %v3113
  %v3342 = vpack.c.b16 %v3126, %v3114
  %v3343 = vpack.c.b16 %v3127, %v3115
  %v3344 = vpack.c.b16 %v3128, %v3116
  %v3345 = vpack.c.b16 %v3129, %v3117
  %v3346 = vpack.c.b16 %v3130, %v3118
  %v3347 = vpack.c.b16 %v3131, %v3119
  %v3348 = vpack.c.b16 %v3132, %v3120
  %v3349 = vpack.c.b16 %v3133, %v3121
  %v3350 = vpack.c.b16 %v3134, %v3122
  %v3351 = vpack.c.b16 %v3135, %v3123
  %v3352 = vpack.c.b16 %v3136, %v3124
  %v3353 = vpack.c.b16 %v3149, %v3137
  %v3354 = vpack.c.b16 %v3150, %v3138
  %v3355 = vpack.c.b16 %v3151, %v3139
  %v3356 = vpack.c.b16 %v3152, %v3140
  %v3357 = vpack.c.b16 %v3153, %v3141
  %v3358 = vpack.c.b16 %v3154, %v3142
  %v3359 = vpack.c.b16 %v3155, %v3143
  %v3360 = vpack.c.b16 %v3156, %v3144
  %v3361 = vpack.c.b16 %v3157, %v3145
  %v3362 = vpack.c.b16 %v3158, %v3146
  %v3363 = vpack.c.b16 %v3159, %v3147
  %v3364 = vpack.c.b16 %v3160, %v3148
  %v3365 = vpack.c.b16 %v3173, %v3161
  %v3366 = vpack.c.b16 %v3174, %v3162
  %v3367 = vpack.c.b16 %v3175, %v3163
  %v3368 = vpack.c.b16 %v3176, %v3164
  %v3369 = vpack.c.b16 %v3177, %v3165
  %v3370 = vpack.c.b16 %v3178, %v3166
  %v3371 = vpack.c.b16 %v3179, %v3167
  %v3372 = vpack.c.b16 %v3180, %v3168
  %v3373 = vpack.c.b16 %v3181, %v3169
  %v3374 = vpack.c.b16 %v3182, %v3170
  %v3375 = vpack.c.b16 %v3183, %v3171
  %v3376 = vpack.c.b16 %v3184, %v3172
  %3569 = vmatpush.bf16.msra.mxu0 %v2328
  %3570 = vmatpush.bf16.msra.mxu0 %v2327
  %3571 = vmatpush.bf16.msra.mxu0 %v2326
  %3572 = vmatpush.bf16.msra.mxu0 %v2325
  %3573 = vmatpush.bf16.msra.mxu0 %v2324
  %3574 = vmatpush.bf16.msra.mxu0 %v2323
  %3575 = vmatpush.bf16.msra.mxu0 %v2322
  %3576 = vmatpush.bf16.msra.mxu0 %v2321
  %3577 = vmatmul.bf16.gmra.mxu0 %v3185
  %v3578 = vpop.f32.mrf.mxu0
  %v3579 = vadd.f32 0.0, %v3578
  %v3580 = vpop.f32.mrf.mxu0
  %v3581 = vadd.f32 0.0, %v3580
  %3582 = vmatmul.bf16.gmra.mxu0 %v3197
  %v3583 = vpop.f32.mrf.mxu0
  %v3584 = vadd.f32 0.0, %v3583
  %v3585 = vpop.f32.mrf.mxu0
  %v3586 = vadd.f32 0.0, %v3585
  %3587 = vmatmul.bf16.gmra.mxu0 %v3209
  %v3588 = vpop.f32.mrf.mxu0
  %v3589 = vadd.f32 0.0, %v3588
  %v3590 = vpop.f32.mrf.mxu0
  %v3591 = vadd.f32 0.0, %v3590
  %3592 = vmatmul.bf16.gmra.mxu0 %v3221
  %v3593 = vpop.f32.mrf.mxu0
  %v3594 = vadd.f32 0.0, %v3593
  %v3595 = vpop.f32.mrf.mxu0
  %v3596 = vadd.f32 0.0, %v3595
  %3597 = vmatmul.bf16.gmra.mxu0 %v3233
  %v3598 = vpop.f32.mrf.mxu0
  %v3599 = vadd.f32 0.0, %v3598
  %v3600 = vpop.f32.mrf.mxu0
  %v3601 = vadd.f32 0.0, %v3600
  %3602 = vmatmul.bf16.gmra.mxu0 %v3245
  %v3603 = vpop.f32.mrf.mxu0
  %v3604 = vadd.f32 0.0, %v3603
  %v3605 = vpop.f32.mrf.mxu0
  %v3606 = vadd.f32 0.0, %v3605
  %3607 = vmatmul.bf16.gmra.mxu0 %v3257
  %v3608 = vpop.f32.mrf.mxu0
  %v3609 = vadd.f32 0.0, %v3608
  %v3610 = vpop.f32.mrf.mxu0
  %v3611 = vadd.f32 0.0, %v3610
  %3612 = vmatmul.bf16.gmra.mxu0 %v3269
  %v3613 = vpop.f32.mrf.mxu0
  %v3614 = vadd.f32 0.0, %v3613
  %v3615 = vpop.f32.mrf.mxu0
  %v3616 = vadd.f32 0.0, %v3615
  %3617 = vmatmul.bf16.gmra.mxu0 %v3281
  %v3618 = vpop.f32.mrf.mxu0
  %v3619 = vadd.f32 0.0, %v3618
  %v3620 = vpop.f32.mrf.mxu0
  %v3621 = vadd.f32 0.0, %v3620
  %3622 = vmatmul.bf16.gmra.mxu0 %v3293
  %v3623 = vpop.f32.mrf.mxu0
  %v3624 = vadd.f32 0.0, %v3623
  %v3625 = vpop.f32.mrf.mxu0
  %v3626 = vadd.f32 0.0, %v3625
  %3627 = vmatmul.bf16.gmra.mxu0 %v3305
  %v3628 = vpop.f32.mrf.mxu0
  %v3629 = vadd.f32 0.0, %v3628
  %v3630 = vpop.f32.mrf.mxu0
  %v3631 = vadd.f32 0.0, %v3630
  %3632 = vmatmul.bf16.gmra.mxu0 %v3317
  %v3633 = vpop.f32.mrf.mxu0
  %v3634 = vadd.f32 0.0, %v3633
  %v3635 = vpop.f32.mrf.mxu0
  %v3636 = vadd.f32 0.0, %v3635
  %3637 = vmatmul.bf16.gmra.mxu0 %v3329
  %v3638 = vpop.f32.mrf.mxu0
  %v3639 = vadd.f32 0.0, %v3638
  %v3640 = vpop.f32.mrf.mxu0
  %v3641 = vadd.f32 0.0, %v3640
  %3642 = vmatmul.bf16.gmra.mxu0 %v3341
  %v3643 = vpop.f32.mrf.mxu0
  %v3644 = vadd.f32 0.0, %v3643
  %v3645 = vpop.f32.mrf.mxu0
  %v3646 = vadd.f32 0.0, %v3645
  %3647 = vmatmul.bf16.gmra.mxu0 %v3353
  %v3648 = vpop.f32.mrf.mxu0
  %v3649 = vadd.f32 0.0, %v3648
  %v3650 = vpop.f32.mrf.mxu0
  %v3651 = vadd.f32 0.0, %v3650
  %3652 = vmatmul.bf16.gmra.mxu0 %v3365
  %v3653 = vpop.f32.mrf.mxu0
  %v3654 = vadd.f32 0.0, %v3653
  %v3655 = vpop.f32.mrf.mxu0
  %v3656 = vadd.f32 0.0, %v3655
  %3657 = vdwg.mxu0
  %3658 = vmatpush.bf16.msra.mxu0 %v2336
  %3659 = vmatpush.bf16.msra.mxu0 %v2335
  %3660 = vmatpush.bf16.msra.mxu0 %v2334
  %3661 = vmatpush.bf16.msra.mxu0 %v2333
  %3662 = vmatpush.bf16.msra.mxu0 %v2332
  %3663 = vmatpush.bf16.msra.mxu0 %v2331
  %3664 = vmatpush.bf16.msra.mxu0 %v2330
  %3665 = vmatpush.bf16.msra.mxu0 %v2329
  %3666 = vmatmul.bf16.gmra.mxu0 %v3186
  %v3667 = vpop.f32.mrf.mxu0
  %v3668 = vadd.f32 %v3579, %v3667
  %v3669 = vpop.f32.mrf.mxu0
  %v3670 = vadd.f32 %v3581, %v3669
  %3671 = vmatmul.bf16.gmra.mxu0 %v3198
  %v3672 = vpop.f32.mrf.mxu0
  %v3673 = vadd.f32 %v3584, %v3672
  %v3674 = vpop.f32.mrf.mxu0
  %v3675 = vadd.f32 %v3586, %v3674
  %3676 = vmatmul.bf16.gmra.mxu0 %v3210
  %v3677 = vpop.f32.mrf.mxu0
  %v3678 = vadd.f32 %v3589, %v3677
  %v3679 = vpop.f32.mrf.mxu0
  %v3680 = vadd.f32 %v3591, %v3679
  %3681 = vmatmul.bf16.gmra.mxu0 %v3222
  %v3682 = vpop.f32.mrf.mxu0
  %v3683 = vadd.f32 %v3594, %v3682
  %v3684 = vpop.f32.mrf.mxu0
  %v3685 = vadd.f32 %v3596, %v3684
  %3686 = vmatmul.bf16.gmra.mxu0 %v3234
  %v3687 = vpop.f32.mrf.mxu0
  %v3688 = vadd.f32 %v3599, %v3687
  %v3689 = vpop.f32.mrf.mxu0
  %v3690 = vadd.f32 %v3601, %v3689
  %3691 = vmatmul.bf16.gmra.mxu0 %v3246
  %v3692 = vpop.f32.mrf.mxu0
  %v3693 = vadd.f32 %v3604, %v3692
  %v3694 = vpop.f32.mrf.mxu0
  %v3695 = vadd.f32 %v3606, %v3694
  %3696 = vmatmul.bf16.gmra.mxu0 %v3258
  %v3697 = vpop.f32.mrf.mxu0
  %v3698 = vadd.f32 %v3609, %v3697
  %v3699 = vpop.f32.mrf.mxu0
  %v3700 = vadd.f32 %v3611, %v3699
  %3701 = vmatmul.bf16.gmra.mxu0 %v3270
  %v3702 = vpop.f32.mrf.mxu0
  %v3703 = vadd.f32 %v3614, %v3702
  %v3704 = vpop.f32.mrf.mxu0
  %v3705 = vadd.f32 %v3616, %v3704
  %3706 = vmatmul.bf16.gmra.mxu0 %v3282
  %v3707 = vpop.f32.mrf.mxu0
  %v3708 = vadd.f32 %v3619, %v3707
  %v3709 = vpop.f32.mrf.mxu0
  %v3710 = vadd.f32 %v3621, %v3709
  %3711 = vmatmul.bf16.gmra.mxu0 %v3294
  %v3712 = vpop.f32.mrf.mxu0
  %v3713 = vadd.f32 %v3624, %v3712
  %v3714 = vpop.f32.mrf.mxu0
  %v3715 = vadd.f32 %v3626, %v3714
  %3716 = vmatmul.bf16.gmra.mxu0 %v3306
  %v3717 = vpop.f32.mrf.mxu0
  %v3718 = vadd.f32 %v3629, %v3717
  %v3719 = vpop.f32.mrf.mxu0
  %v3720 = vadd.f32 %v3631, %v3719
  %3721 = vmatmul.bf16.gmra.mxu0 %v3318
  %v3722 = vpop.f32.mrf.mxu0
  %v3723 = vadd.f32 %v3634, %v3722
  %v3724 = vpop.f32.mrf.mxu0
  %v3725 = vadd.f32 %v3636, %v3724
  %3726 = vmatmul.bf16.gmra.mxu0 %v3330
  %v3727 = vpop.f32.mrf.mxu0
  %v3728 = vadd.f32 %v3639, %v3727
  %v3729 = vpop.f32.mrf.mxu0
  %v3730 = vadd.f32 %v3641, %v3729
  %3731 = vmatmul.bf16.gmra.mxu0 %v3342
  %v3732 = vpop.f32.mrf.mxu0
  %v3733 = vadd.f32 %v3644, %v3732
  %v3734 = vpop.f32.mrf.mxu0
  %v3735 = vadd.f32 %v3646, %v3734
  %3736 = vmatmul.bf16.gmra.mxu0 %v3354
  %v3737 = vpop.f32.mrf.mxu0
  %v3738 = vadd.f32 %v3649, %v3737
  %v3739 = vpop.f32.mrf.mxu0
  %v3740 = vadd.f32 %v3651, %v3739
  %3741 = vmatmul.bf16.gmra.mxu0 %v3366
  %v3742 = vpop.f32.mrf.mxu0
  %v3743 = vadd.f32 %v3654, %v3742
  %v3744 = vpop.f32.mrf.mxu0
  %v3745 = vadd.f32 %v3656, %v3744
  %3746 = vdwg.mxu0
  %3747 = vmatpush.bf16.msra.mxu0 %v2344
  %3748 = vmatpush.bf16.msra.mxu0 %v2343
  %3749 = vmatpush.bf16.msra.mxu0 %v2342
  %3750 = vmatpush.bf16.msra.mxu0 %v2341
  %3751 = vmatpush.bf16.msra.mxu0 %v2340
  %3752 = vmatpush.bf16.msra.mxu0 %v2339
  %3753 = vmatpush.bf16.msra.mxu0 %v2338
  %3754 = vmatpush.bf16.msra.mxu0 %v2337
  %3755 = vmatmul.bf16.gmra.mxu0 %v3187
  %v3756 = vpop.f32.mrf.mxu0
  %v3757 = vadd.f32 %v3668, %v3756
  %v3758 = vpop.f32.mrf.mxu0
  %v3759 = vadd.f32 %v3670, %v3758
  %3760 = vmatmul.bf16.gmra.mxu0 %v3199
  %v3761 = vpop.f32.mrf.mxu0
  %v3762 = vadd.f32 %v3673, %v3761
  %v3763 = vpop.f32.mrf.mxu0
  %v3764 = vadd.f32 %v3675, %v3763
  %3765 = vmatmul.bf16.gmra.mxu0 %v3211
  %v3766 = vpop.f32.mrf.mxu0
  %v3767 = vadd.f32 %v3678, %v3766
  %v3768 = vpop.f32.mrf.mxu0
  %v3769 = vadd.f32 %v3680, %v3768
  %3770 = vmatmul.bf16.gmra.mxu0 %v3223
  %v3771 = vpop.f32.mrf.mxu0
  %v3772 = vadd.f32 %v3683, %v3771
  %v3773 = vpop.f32.mrf.mxu0
  %v3774 = vadd.f32 %v3685, %v3773
  %3775 = vmatmul.bf16.gmra.mxu0 %v3235
  %v3776 = vpop.f32.mrf.mxu0
  %v3777 = vadd.f32 %v3688, %v3776
  %v3778 = vpop.f32.mrf.mxu0
  %v3779 = vadd.f32 %v3690, %v3778
  %3780 = vmatmul.bf16.gmra.mxu0 %v3247
  %v3781 = vpop.f32.mrf.mxu0
  %v3782 = vadd.f32 %v3693, %v3781
  %v3783 = vpop.f32.mrf.mxu0
  %v3784 = vadd.f32 %v3695, %v3783
  %3785 = vmatmul.bf16.gmra.mxu0 %v3259
  %v3786 = vpop.f32.mrf.mxu0
  %v3787 = vadd.f32 %v3698, %v3786
  %v3788 = vpop.f32.mrf.mxu0
  %v3789 = vadd.f32 %v3700, %v3788
  %3790 = vmatmul.bf16.gmra.mxu0 %v3271
  %v3791 = vpop.f32.mrf.mxu0
  %v3792 = vadd.f32 %v3703, %v3791
  %v3793 = vpop.f32.mrf.mxu0
  %v3794 = vadd.f32 %v3705, %v3793
  %3795 = vmatmul.bf16.gmra.mxu0 %v3283
  %v3796 = vpop.f32.mrf.mxu0
  %v3797 = vadd.f32 %v3708, %v3796
  %v3798 = vpop.f32.mrf.mxu0
  %v3799 = vadd.f32 %v3710, %v3798
  %3800 = vmatmul.bf16.gmra.mxu0 %v3295
  %v3801 = vpop.f32.mrf.mxu0
  %v3802 = vadd.f32 %v3713, %v3801
  %v3803 = vpop.f32.mrf.mxu0
  %v3804 = vadd.f32 %v3715, %v3803
  %3805 = vmatmul.bf16.gmra.mxu0 %v3307
  %v3806 = vpop.f32.mrf.mxu0
  %v3807 = vadd.f32 %v3718, %v3806
  %v3808 = vpop.f32.mrf.mxu0
  %v3809 = vadd.f32 %v3720, %v3808
  %3810 = vmatmul.bf16.gmra.mxu0 %v3319
  %v3811 = vpop.f32.mrf.mxu0
  %v3812 = vadd.f32 %v3723, %v3811
  %v3813 = vpop.f32.mrf.mxu0
  %v3814 = vadd.f32 %v3725, %v3813
  %3815 = vmatmul.bf16.gmra.mxu0 %v3331
  %v3816 = vpop.f32.mrf.mxu0
  %v3817 = vadd.f32 %v3728, %v3816
  %v3818 = vpop.f32.mrf.mxu0
  %v3819 = vadd.f32 %v3730, %v3818
  %3820 = vmatmul.bf16.gmra.mxu0 %v3343
  %v3821 = vpop.f32.mrf.mxu0
  %v3822 = vadd.f32 %v3733, %v3821
  %v3823 = vpop.f32.mrf.mxu0
  %v3824 = vadd.f32 %v3735, %v3823
  %3825 = vmatmul.bf16.gmra.mxu0 %v3355
  %v3826 = vpop.f32.mrf.mxu0
  %v3827 = vadd.f32 %v3738, %v3826
  %v3828 = vpop.f32.mrf.mxu0
  %v3829 = vadd.f32 %v3740, %v3828
  %3830 = vmatmul.bf16.gmra.mxu0 %v3367
  %v3831 = vpop.f32.mrf.mxu0
  %v3832 = vadd.f32 %v3743, %v3831
  %v3833 = vpop.f32.mrf.mxu0
  %v3834 = vadd.f32 %v3745, %v3833
  %3835 = vdwg.mxu0
  %3836 = vmatpush.bf16.msra.mxu0 %v2352
  %3837 = vmatpush.bf16.msra.mxu0 %v2351
  %3838 = vmatpush.bf16.msra.mxu0 %v2350
  %3839 = vmatpush.bf16.msra.mxu0 %v2349
  %3840 = vmatpush.bf16.msra.mxu0 %v2348
  %3841 = vmatpush.bf16.msra.mxu0 %v2347
  %3842 = vmatpush.bf16.msra.mxu0 %v2346
  %3843 = vmatpush.bf16.msra.mxu0 %v2345
  %3844 = vmatmul.bf16.gmra.mxu0 %v3188
  %v3845 = vpop.f32.mrf.mxu0
  %v3846 = vadd.f32 %v3757, %v3845
  %v3847 = vpop.f32.mrf.mxu0
  %v3848 = vadd.f32 %v3759, %v3847
  %3849 = vmatmul.bf16.gmra.mxu0 %v3200
  %v3850 = vpop.f32.mrf.mxu0
  %v3851 = vadd.f32 %v3762, %v3850
  %v3852 = vpop.f32.mrf.mxu0
  %v3853 = vadd.f32 %v3764, %v3852
  %3854 = vmatmul.bf16.gmra.mxu0 %v3212
  %v3855 = vpop.f32.mrf.mxu0
  %v3856 = vadd.f32 %v3767, %v3855
  %v3857 = vpop.f32.mrf.mxu0
  %v3858 = vadd.f32 %v3769, %v3857
  %3859 = vmatmul.bf16.gmra.mxu0 %v3224
  %v3860 = vpop.f32.mrf.mxu0
  %v3861 = vadd.f32 %v3772, %v3860
  %v3862 = vpop.f32.mrf.mxu0
  %v3863 = vadd.f32 %v3774, %v3862
  %3864 = vmatmul.bf16.gmra.mxu0 %v3236
  %v3865 = vpop.f32.mrf.mxu0
  %v3866 = vadd.f32 %v3777, %v3865
  %v3867 = vpop.f32.mrf.mxu0
  %v3868 = vadd.f32 %v3779, %v3867
  %3869 = vmatmul.bf16.gmra.mxu0 %v3248
  %v3870 = vpop.f32.mrf.mxu0
  %v3871 = vadd.f32 %v3782, %v3870
  %v3872 = vpop.f32.mrf.mxu0
  %v3873 = vadd.f32 %v3784, %v3872
  %3874 = vmatmul.bf16.gmra.mxu0 %v3260
  %v3875 = vpop.f32.mrf.mxu0
  %v3876 = vadd.f32 %v3787, %v3875
  %v3877 = vpop.f32.mrf.mxu0
  %v3878 = vadd.f32 %v3789, %v3877
  %3879 = vmatmul.bf16.gmra.mxu0 %v3272
  %v3880 = vpop.f32.mrf.mxu0
  %v3881 = vadd.f32 %v3792, %v3880
  %v3882 = vpop.f32.mrf.mxu0
  %v3883 = vadd.f32 %v3794, %v3882
  %3884 = vmatmul.bf16.gmra.mxu0 %v3284
  %v3885 = vpop.f32.mrf.mxu0
  %v3886 = vadd.f32 %v3797, %v3885
  %v3887 = vpop.f32.mrf.mxu0
  %v3888 = vadd.f32 %v3799, %v3887
  %3889 = vmatmul.bf16.gmra.mxu0 %v3296
  %v3890 = vpop.f32.mrf.mxu0
  %v3891 = vadd.f32 %v3802, %v3890
  %v3892 = vpop.f32.mrf.mxu0
  %v3893 = vadd.f32 %v3804, %v3892
  %3894 = vmatmul.bf16.gmra.mxu0 %v3308
  %v3895 = vpop.f32.mrf.mxu0
  %v3896 = vadd.f32 %v3807, %v3895
  %v3897 = vpop.f32.mrf.mxu0
  %v3898 = vadd.f32 %v3809, %v3897
  %3899 = vmatmul.bf16.gmra.mxu0 %v3320
  %v3900 = vpop.f32.mrf.mxu0
  %v3901 = vadd.f32 %v3812, %v3900
  %v3902 = vpop.f32.mrf.mxu0
  %v3903 = vadd.f32 %v3814, %v3902
  %3904 = vmatmul.bf16.gmra.mxu0 %v3332
  %v3905 = vpop.f32.mrf.mxu0
  %v3906 = vadd.f32 %v3817, %v3905
  %v3907 = vpop.f32.mrf.mxu0
  %v3908 = vadd.f32 %v3819, %v3907
  %3909 = vmatmul.bf16.gmra.mxu0 %v3344
  %v3910 = vpop.f32.mrf.mxu0
  %v3911 = vadd.f32 %v3822, %v3910
  %v3912 = vpop.f32.mrf.mxu0
  %v3913 = vadd.f32 %v3824, %v3912
  %3914 = vmatmul.bf16.gmra.mxu0 %v3356
  %v3915 = vpop.f32.mrf.mxu0
  %v3916 = vadd.f32 %v3827, %v3915
  %v3917 = vpop.f32.mrf.mxu0
  %v3918 = vadd.f32 %v3829, %v3917
  %3919 = vmatmul.bf16.gmra.mxu0 %v3368
  %v3920 = vpop.f32.mrf.mxu0
  %v3921 = vadd.f32 %v3832, %v3920
  %v3922 = vpop.f32.mrf.mxu0
  %v3923 = vadd.f32 %v3834, %v3922
  %3924 = vdwg.mxu0
  %3925 = vmatpush.bf16.msra.mxu0 %v2360
  %3926 = vmatpush.bf16.msra.mxu0 %v2359
  %3927 = vmatpush.bf16.msra.mxu0 %v2358
  %3928 = vmatpush.bf16.msra.mxu0 %v2357
  %3929 = vmatpush.bf16.msra.mxu0 %v2356
  %3930 = vmatpush.bf16.msra.mxu0 %v2355
  %3931 = vmatpush.bf16.msra.mxu0 %v2354
  %3932 = vmatpush.bf16.msra.mxu0 %v2353
  %3933 = vmatmul.bf16.gmra.mxu0 %v3189
  %v3934 = vpop.f32.mrf.mxu0
  %v3935 = vadd.f32 %v3846, %v3934
  %v3936 = vpop.f32.mrf.mxu0
  %v3937 = vadd.f32 %v3848, %v3936
  %3938 = vmatmul.bf16.gmra.mxu0 %v3201
  %v3939 = vpop.f32.mrf.mxu0
  %v3940 = vadd.f32 %v3851, %v3939
  %v3941 = vpop.f32.mrf.mxu0
  %v3942 = vadd.f32 %v3853, %v3941
  %3943 = vmatmul.bf16.gmra.mxu0 %v3213
  %v3944 = vpop.f32.mrf.mxu0
  %v3945 = vadd.f32 %v3856, %v3944
  %v3946 = vpop.f32.mrf.mxu0
  %v3947 = vadd.f32 %v3858, %v3946
  %3948 = vmatmul.bf16.gmra.mxu0 %v3225
  %v3949 = vpop.f32.mrf.mxu0
  %v3950 = vadd.f32 %v3861, %v3949
  %v3951 = vpop.f32.mrf.mxu0
  %v3952 = vadd.f32 %v3863, %v3951
  %3953 = vmatmul.bf16.gmra.mxu0 %v3237
  %v3954 = vpop.f32.mrf.mxu0
  %v3955 = vadd.f32 %v3866, %v3954
  %v3956 = vpop.f32.mrf.mxu0
  %v3957 = vadd.f32 %v3868, %v3956
  %3958 = vmatmul.bf16.gmra.mxu0 %v3249
  %v3959 = vpop.f32.mrf.mxu0
  %v3960 = vadd.f32 %v3871, %v3959
  %v3961 = vpop.f32.mrf.mxu0
  %v3962 = vadd.f32 %v3873, %v3961
  %3963 = vmatmul.bf16.gmra.mxu0 %v3261
  %v3964 = vpop.f32.mrf.mxu0
  %v3965 = vadd.f32 %v3876, %v3964
  %v3966 = vpop.f32.mrf.mxu0
  %v3967 = vadd.f32 %v3878, %v3966
  %3968 = vmatmul.bf16.gmra.mxu0 %v3273
  %v3969 = vpop.f32.mrf.mxu0
  %v3970 = vadd.f32 %v3881, %v3969
  %v3971 = vpop.f32.mrf.mxu0
  %v3972 = vadd.f32 %v3883, %v3971
  %3973 = vmatmul.bf16.gmra.mxu0 %v3285
  %v3974 = vpop.f32.mrf.mxu0
  %v3975 = vadd.f32 %v3886, %v3974
  %v3976 = vpop.f32.mrf.mxu0
  %v3977 = vadd.f32 %v3888, %v3976
  %3978 = vmatmul.bf16.gmra.mxu0 %v3297
  %v3979 = vpop.f32.mrf.mxu0
  %v3980 = vadd.f32 %v3891, %v3979
  %v3981 = vpop.f32.mrf.mxu0
  %v3982 = vadd.f32 %v3893, %v3981
  %3983 = vmatmul.bf16.gmra.mxu0 %v3309
  %v3984 = vpop.f32.mrf.mxu0
  %v3985 = vadd.f32 %v3896, %v3984
  %v3986 = vpop.f32.mrf.mxu0
  %v3987 = vadd.f32 %v3898, %v3986
  %3988 = vmatmul.bf16.gmra.mxu0 %v3321
  %v3989 = vpop.f32.mrf.mxu0
  %v3990 = vadd.f32 %v3901, %v3989
  %v3991 = vpop.f32.mrf.mxu0
  %v3992 = vadd.f32 %v3903, %v3991
  %3993 = vmatmul.bf16.gmra.mxu0 %v3333
  %v3994 = vpop.f32.mrf.mxu0
  %v3995 = vadd.f32 %v3906, %v3994
  %v3996 = vpop.f32.mrf.mxu0
  %v3997 = vadd.f32 %v3908, %v3996
  %3998 = vmatmul.bf16.gmra.mxu0 %v3345
  %v3999 = vpop.f32.mrf.mxu0
  %v4000 = vadd.f32 %v3911, %v3999
  %v4001 = vpop.f32.mrf.mxu0
  %v4002 = vadd.f32 %v3913, %v4001
  %4003 = vmatmul.bf16.gmra.mxu0 %v3357
  %v4004 = vpop.f32.mrf.mxu0
  %v4005 = vadd.f32 %v3916, %v4004
  %v4006 = vpop.f32.mrf.mxu0
  %v4007 = vadd.f32 %v3918, %v4006
  %4008 = vmatmul.bf16.gmra.mxu0 %v3369
  %v4009 = vpop.f32.mrf.mxu0
  %v4010 = vadd.f32 %v3921, %v4009
  %v4011 = vpop.f32.mrf.mxu0
  %v4012 = vadd.f32 %v3923, %v4011
  %4013 = vdwg.mxu0
  %4014 = vmatpush.bf16.msra.mxu0 %v2368
  %4015 = vmatpush.bf16.msra.mxu0 %v2367
  %4016 = vmatpush.bf16.msra.mxu0 %v2366
  %4017 = vmatpush.bf16.msra.mxu0 %v2365
  %4018 = vmatpush.bf16.msra.mxu0 %v2364
  %4019 = vmatpush.bf16.msra.mxu0 %v2363
  %4020 = vmatpush.bf16.msra.mxu0 %v2362
  %4021 = vmatpush.bf16.msra.mxu0 %v2361
  %4022 = vmatmul.bf16.gmra.mxu0 %v3190
  %v4023 = vpop.f32.mrf.mxu0
  %v4024 = vadd.f32 %v3935, %v4023
  %v4025 = vpop.f32.mrf.mxu0
  %v4026 = vadd.f32 %v3937, %v4025
  %4027 = vmatmul.bf16.gmra.mxu0 %v3202
  %v4028 = vpop.f32.mrf.mxu0
  %v4029 = vadd.f32 %v3940, %v4028
  %v4030 = vpop.f32.mrf.mxu0
  %v4031 = vadd.f32 %v3942, %v4030
  %4032 = vmatmul.bf16.gmra.mxu0 %v3214
  %v4033 = vpop.f32.mrf.mxu0
  %v4034 = vadd.f32 %v3945, %v4033
  %v4035 = vpop.f32.mrf.mxu0
  %v4036 = vadd.f32 %v3947, %v4035
  %4037 = vmatmul.bf16.gmra.mxu0 %v3226
  %v4038 = vpop.f32.mrf.mxu0
  %v4039 = vadd.f32 %v3950, %v4038
  %v4040 = vpop.f32.mrf.mxu0
  %v4041 = vadd.f32 %v3952, %v4040
  %4042 = vmatmul.bf16.gmra.mxu0 %v3238
  %v4043 = vpop.f32.mrf.mxu0
  %v4044 = vadd.f32 %v3955, %v4043
  %v4045 = vpop.f32.mrf.mxu0
  %v4046 = vadd.f32 %v3957, %v4045
  %4047 = vmatmul.bf16.gmra.mxu0 %v3250
  %v4048 = vpop.f32.mrf.mxu0
  %v4049 = vadd.f32 %v3960, %v4048
  %v4050 = vpop.f32.mrf.mxu0
  %v4051 = vadd.f32 %v3962, %v4050
  %4052 = vmatmul.bf16.gmra.mxu0 %v3262
  %v4053 = vpop.f32.mrf.mxu0
  %v4054 = vadd.f32 %v3965, %v4053
  %v4055 = vpop.f32.mrf.mxu0
  %v4056 = vadd.f32 %v3967, %v4055
  %4057 = vmatmul.bf16.gmra.mxu0 %v3274
  %v4058 = vpop.f32.mrf.mxu0
  %v4059 = vadd.f32 %v3970, %v4058
  %v4060 = vpop.f32.mrf.mxu0
  %v4061 = vadd.f32 %v3972, %v4060
  %4062 = vmatmul.bf16.gmra.mxu0 %v3286
  %v4063 = vpop.f32.mrf.mxu0
  %v4064 = vadd.f32 %v3975, %v4063
  %v4065 = vpop.f32.mrf.mxu0
  %v4066 = vadd.f32 %v3977, %v4065
  %4067 = vmatmul.bf16.gmra.mxu0 %v3298
  %v4068 = vpop.f32.mrf.mxu0
  %v4069 = vadd.f32 %v3980, %v4068
  %v4070 = vpop.f32.mrf.mxu0
  %v4071 = vadd.f32 %v3982, %v4070
  %4072 = vmatmul.bf16.gmra.mxu0 %v3310
  %v4073 = vpop.f32.mrf.mxu0
  %v4074 = vadd.f32 %v3985, %v4073
  %v4075 = vpop.f32.mrf.mxu0
  %v4076 = vadd.f32 %v3987, %v4075
  %4077 = vmatmul.bf16.gmra.mxu0 %v3322
  %v4078 = vpop.f32.mrf.mxu0
  %v4079 = vadd.f32 %v3990, %v4078
  %v4080 = vpop.f32.mrf.mxu0
  %v4081 = vadd.f32 %v3992, %v4080
  %4082 = vmatmul.bf16.gmra.mxu0 %v3334
  %v4083 = vpop.f32.mrf.mxu0
  %v4084 = vadd.f32 %v3995, %v4083
  %v4085 = vpop.f32.mrf.mxu0
  %v4086 = vadd.f32 %v3997, %v4085
  %4087 = vmatmul.bf16.gmra.mxu0 %v3346
  %v4088 = vpop.f32.mrf.mxu0
  %v4089 = vadd.f32 %v4000, %v4088
  %v4090 = vpop.f32.mrf.mxu0
  %v4091 = vadd.f32 %v4002, %v4090
  %4092 = vmatmul.bf16.gmra.mxu0 %v3358
  %v4093 = vpop.f32.mrf.mxu0
  %v4094 = vadd.f32 %v4005, %v4093
  %v4095 = vpop.f32.mrf.mxu0
  %v4096 = vadd.f32 %v4007, %v4095
  %4097 = vmatmul.bf16.gmra.mxu0 %v3370
  %v4098 = vpop.f32.mrf.mxu0
  %v4099 = vadd.f32 %v4010, %v4098
  %v4100 = vpop.f32.mrf.mxu0
  %v4101 = vadd.f32 %v4012, %v4100
  %4102 = vdwg.mxu0
  %4103 = vmatpush.bf16.msra.mxu0 %v2376
  %4104 = vmatpush.bf16.msra.mxu0 %v2375
  %4105 = vmatpush.bf16.msra.mxu0 %v2374
  %4106 = vmatpush.bf16.msra.mxu0 %v2373
  %4107 = vmatpush.bf16.msra.mxu0 %v2372
  %4108 = vmatpush.bf16.msra.mxu0 %v2371
  %4109 = vmatpush.bf16.msra.mxu0 %v2370
  %4110 = vmatpush.bf16.msra.mxu0 %v2369
  %4111 = vmatmul.bf16.gmra.mxu0 %v3191
  %v4112 = vpop.f32.mrf.mxu0
  %v4113 = vadd.f32 %v4024, %v4112
  %v4114 = vpop.f32.mrf.mxu0
  %v4115 = vadd.f32 %v4026, %v4114
  %4116 = vmatmul.bf16.gmra.mxu0 %v3203
  %v4117 = vpop.f32.mrf.mxu0
  %v4118 = vadd.f32 %v4029, %v4117
  %v4119 = vpop.f32.mrf.mxu0
  %v4120 = vadd.f32 %v4031, %v4119
  %4121 = vmatmul.bf16.gmra.mxu0 %v3215
  %v4122 = vpop.f32.mrf.mxu0
  %v4123 = vadd.f32 %v4034, %v4122
  %v4124 = vpop.f32.mrf.mxu0
  %v4125 = vadd.f32 %v4036, %v4124
  %4126 = vmatmul.bf16.gmra.mxu0 %v3227
  %v4127 = vpop.f32.mrf.mxu0
  %v4128 = vadd.f32 %v4039, %v4127
  %v4129 = vpop.f32.mrf.mxu0
  %v4130 = vadd.f32 %v4041, %v4129
  %4131 = vmatmul.bf16.gmra.mxu0 %v3239
  %v4132 = vpop.f32.mrf.mxu0
  %v4133 = vadd.f32 %v4044, %v4132
  %v4134 = vpop.f32.mrf.mxu0
  %v4135 = vadd.f32 %v4046, %v4134
  %4136 = vmatmul.bf16.gmra.mxu0 %v3251
  %v4137 = vpop.f32.mrf.mxu0
  %v4138 = vadd.f32 %v4049, %v4137
  %v4139 = vpop.f32.mrf.mxu0
  %v4140 = vadd.f32 %v4051, %v4139
  %4141 = vmatmul.bf16.gmra.mxu0 %v3263
  %v4142 = vpop.f32.mrf.mxu0
  %v4143 = vadd.f32 %v4054, %v4142
  %v4144 = vpop.f32.mrf.mxu0
  %v4145 = vadd.f32 %v4056, %v4144
  %4146 = vmatmul.bf16.gmra.mxu0 %v3275
  %v4147 = vpop.f32.mrf.mxu0
  %v4148 = vadd.f32 %v4059, %v4147
  %v4149 = vpop.f32.mrf.mxu0
  %v4150 = vadd.f32 %v4061, %v4149
  %4151 = vmatmul.bf16.gmra.mxu0 %v3287
  %v4152 = vpop.f32.mrf.mxu0
  %v4153 = vadd.f32 %v4064, %v4152
  %v4154 = vpop.f32.mrf.mxu0
  %v4155 = vadd.f32 %v4066, %v4154
  %4156 = vmatmul.bf16.gmra.mxu0 %v3299
  %v4157 = vpop.f32.mrf.mxu0
  %v4158 = vadd.f32 %v4069, %v4157
  %v4159 = vpop.f32.mrf.mxu0
  %v4160 = vadd.f32 %v4071, %v4159
  %4161 = vmatmul.bf16.gmra.mxu0 %v3311
  %v4162 = vpop.f32.mrf.mxu0
  %v4163 = vadd.f32 %v4074, %v4162
  %v4164 = vpop.f32.mrf.mxu0
  %v4165 = vadd.f32 %v4076, %v4164
  %4166 = vmatmul.bf16.gmra.mxu0 %v3323
  %v4167 = vpop.f32.mrf.mxu0
  %v4168 = vadd.f32 %v4079, %v4167
  %v4169 = vpop.f32.mrf.mxu0
  %v4170 = vadd.f32 %v4081, %v4169
  %4171 = vmatmul.bf16.gmra.mxu0 %v3335
  %v4172 = vpop.f32.mrf.mxu0
  %v4173 = vadd.f32 %v4084, %v4172
  %v4174 = vpop.f32.mrf.mxu0
  %v4175 = vadd.f32 %v4086, %v4174
  %4176 = vmatmul.bf16.gmra.mxu0 %v3347
  %v4177 = vpop.f32.mrf.mxu0
  %v4178 = vadd.f32 %v4089, %v4177
  %v4179 = vpop.f32.mrf.mxu0
  %v4180 = vadd.f32 %v4091, %v4179
  %4181 = vmatmul.bf16.gmra.mxu0 %v3359
  %v4182 = vpop.f32.mrf.mxu0
  %v4183 = vadd.f32 %v4094, %v4182
  %v4184 = vpop.f32.mrf.mxu0
  %v4185 = vadd.f32 %v4096, %v4184
  %4186 = vmatmul.bf16.gmra.mxu0 %v3371
  %v4187 = vpop.f32.mrf.mxu0
  %v4188 = vadd.f32 %v4099, %v4187
  %v4189 = vpop.f32.mrf.mxu0
  %v4190 = vadd.f32 %v4101, %v4189
  %4191 = vdwg.mxu0
  %4192 = vmatpush.bf16.msra.mxu0 %v2384
  %4193 = vmatpush.bf16.msra.mxu0 %v2383
  %4194 = vmatpush.bf16.msra.mxu0 %v2382
  %4195 = vmatpush.bf16.msra.mxu0 %v2381
  %4196 = vmatpush.bf16.msra.mxu0 %v2380
  %4197 = vmatpush.bf16.msra.mxu0 %v2379
  %4198 = vmatpush.bf16.msra.mxu0 %v2378
  %4199 = vmatpush.bf16.msra.mxu0 %v2377
  %4200 = vmatmul.bf16.gmra.mxu0 %v3192
  %v4201 = vpop.f32.mrf.mxu0
  %v4202 = vadd.f32 %v4113, %v4201
  %v4203 = vpop.f32.mrf.mxu0
  %v4204 = vadd.f32 %v4115, %v4203
  %4205 = vmatmul.bf16.gmra.mxu0 %v3204
  %v4206 = vpop.f32.mrf.mxu0
  %v4207 = vadd.f32 %v4118, %v4206
  %v4208 = vpop.f32.mrf.mxu0
  %v4209 = vadd.f32 %v4120, %v4208
  %4210 = vmatmul.bf16.gmra.mxu0 %v3216
  %v4211 = vpop.f32.mrf.mxu0
  %v4212 = vadd.f32 %v4123, %v4211
  %v4213 = vpop.f32.mrf.mxu0
  %v4214 = vadd.f32 %v4125, %v4213
  %4215 = vmatmul.bf16.gmra.mxu0 %v3228
  %v4216 = vpop.f32.mrf.mxu0
  %v4217 = vadd.f32 %v4128, %v4216
  %v4218 = vpop.f32.mrf.mxu0
  %v4219 = vadd.f32 %v4130, %v4218
  %4220 = vmatmul.bf16.gmra.mxu0 %v3240
  %v4221 = vpop.f32.mrf.mxu0
  %v4222 = vadd.f32 %v4133, %v4221
  %v4223 = vpop.f32.mrf.mxu0
  %v4224 = vadd.f32 %v4135, %v4223
  %4225 = vmatmul.bf16.gmra.mxu0 %v3252
  %v4226 = vpop.f32.mrf.mxu0
  %v4227 = vadd.f32 %v4138, %v4226
  %v4228 = vpop.f32.mrf.mxu0
  %v4229 = vadd.f32 %v4140, %v4228
  %4230 = vmatmul.bf16.gmra.mxu0 %v3264
  %v4231 = vpop.f32.mrf.mxu0
  %v4232 = vadd.f32 %v4143, %v4231
  %v4233 = vpop.f32.mrf.mxu0
  %v4234 = vadd.f32 %v4145, %v4233
  %4235 = vmatmul.bf16.gmra.mxu0 %v3276
  %v4236 = vpop.f32.mrf.mxu0
  %v4237 = vadd.f32 %v4148, %v4236
  %v4238 = vpop.f32.mrf.mxu0
  %v4239 = vadd.f32 %v4150, %v4238
  %4240 = vmatmul.bf16.gmra.mxu0 %v3288
  %v4241 = vpop.f32.mrf.mxu0
  %v4242 = vadd.f32 %v4153, %v4241
  %v4243 = vpop.f32.mrf.mxu0
  %v4244 = vadd.f32 %v4155, %v4243
  %4245 = vmatmul.bf16.gmra.mxu0 %v3300
  %v4246 = vpop.f32.mrf.mxu0
  %v4247 = vadd.f32 %v4158, %v4246
  %v4248 = vpop.f32.mrf.mxu0
  %v4249 = vadd.f32 %v4160, %v4248
  %4250 = vmatmul.bf16.gmra.mxu0 %v3312
  %v4251 = vpop.f32.mrf.mxu0
  %v4252 = vadd.f32 %v4163, %v4251
  %v4253 = vpop.f32.mrf.mxu0
  %v4254 = vadd.f32 %v4165, %v4253
  %4255 = vmatmul.bf16.gmra.mxu0 %v3324
  %v4256 = vpop.f32.mrf.mxu0
  %v4257 = vadd.f32 %v4168, %v4256
  %v4258 = vpop.f32.mrf.mxu0
  %v4259 = vadd.f32 %v4170, %v4258
  %4260 = vmatmul.bf16.gmra.mxu0 %v3336
  %v4261 = vpop.f32.mrf.mxu0
  %v4262 = vadd.f32 %v4173, %v4261
  %v4263 = vpop.f32.mrf.mxu0
  %v4264 = vadd.f32 %v4175, %v4263
  %4265 = vmatmul.bf16.gmra.mxu0 %v3348
  %v4266 = vpop.f32.mrf.mxu0
  %v4267 = vadd.f32 %v4178, %v4266
  %v4268 = vpop.f32.mrf.mxu0
  %v4269 = vadd.f32 %v4180, %v4268
  %4270 = vmatmul.bf16.gmra.mxu0 %v3360
  %v4271 = vpop.f32.mrf.mxu0
  %v4272 = vadd.f32 %v4183, %v4271
  %v4273 = vpop.f32.mrf.mxu0
  %v4274 = vadd.f32 %v4185, %v4273
  %4275 = vmatmul.bf16.gmra.mxu0 %v3372
  %v4276 = vpop.f32.mrf.mxu0
  %v4277 = vadd.f32 %v4188, %v4276
  %v4278 = vpop.f32.mrf.mxu0
  %v4279 = vadd.f32 %v4190, %v4278
  %4280 = vdwg.mxu0
  %4281 = vmatpush.bf16.msra.mxu0 %v2392
  %4282 = vmatpush.bf16.msra.mxu0 %v2391
  %4283 = vmatpush.bf16.msra.mxu0 %v2390
  %4284 = vmatpush.bf16.msra.mxu0 %v2389
  %4285 = vmatpush.bf16.msra.mxu0 %v2388
  %4286 = vmatpush.bf16.msra.mxu0 %v2387
  %4287 = vmatpush.bf16.msra.mxu0 %v2386
  %4288 = vmatpush.bf16.msra.mxu0 %v2385
  %4289 = vmatmul.bf16.gmra.mxu0 %v3193
  %v4290 = vpop.f32.mrf.mxu0
  %v4291 = vadd.f32 %v4202, %v4290
  %v4292 = vpop.f32.mrf.mxu0
  %v4293 = vadd.f32 %v4204, %v4292
  %4294 = vmatmul.bf16.gmra.mxu0 %v3205
  %v4295 = vpop.f32.mrf.mxu0
  %v4296 = vadd.f32 %v4207, %v4295
  %v4297 = vpop.f32.mrf.mxu0
  %v4298 = vadd.f32 %v4209, %v4297
  %4299 = vmatmul.bf16.gmra.mxu0 %v3217
  %v4300 = vpop.f32.mrf.mxu0
  %v4301 = vadd.f32 %v4212, %v4300
  %v4302 = vpop.f32.mrf.mxu0
  %v4303 = vadd.f32 %v4214, %v4302
  %4304 = vmatmul.bf16.gmra.mxu0 %v3229
  %v4305 = vpop.f32.mrf.mxu0
  %v4306 = vadd.f32 %v4217, %v4305
  %v4307 = vpop.f32.mrf.mxu0
  %v4308 = vadd.f32 %v4219, %v4307
  %4309 = vmatmul.bf16.gmra.mxu0 %v3241
  %v4310 = vpop.f32.mrf.mxu0
  %v4311 = vadd.f32 %v4222, %v4310
  %v4312 = vpop.f32.mrf.mxu0
  %v4313 = vadd.f32 %v4224, %v4312
  %4314 = vmatmul.bf16.gmra.mxu0 %v3253
  %v4315 = vpop.f32.mrf.mxu0
  %v4316 = vadd.f32 %v4227, %v4315
  %v4317 = vpop.f32.mrf.mxu0
  %v4318 = vadd.f32 %v4229, %v4317
  %4319 = vmatmul.bf16.gmra.mxu0 %v3265
  %v4320 = vpop.f32.mrf.mxu0
  %v4321 = vadd.f32 %v4232, %v4320
  %v4322 = vpop.f32.mrf.mxu0
  %v4323 = vadd.f32 %v4234, %v4322
  %4324 = vmatmul.bf16.gmra.mxu0 %v3277
  %v4325 = vpop.f32.mrf.mxu0
  %v4326 = vadd.f32 %v4237, %v4325
  %v4327 = vpop.f32.mrf.mxu0
  %v4328 = vadd.f32 %v4239, %v4327
  %4329 = vmatmul.bf16.gmra.mxu0 %v3289
  %v4330 = vpop.f32.mrf.mxu0
  %v4331 = vadd.f32 %v4242, %v4330
  %v4332 = vpop.f32.mrf.mxu0
  %v4333 = vadd.f32 %v4244, %v4332
  %4334 = vmatmul.bf16.gmra.mxu0 %v3301
  %v4335 = vpop.f32.mrf.mxu0
  %v4336 = vadd.f32 %v4247, %v4335
  %v4337 = vpop.f32.mrf.mxu0
  %v4338 = vadd.f32 %v4249, %v4337
  %4339 = vmatmul.bf16.gmra.mxu0 %v3313
  %v4340 = vpop.f32.mrf.mxu0
  %v4341 = vadd.f32 %v4252, %v4340
  %v4342 = vpop.f32.mrf.mxu0
  %v4343 = vadd.f32 %v4254, %v4342
  %4344 = vmatmul.bf16.gmra.mxu0 %v3325
  %v4345 = vpop.f32.mrf.mxu0
  %v4346 = vadd.f32 %v4257, %v4345
  %v4347 = vpop.f32.mrf.mxu0
  %v4348 = vadd.f32 %v4259, %v4347
  %4349 = vmatmul.bf16.gmra.mxu0 %v3337
  %v4350 = vpop.f32.mrf.mxu0
  %v4351 = vadd.f32 %v4262, %v4350
  %v4352 = vpop.f32.mrf.mxu0
  %v4353 = vadd.f32 %v4264, %v4352
  %4354 = vmatmul.bf16.gmra.mxu0 %v3349
  %v4355 = vpop.f32.mrf.mxu0
  %v4356 = vadd.f32 %v4267, %v4355
  %v4357 = vpop.f32.mrf.mxu0
  %v4358 = vadd.f32 %v4269, %v4357
  %4359 = vmatmul.bf16.gmra.mxu0 %v3361
  %v4360 = vpop.f32.mrf.mxu0
  %v4361 = vadd.f32 %v4272, %v4360
  %v4362 = vpop.f32.mrf.mxu0
  %v4363 = vadd.f32 %v4274, %v4362
  %4364 = vmatmul.bf16.gmra.mxu0 %v3373
  %v4365 = vpop.f32.mrf.mxu0
  %v4366 = vadd.f32 %v4277, %v4365
  %v4367 = vpop.f32.mrf.mxu0
  %v4368 = vadd.f32 %v4279, %v4367
  %4369 = vdwg.mxu0
  %4370 = vmatpush.bf16.msra.mxu0 %v2400
  %4371 = vmatpush.bf16.msra.mxu0 %v2399
  %4372 = vmatpush.bf16.msra.mxu0 %v2398
  %4373 = vmatpush.bf16.msra.mxu0 %v2397
  %4374 = vmatpush.bf16.msra.mxu0 %v2396
  %4375 = vmatpush.bf16.msra.mxu0 %v2395
  %4376 = vmatpush.bf16.msra.mxu0 %v2394
  %4377 = vmatpush.bf16.msra.mxu0 %v2393
  %4378 = vmatmul.bf16.gmra.mxu0 %v3194
  %v4379 = vpop.f32.mrf.mxu0
  %v4380 = vadd.f32 %v4291, %v4379
  %v4381 = vpop.f32.mrf.mxu0
  %v4382 = vadd.f32 %v4293, %v4381
  %4383 = vmatmul.bf16.gmra.mxu0 %v3206
  %v4384 = vpop.f32.mrf.mxu0
  %v4385 = vadd.f32 %v4296, %v4384
  %v4386 = vpop.f32.mrf.mxu0
  %v4387 = vadd.f32 %v4298, %v4386
  %4388 = vmatmul.bf16.gmra.mxu0 %v3218
  %v4389 = vpop.f32.mrf.mxu0
  %v4390 = vadd.f32 %v4301, %v4389
  %v4391 = vpop.f32.mrf.mxu0
  %v4392 = vadd.f32 %v4303, %v4391
  %4393 = vmatmul.bf16.gmra.mxu0 %v3230
  %v4394 = vpop.f32.mrf.mxu0
  %v4395 = vadd.f32 %v4306, %v4394
  %v4396 = vpop.f32.mrf.mxu0
  %v4397 = vadd.f32 %v4308, %v4396
  %4398 = vmatmul.bf16.gmra.mxu0 %v3242
  %v4399 = vpop.f32.mrf.mxu0
  %v4400 = vadd.f32 %v4311, %v4399
  %v4401 = vpop.f32.mrf.mxu0
  %v4402 = vadd.f32 %v4313, %v4401
  %4403 = vmatmul.bf16.gmra.mxu0 %v3254
  %v4404 = vpop.f32.mrf.mxu0
  %v4405 = vadd.f32 %v4316, %v4404
  %v4406 = vpop.f32.mrf.mxu0
  %v4407 = vadd.f32 %v4318, %v4406
  %4408 = vmatmul.bf16.gmra.mxu0 %v3266
  %v4409 = vpop.f32.mrf.mxu0
  %v4410 = vadd.f32 %v4321, %v4409
  %v4411 = vpop.f32.mrf.mxu0
  %v4412 = vadd.f32 %v4323, %v4411
  %4413 = vmatmul.bf16.gmra.mxu0 %v3278
  %v4414 = vpop.f32.mrf.mxu0
  %v4415 = vadd.f32 %v4326, %v4414
  %v4416 = vpop.f32.mrf.mxu0
  %v4417 = vadd.f32 %v4328, %v4416
  %4418 = vmatmul.bf16.gmra.mxu0 %v3290
  %v4419 = vpop.f32.mrf.mxu0
  %v4420 = vadd.f32 %v4331, %v4419
  %v4421 = vpop.f32.mrf.mxu0
  %v4422 = vadd.f32 %v4333, %v4421
  %4423 = vmatmul.bf16.gmra.mxu0 %v3302
  %v4424 = vpop.f32.mrf.mxu0
  %v4425 = vadd.f32 %v4336, %v4424
  %v4426 = vpop.f32.mrf.mxu0
  %v4427 = vadd.f32 %v4338, %v4426
  %4428 = vmatmul.bf16.gmra.mxu0 %v3314
  %v4429 = vpop.f32.mrf.mxu0
  %v4430 = vadd.f32 %v4341, %v4429
  %v4431 = vpop.f32.mrf.mxu0
  %v4432 = vadd.f32 %v4343, %v4431
  %4433 = vmatmul.bf16.gmra.mxu0 %v3326
  %v4434 = vpop.f32.mrf.mxu0
  %v4435 = vadd.f32 %v4346, %v4434
  %v4436 = vpop.f32.mrf.mxu0
  %v4437 = vadd.f32 %v4348, %v4436
  %4438 = vmatmul.bf16.gmra.mxu0 %v3338
  %v4439 = vpop.f32.mrf.mxu0
  %v4440 = vadd.f32 %v4351, %v4439
  %v4441 = vpop.f32.mrf.mxu0
  %v4442 = vadd.f32 %v4353, %v4441
  %4443 = vmatmul.bf16.gmra.mxu0 %v3350
  %v4444 = vpop.f32.mrf.mxu0
  %v4445 = vadd.f32 %v4356, %v4444
  %v4446 = vpop.f32.mrf.mxu0
  %v4447 = vadd.f32 %v4358, %v4446
  %4448 = vmatmul.bf16.gmra.mxu0 %v3362
  %v4449 = vpop.f32.mrf.mxu0
  %v4450 = vadd.f32 %v4361, %v4449
  %v4451 = vpop.f32.mrf.mxu0
  %v4452 = vadd.f32 %v4363, %v4451
  %4453 = vmatmul.bf16.gmra.mxu0 %v3374
  %v4454 = vpop.f32.mrf.mxu0
  %v4455 = vadd.f32 %v4366, %v4454
  %v4456 = vpop.f32.mrf.mxu0
  %v4457 = vadd.f32 %v4368, %v4456
  %4458 = vdwg.mxu0
  %4459 = vmatpush.bf16.msra.mxu0 %v2408
  %4460 = vmatpush.bf16.msra.mxu0 %v2407
  %4461 = vmatpush.bf16.msra.mxu0 %v2406
  %4462 = vmatpush.bf16.msra.mxu0 %v2405
  %4463 = vmatpush.bf16.msra.mxu0 %v2404
  %4464 = vmatpush.bf16.msra.mxu0 %v2403
  %4465 = vmatpush.bf16.msra.mxu0 %v2402
  %4466 = vmatpush.bf16.msra.mxu0 %v2401
  %4467 = vmatmul.bf16.gmra.mxu0 %v3195
  %v4468 = vpop.f32.mrf.mxu0
  %v4469 = vadd.f32 %v4380, %v4468
  %v4470 = vpop.f32.mrf.mxu0
  %v4471 = vadd.f32 %v4382, %v4470
  %4472 = vmatmul.bf16.gmra.mxu0 %v3207
  %v4473 = vpop.f32.mrf.mxu0
  %v4474 = vadd.f32 %v4385, %v4473
  %v4475 = vpop.f32.mrf.mxu0
  %v4476 = vadd.f32 %v4387, %v4475
  %4477 = vmatmul.bf16.gmra.mxu0 %v3219
  %v4478 = vpop.f32.mrf.mxu0
  %v4479 = vadd.f32 %v4390, %v4478
  %v4480 = vpop.f32.mrf.mxu0
  %v4481 = vadd.f32 %v4392, %v4480
  %4482 = vmatmul.bf16.gmra.mxu0 %v3231
  %v4483 = vpop.f32.mrf.mxu0
  %v4484 = vadd.f32 %v4395, %v4483
  %v4485 = vpop.f32.mrf.mxu0
  %v4486 = vadd.f32 %v4397, %v4485
  %4487 = vmatmul.bf16.gmra.mxu0 %v3243
  %v4488 = vpop.f32.mrf.mxu0
  %v4489 = vadd.f32 %v4400, %v4488
  %v4490 = vpop.f32.mrf.mxu0
  %v4491 = vadd.f32 %v4402, %v4490
  %4492 = vmatmul.bf16.gmra.mxu0 %v3255
  %v4493 = vpop.f32.mrf.mxu0
  %v4494 = vadd.f32 %v4405, %v4493
  %v4495 = vpop.f32.mrf.mxu0
  %v4496 = vadd.f32 %v4407, %v4495
  %4497 = vmatmul.bf16.gmra.mxu0 %v3267
  %v4498 = vpop.f32.mrf.mxu0
  %v4499 = vadd.f32 %v4410, %v4498
  %v4500 = vpop.f32.mrf.mxu0
  %v4501 = vadd.f32 %v4412, %v4500
  %4502 = vmatmul.bf16.gmra.mxu0 %v3279
  %v4503 = vpop.f32.mrf.mxu0
  %v4504 = vadd.f32 %v4415, %v4503
  %v4505 = vpop.f32.mrf.mxu0
  %v4506 = vadd.f32 %v4417, %v4505
  %4507 = vmatmul.bf16.gmra.mxu0 %v3291
  %v4508 = vpop.f32.mrf.mxu0
  %v4509 = vadd.f32 %v4420, %v4508
  %v4510 = vpop.f32.mrf.mxu0
  %v4511 = vadd.f32 %v4422, %v4510
  %4512 = vmatmul.bf16.gmra.mxu0 %v3303
  %v4513 = vpop.f32.mrf.mxu0
  %v4514 = vadd.f32 %v4425, %v4513
  %v4515 = vpop.f32.mrf.mxu0
  %v4516 = vadd.f32 %v4427, %v4515
  %4517 = vmatmul.bf16.gmra.mxu0 %v3315
  %v4518 = vpop.f32.mrf.mxu0
  %v4519 = vadd.f32 %v4430, %v4518
  %v4520 = vpop.f32.mrf.mxu0
  %v4521 = vadd.f32 %v4432, %v4520
  %4522 = vmatmul.bf16.gmra.mxu0 %v3327
  %v4523 = vpop.f32.mrf.mxu0
  %v4524 = vadd.f32 %v4435, %v4523
  %v4525 = vpop.f32.mrf.mxu0
  %v4526 = vadd.f32 %v4437, %v4525
  %4527 = vmatmul.bf16.gmra.mxu0 %v3339
  %v4528 = vpop.f32.mrf.mxu0
  %v4529 = vadd.f32 %v4440, %v4528
  %v4530 = vpop.f32.mrf.mxu0
  %v4531 = vadd.f32 %v4442, %v4530
  %4532 = vmatmul.bf16.gmra.mxu0 %v3351
  %v4533 = vpop.f32.mrf.mxu0
  %v4534 = vadd.f32 %v4445, %v4533
  %v4535 = vpop.f32.mrf.mxu0
  %v4536 = vadd.f32 %v4447, %v4535
  %4537 = vmatmul.bf16.gmra.mxu0 %v3363
  %v4538 = vpop.f32.mrf.mxu0
  %v4539 = vadd.f32 %v4450, %v4538
  %v4540 = vpop.f32.mrf.mxu0
  %v4541 = vadd.f32 %v4452, %v4540
  %4542 = vmatmul.bf16.gmra.mxu0 %v3375
  %v4543 = vpop.f32.mrf.mxu0
  %v4544 = vadd.f32 %v4455, %v4543
  %v4545 = vpop.f32.mrf.mxu0
  %v4546 = vadd.f32 %v4457, %v4545
  %4547 = vdwg.mxu0
  %4548 = vmatpush.bf16.msra.mxu0 %v2416
  %4549 = vmatpush.bf16.msra.mxu0 %v2415
  %4550 = vmatpush.bf16.msra.mxu0 %v2414
  %4551 = vmatpush.bf16.msra.mxu0 %v2413
  %4552 = vmatpush.bf16.msra.mxu0 %v2412
  %4553 = vmatpush.bf16.msra.mxu0 %v2411
  %4554 = vmatpush.bf16.msra.mxu0 %v2410
  %4555 = vmatpush.bf16.msra.mxu0 %v2409
  %4556 = vmatmul.bf16.gmra.mxu0 %v3196
  %v4557 = vpop.f32.mrf.mxu0
  %v4558 = vadd.f32 %v4469, %v4557
  %v4559 = vpop.f32.mrf.mxu0
  %v4560 = vadd.f32 %v4471, %v4559
  %4561 = vmatmul.bf16.gmra.mxu0 %v3208
  %v4562 = vpop.f32.mrf.mxu0
  %v4563 = vadd.f32 %v4474, %v4562
  %v4564 = vpop.f32.mrf.mxu0
  %v4565 = vadd.f32 %v4476, %v4564
  %4566 = vmatmul.bf16.gmra.mxu0 %v3220
  %v4567 = vpop.f32.mrf.mxu0
  %v4568 = vadd.f32 %v4479, %v4567
  %v4569 = vpop.f32.mrf.mxu0
  %v4570 = vadd.f32 %v4481, %v4569
  %4571 = vmatmul.bf16.gmra.mxu0 %v3232
  %v4572 = vpop.f32.mrf.mxu0
  %v4573 = vadd.f32 %v4484, %v4572
  %v4574 = vpop.f32.mrf.mxu0
  %v4575 = vadd.f32 %v4486, %v4574
  %4576 = vmatmul.bf16.gmra.mxu0 %v3244
  %v4577 = vpop.f32.mrf.mxu0
  %v4578 = vadd.f32 %v4489, %v4577
  %v4579 = vpop.f32.mrf.mxu0
  %v4580 = vadd.f32 %v4491, %v4579
  %4581 = vmatmul.bf16.gmra.mxu0 %v3256
  %v4582 = vpop.f32.mrf.mxu0
  %v4583 = vadd.f32 %v4494, %v4582
  %v4584 = vpop.f32.mrf.mxu0
  %v4585 = vadd.f32 %v4496, %v4584
  %4586 = vmatmul.bf16.gmra.mxu0 %v3268
  %v4587 = vpop.f32.mrf.mxu0
  %v4588 = vadd.f32 %v4499, %v4587
  %v4589 = vpop.f32.mrf.mxu0
  %v4590 = vadd.f32 %v4501, %v4589
  %4591 = vmatmul.bf16.gmra.mxu0 %v3280
  %v4592 = vpop.f32.mrf.mxu0
  %v4593 = vadd.f32 %v4504, %v4592
  %v4594 = vpop.f32.mrf.mxu0
  %v4595 = vadd.f32 %v4506, %v4594
  %4596 = vmatmul.bf16.gmra.mxu0 %v3292
  %v4597 = vpop.f32.mrf.mxu0
  %v4598 = vadd.f32 %v4509, %v4597
  %v4599 = vpop.f32.mrf.mxu0
  %v4600 = vadd.f32 %v4511, %v4599
  %4601 = vmatmul.bf16.gmra.mxu0 %v3304
  %v4602 = vpop.f32.mrf.mxu0
  %v4603 = vadd.f32 %v4514, %v4602
  %v4604 = vpop.f32.mrf.mxu0
  %v4605 = vadd.f32 %v4516, %v4604
  %4606 = vmatmul.bf16.gmra.mxu0 %v3316
  %v4607 = vpop.f32.mrf.mxu0
  %v4608 = vadd.f32 %v4519, %v4607
  %v4609 = vpop.f32.mrf.mxu0
  %v4610 = vadd.f32 %v4521, %v4609
  %4611 = vmatmul.bf16.gmra.mxu0 %v3328
  %v4612 = vpop.f32.mrf.mxu0
  %v4613 = vadd.f32 %v4524, %v4612
  %v4614 = vpop.f32.mrf.mxu0
  %v4615 = vadd.f32 %v4526, %v4614
  %4616 = vmatmul.bf16.gmra.mxu0 %v3340
  %v4617 = vpop.f32.mrf.mxu0
  %v4618 = vadd.f32 %v4529, %v4617
  %v4619 = vpop.f32.mrf.mxu0
  %v4620 = vadd.f32 %v4531, %v4619
  %4621 = vmatmul.bf16.gmra.mxu0 %v3352
  %v4622 = vpop.f32.mrf.mxu0
  %v4623 = vadd.f32 %v4534, %v4622
  %v4624 = vpop.f32.mrf.mxu0
  %v4625 = vadd.f32 %v4536, %v4624
  %4626 = vmatmul.bf16.gmra.mxu0 %v3364
  %v4627 = vpop.f32.mrf.mxu0
  %v4628 = vadd.f32 %v4539, %v4627
  %v4629 = vpop.f32.mrf.mxu0
  %v4630 = vadd.f32 %v4541, %v4629
  %4631 = vmatmul.bf16.gmra.mxu0 %v3376
  %v4632 = vpop.f32.mrf.mxu0
  %v4633 = vadd.f32 %v4544, %v4632
  %v4634 = vpop.f32.mrf.mxu0
  %v4635 = vadd.f32 %v4546, %v4634
  %4636 = vdwg.mxu0
  %vm4637 = vcmask 400384
  %v4638 = vsel %vm4637, %v4558, 0.0
  %4639 = vadd.xlane.f32.xlu0 %v4638
  %v4640 = vpop.xlane.xlu0 %4639
  %v4641 = vsel %vm4637, %v4560, 0.0
  %4642 = vadd.xlane.f32.xlu0 %v4641
  %v4643 = vpop.xlane.xlu0 %4642
  %v4644 = vsel %vm4637, %v4563, 0.0
  %4645 = vadd.xlane.f32.xlu0 %v4644
  %v4646 = vpop.xlane.xlu0 %4645
  %v4647 = vsel %vm4637, %v4565, 0.0
  %4648 = vadd.xlane.f32.xlu0 %v4647
  %v4649 = vpop.xlane.xlu0 %4648
  %v4650 = vsel %vm4637, %v4568, 0.0
  %4651 = vadd.xlane.f32.xlu0 %v4650
  %v4652 = vpop.xlane.xlu0 %4651
  %v4653 = vsel %vm4637, %v4570, 0.0
  %4654 = vadd.xlane.f32.xlu0 %v4653
  %v4655 = vpop.xlane.xlu0 %4654
  %v4656 = vsel %vm4637, %v4573, 0.0
  %4657 = vadd.xlane.f32.xlu0 %v4656
  %v4658 = vpop.xlane.xlu0 %4657
  %v4659 = vsel %vm4637, %v4575, 0.0
  %4660 = vadd.xlane.f32.xlu0 %v4659
  %v4661 = vpop.xlane.xlu0 %4660
  %v4662 = vsel %vm4637, %v4578, 0.0
  %4663 = vadd.xlane.f32.xlu0 %v4662
  %v4664 = vpop.xlane.xlu0 %4663
  %v4665 = vsel %vm4637, %v4580, 0.0
  %4666 = vadd.xlane.f32.xlu0 %v4665
  %v4667 = vpop.xlane.xlu0 %4666
  %v4668 = vsel %vm4637, %v4583, 0.0
  %4669 = vadd.xlane.f32.xlu0 %v4668
  %v4670 = vpop.xlane.xlu0 %4669
  %v4671 = vsel %vm4637, %v4585, 0.0
  %4672 = vadd.xlane.f32.xlu0 %v4671
  %v4673 = vpop.xlane.xlu0 %4672
  %v4674 = vsel %vm4637, %v4588, 0.0
  %4675 = vadd.xlane.f32.xlu0 %v4674
  %v4676 = vpop.xlane.xlu0 %4675
  %v4677 = vsel %vm4637, %v4590, 0.0
  %4678 = vadd.xlane.f32.xlu0 %v4677
  %v4679 = vpop.xlane.xlu0 %4678
  %v4680 = vsel %vm4637, %v4593, 0.0
  %4681 = vadd.xlane.f32.xlu0 %v4680
  %v4682 = vpop.xlane.xlu0 %4681
  %v4683 = vsel %vm4637, %v4595, 0.0
  %4684 = vadd.xlane.f32.xlu0 %v4683
  %v4685 = vpop.xlane.xlu0 %4684
  %v4686 = vsel %vm4637, %v4598, 0.0
  %4687 = vadd.xlane.f32.xlu0 %v4686
  %v4688 = vpop.xlane.xlu0 %4687
  %v4689 = vsel %vm4637, %v4600, 0.0
  %4690 = vadd.xlane.f32.xlu0 %v4689
  %v4691 = vpop.xlane.xlu0 %4690
  %v4692 = vsel %vm4637, %v4603, 0.0
  %4693 = vadd.xlane.f32.xlu0 %v4692
  %v4694 = vpop.xlane.xlu0 %4693
  %v4695 = vsel %vm4637, %v4605, 0.0
  %4696 = vadd.xlane.f32.xlu0 %v4695
  %v4697 = vpop.xlane.xlu0 %4696
  %v4698 = vsel %vm4637, %v4608, 0.0
  %4699 = vadd.xlane.f32.xlu0 %v4698
  %v4700 = vpop.xlane.xlu0 %4699
  %v4701 = vsel %vm4637, %v4610, 0.0
  %4702 = vadd.xlane.f32.xlu0 %v4701
  %v4703 = vpop.xlane.xlu0 %4702
  %v4704 = vsel %vm4637, %v4613, 0.0
  %4705 = vadd.xlane.f32.xlu0 %v4704
  %v4706 = vpop.xlane.xlu0 %4705
  %v4707 = vsel %vm4637, %v4615, 0.0
  %4708 = vadd.xlane.f32.xlu0 %v4707
  %v4709 = vpop.xlane.xlu0 %4708
  %v4710 = vsel %vm4637, %v4618, 0.0
  %4711 = vadd.xlane.f32.xlu0 %v4710
  %v4712 = vpop.xlane.xlu0 %4711
  %v4713 = vsel %vm4637, %v4620, 0.0
  %4714 = vadd.xlane.f32.xlu0 %v4713
  %v4715 = vpop.xlane.xlu0 %4714
  %v4716 = vsel %vm4637, %v4623, 0.0
  %4717 = vadd.xlane.f32.xlu0 %v4716
  %v4718 = vpop.xlane.xlu0 %4717
  %v4719 = vsel %vm4637, %v4625, 0.0
  %4720 = vadd.xlane.f32.xlu0 %v4719
  %v4721 = vpop.xlane.xlu0 %4720
  %v4722 = vsel %vm4637, %v4628, 0.0
  %4723 = vadd.xlane.f32.xlu0 %v4722
  %v4724 = vpop.xlane.xlu0 %4723
  %v4725 = vsel %vm4637, %v4630, 0.0
  %4726 = vadd.xlane.f32.xlu0 %v4725
  %v4727 = vpop.xlane.xlu0 %4726
  %v4728 = vsel %vm4637, %v4633, 0.0
  %4729 = vadd.xlane.f32.xlu0 %v4728
  %v4730 = vpop.xlane.xlu0 %4729
  %v4731 = vsel %vm4637, %v4635, 0.0
  %4732 = vadd.xlane.f32.xlu0 %v4731
  %v4733 = vpop.xlane.xlu0 %4732
  %v4734 = vmul.f32 %v4640, 0.020408163
  %v4735 = vmul.f32 %v4643, 0.020408163
  %v4736 = vmul.f32 %v4646, 0.020408163
  %v4737 = vmul.f32 %v4649, 0.020408163
  %v4738 = vmul.f32 %v4652, 0.020408163
  %v4739 = vmul.f32 %v4655, 0.020408163
  %v4740 = vmul.f32 %v4658, 0.020408163
  %v4741 = vmul.f32 %v4661, 0.020408163
  %v4742 = vmul.f32 %v4664, 0.020408163
  %v4743 = vmul.f32 %v4667, 0.020408163
  %v4744 = vmul.f32 %v4670, 0.020408163
  %v4745 = vmul.f32 %v4673, 0.020408163
  %v4746 = vmul.f32 %v4676, 0.020408163
  %v4747 = vmul.f32 %v4679, 0.020408163
  %v4748 = vmul.f32 %v4682, 0.020408163
  %v4749 = vmul.f32 %v4685, 0.020408163
  %v4750 = vmul.f32 %v4688, 0.020408163
  %v4751 = vmul.f32 %v4691, 0.020408163
  %v4752 = vmul.f32 %v4694, 0.020408163
  %v4753 = vmul.f32 %v4697, 0.020408163
  %v4754 = vmul.f32 %v4700, 0.020408163
  %v4755 = vmul.f32 %v4703, 0.020408163
  %v4756 = vmul.f32 %v4706, 0.020408163
  %v4757 = vmul.f32 %v4709, 0.020408163
  %v4758 = vmul.f32 %v4712, 0.020408163
  %v4759 = vmul.f32 %v4715, 0.020408163
  %v4760 = vmul.f32 %v4718, 0.020408163
  %v4761 = vmul.f32 %v4721, 0.020408163
  %v4762 = vmul.f32 %v4724, 0.020408163
  %v4763 = vmul.f32 %v4727, 0.020408163
  %v4764 = vmul.f32 %v4730, 0.020408163
  %v4765 = vmul.f32 %v4733, 0.020408163
  %v4766 = vsub.f32 %v4558, %v4734
  %v4767 = vsub.f32 %v4560, %v4735
  %v4768 = vsub.f32 %v4563, %v4736
  %v4769 = vsub.f32 %v4565, %v4737
  %v4770 = vsub.f32 %v4568, %v4738
  %v4771 = vsub.f32 %v4570, %v4739
  %v4772 = vsub.f32 %v4573, %v4740
  %v4773 = vsub.f32 %v4575, %v4741
  %v4774 = vsub.f32 %v4578, %v4742
  %v4775 = vsub.f32 %v4580, %v4743
  %v4776 = vsub.f32 %v4583, %v4744
  %v4777 = vsub.f32 %v4585, %v4745
  %v4778 = vsub.f32 %v4588, %v4746
  %v4779 = vsub.f32 %v4590, %v4747
  %v4780 = vsub.f32 %v4593, %v4748
  %v4781 = vsub.f32 %v4595, %v4749
  %v4782 = vsub.f32 %v4598, %v4750
  %v4783 = vsub.f32 %v4600, %v4751
  %v4784 = vsub.f32 %v4603, %v4752
  %v4785 = vsub.f32 %v4605, %v4753
  %v4786 = vsub.f32 %v4608, %v4754
  %v4787 = vsub.f32 %v4610, %v4755
  %v4788 = vsub.f32 %v4613, %v4756
  %v4789 = vsub.f32 %v4615, %v4757
  %v4790 = vsub.f32 %v4618, %v4758
  %v4791 = vsub.f32 %v4620, %v4759
  %v4792 = vsub.f32 %v4623, %v4760
  %v4793 = vsub.f32 %v4625, %v4761
  %v4794 = vsub.f32 %v4628, %v4762
  %v4795 = vsub.f32 %v4630, %v4763
  %v4796 = vsub.f32 %v4633, %v4764
  %v4797 = vsub.f32 %v4635, %v4765
  %v4798 = vmul.f32 %v4766, %v4766
  %v4799 = vmul.f32 %v4767, %v4767
  %v4800 = vmul.f32 %v4768, %v4768
  %v4801 = vmul.f32 %v4769, %v4769
  %v4802 = vmul.f32 %v4770, %v4770
  %v4803 = vmul.f32 %v4771, %v4771
  %v4804 = vmul.f32 %v4772, %v4772
  %v4805 = vmul.f32 %v4773, %v4773
  %v4806 = vmul.f32 %v4774, %v4774
  %v4807 = vmul.f32 %v4775, %v4775
  %v4808 = vmul.f32 %v4776, %v4776
  %v4809 = vmul.f32 %v4777, %v4777
  %v4810 = vmul.f32 %v4778, %v4778
  %v4811 = vmul.f32 %v4779, %v4779
  %v4812 = vmul.f32 %v4780, %v4780
  %v4813 = vmul.f32 %v4781, %v4781
  %v4814 = vmul.f32 %v4782, %v4782
  %v4815 = vmul.f32 %v4783, %v4783
  %v4816 = vmul.f32 %v4784, %v4784
  %v4817 = vmul.f32 %v4785, %v4785
  %v4818 = vmul.f32 %v4786, %v4786
  %v4819 = vmul.f32 %v4787, %v4787
  %v4820 = vmul.f32 %v4788, %v4788
  %v4821 = vmul.f32 %v4789, %v4789
  %v4822 = vmul.f32 %v4790, %v4790
  %v4823 = vmul.f32 %v4791, %v4791
  %v4824 = vmul.f32 %v4792, %v4792
  %v4825 = vmul.f32 %v4793, %v4793
  %v4826 = vmul.f32 %v4794, %v4794
  %v4827 = vmul.f32 %v4795, %v4795
  %v4828 = vmul.f32 %v4796, %v4796
  %v4829 = vmul.f32 %v4797, %v4797
  %v4830 = vsel %vm4637, %v4798, 0.0
  %4831 = vadd.xlane.f32.xlu0 %v4830
  %v4832 = vpop.xlane.xlu0 %4831
  %v4833 = vsel %vm4637, %v4799, 0.0
  %4834 = vadd.xlane.f32.xlu0 %v4833
  %v4835 = vpop.xlane.xlu0 %4834
  %v4836 = vsel %vm4637, %v4800, 0.0
  %4837 = vadd.xlane.f32.xlu0 %v4836
  %v4838 = vpop.xlane.xlu0 %4837
  %v4839 = vsel %vm4637, %v4801, 0.0
  %4840 = vadd.xlane.f32.xlu0 %v4839
  %v4841 = vpop.xlane.xlu0 %4840
  %v4842 = vsel %vm4637, %v4802, 0.0
  %4843 = vadd.xlane.f32.xlu0 %v4842
  %v4844 = vpop.xlane.xlu0 %4843
  %v4845 = vsel %vm4637, %v4803, 0.0
  %4846 = vadd.xlane.f32.xlu0 %v4845
  %v4847 = vpop.xlane.xlu0 %4846
  %v4848 = vsel %vm4637, %v4804, 0.0
  %4849 = vadd.xlane.f32.xlu0 %v4848
  %v4850 = vpop.xlane.xlu0 %4849
  %v4851 = vsel %vm4637, %v4805, 0.0
  %4852 = vadd.xlane.f32.xlu0 %v4851
  %v4853 = vpop.xlane.xlu0 %4852
  %v4854 = vsel %vm4637, %v4806, 0.0
  %4855 = vadd.xlane.f32.xlu0 %v4854
  %v4856 = vpop.xlane.xlu0 %4855
  %v4857 = vsel %vm4637, %v4807, 0.0
  %4858 = vadd.xlane.f32.xlu0 %v4857
  %v4859 = vpop.xlane.xlu0 %4858
  %v4860 = vsel %vm4637, %v4808, 0.0
  %4861 = vadd.xlane.f32.xlu0 %v4860
  %v4862 = vpop.xlane.xlu0 %4861
  %v4863 = vsel %vm4637, %v4809, 0.0
  %4864 = vadd.xlane.f32.xlu0 %v4863
  %v4865 = vpop.xlane.xlu0 %4864
  %v4866 = vsel %vm4637, %v4810, 0.0
  %4867 = vadd.xlane.f32.xlu0 %v4866
  %v4868 = vpop.xlane.xlu0 %4867
  %v4869 = vsel %vm4637, %v4811, 0.0
  %4870 = vadd.xlane.f32.xlu0 %v4869
  %v4871 = vpop.xlane.xlu0 %4870
  %v4872 = vsel %vm4637, %v4812, 0.0
  %4873 = vadd.xlane.f32.xlu0 %v4872
  %v4874 = vpop.xlane.xlu0 %4873
  %v4875 = vsel %vm4637, %v4813, 0.0
  %4876 = vadd.xlane.f32.xlu0 %v4875
  %v4877 = vpop.xlane.xlu0 %4876
  %v4878 = vsel %vm4637, %v4814, 0.0
  %4879 = vadd.xlane.f32.xlu0 %v4878
  %v4880 = vpop.xlane.xlu0 %4879
  %v4881 = vsel %vm4637, %v4815, 0.0
  %4882 = vadd.xlane.f32.xlu0 %v4881
  %v4883 = vpop.xlane.xlu0 %4882
  %v4884 = vsel %vm4637, %v4816, 0.0
  %4885 = vadd.xlane.f32.xlu0 %v4884
  %v4886 = vpop.xlane.xlu0 %4885
  %v4887 = vsel %vm4637, %v4817, 0.0
  %4888 = vadd.xlane.f32.xlu0 %v4887
  %v4889 = vpop.xlane.xlu0 %4888
  %v4890 = vsel %vm4637, %v4818, 0.0
  %4891 = vadd.xlane.f32.xlu0 %v4890
  %v4892 = vpop.xlane.xlu0 %4891
  %v4893 = vsel %vm4637, %v4819, 0.0
  %4894 = vadd.xlane.f32.xlu0 %v4893
  %v4895 = vpop.xlane.xlu0 %4894
  %v4896 = vsel %vm4637, %v4820, 0.0
  %4897 = vadd.xlane.f32.xlu0 %v4896
  %v4898 = vpop.xlane.xlu0 %4897
  %v4899 = vsel %vm4637, %v4821, 0.0
  %4900 = vadd.xlane.f32.xlu0 %v4899
  %v4901 = vpop.xlane.xlu0 %4900
  %v4902 = vsel %vm4637, %v4822, 0.0
  %4903 = vadd.xlane.f32.xlu0 %v4902
  %v4904 = vpop.xlane.xlu0 %4903
  %v4905 = vsel %vm4637, %v4823, 0.0
  %4906 = vadd.xlane.f32.xlu0 %v4905
  %v4907 = vpop.xlane.xlu0 %4906
  %v4908 = vsel %vm4637, %v4824, 0.0
  %4909 = vadd.xlane.f32.xlu0 %v4908
  %v4910 = vpop.xlane.xlu0 %4909
  %v4911 = vsel %vm4637, %v4825, 0.0
  %4912 = vadd.xlane.f32.xlu0 %v4911
  %v4913 = vpop.xlane.xlu0 %4912
  %v4914 = vsel %vm4637, %v4826, 0.0
  %4915 = vadd.xlane.f32.xlu0 %v4914
  %v4916 = vpop.xlane.xlu0 %4915
  %v4917 = vsel %vm4637, %v4827, 0.0
  %4918 = vadd.xlane.f32.xlu0 %v4917
  %v4919 = vpop.xlane.xlu0 %4918
  %v4920 = vsel %vm4637, %v4828, 0.0
  %4921 = vadd.xlane.f32.xlu0 %v4920
  %v4922 = vpop.xlane.xlu0 %4921
  %v4923 = vsel %vm4637, %v4829, 0.0
  %4924 = vadd.xlane.f32.xlu0 %v4923
  %v4925 = vpop.xlane.xlu0 %4924
  %v4926 = vmul.f32 %v4832, 0.020408163
  %v4927 = vmul.f32 %v4835, 0.020408163
  %v4928 = vmul.f32 %v4838, 0.020408163
  %v4929 = vmul.f32 %v4841, 0.020408163
  %v4930 = vmul.f32 %v4844, 0.020408163
  %v4931 = vmul.f32 %v4847, 0.020408163
  %v4932 = vmul.f32 %v4850, 0.020408163
  %v4933 = vmul.f32 %v4853, 0.020408163
  %v4934 = vmul.f32 %v4856, 0.020408163
  %v4935 = vmul.f32 %v4859, 0.020408163
  %v4936 = vmul.f32 %v4862, 0.020408163
  %v4937 = vmul.f32 %v4865, 0.020408163
  %v4938 = vmul.f32 %v4868, 0.020408163
  %v4939 = vmul.f32 %v4871, 0.020408163
  %v4940 = vmul.f32 %v4874, 0.020408163
  %v4941 = vmul.f32 %v4877, 0.020408163
  %v4942 = vmul.f32 %v4880, 0.020408163
  %v4943 = vmul.f32 %v4883, 0.020408163
  %v4944 = vmul.f32 %v4886, 0.020408163
  %v4945 = vmul.f32 %v4889, 0.020408163
  %v4946 = vmul.f32 %v4892, 0.020408163
  %v4947 = vmul.f32 %v4895, 0.020408163
  %v4948 = vmul.f32 %v4898, 0.020408163
  %v4949 = vmul.f32 %v4901, 0.020408163
  %v4950 = vmul.f32 %v4904, 0.020408163
  %v4951 = vmul.f32 %v4907, 0.020408163
  %v4952 = vmul.f32 %v4910, 0.020408163
  %v4953 = vmul.f32 %v4913, 0.020408163
  %v4954 = vmul.f32 %v4916, 0.020408163
  %v4955 = vmul.f32 %v4919, 0.020408163
  %v4956 = vmul.f32 %v4922, 0.020408163
  %v4957 = vmul.f32 %v4925, 0.020408163
  %v4958 = vld [vmem:[%s3] sm:$0xff]
  %v4959 = vld [vmem:[%s3 + $0x8] sm:$0xff]
  %v4960 = vld [vmem:[%s3 + $0x10] sm:$0xff]
  %v4961 = vld [vmem:[%s3 + $0x18] sm:$0xff]
  %v4962 = vld [vmem:[%s3 + $0x20] sm:$0xff]
  %v4963 = vld [vmem:[%s3 + $0x28] sm:$0xff]
  %v4964 = vld [vmem:[%s3 + $0x30] sm:$0xff]
  %v4965 = vld [vmem:[%s3 + $0x38] sm:$0xff]
  %v4966 = vld [vmem:[%s3 + $0x40] sm:$0xff]
  %v4967 = vld [vmem:[%s3 + $0x48] sm:$0xff]
  %v4968 = vld [vmem:[%s3 + $0x50] sm:$0xff]
  %v4969 = vld [vmem:[%s3 + $0x58] sm:$0xff]
  %v4970 = vld [vmem:[%s3 + $0x60] sm:$0xff]
  %v4971 = vld [vmem:[%s3 + $0x68] sm:$0xff]
  %v4972 = vld [vmem:[%s3 + $0x70] sm:$0xff]
  %v4973 = vld [vmem:[%s3 + $0x78] sm:$0xff]
  %v4974 = vld [vmem:[%s3 + $0x80] sm:$0xff]
  %v4975 = vld [vmem:[%s3 + $0x88] sm:$0xff]
  %v4976 = vld [vmem:[%s3 + $0x90] sm:$0xff]
  %v4977 = vld [vmem:[%s3 + $0x98] sm:$0xff]
  %v4978 = vld [vmem:[%s3 + $0xa0] sm:$0xff]
  %v4979 = vld [vmem:[%s3 + $0xa8] sm:$0xff]
  %v4980 = vld [vmem:[%s3 + $0xb0] sm:$0xff]
  %v4981 = vld [vmem:[%s3 + $0xb8] sm:$0xff]
  %v4982 = vld [vmem:[%s3 + $0xc0] sm:$0xff]
  %v4983 = vld [vmem:[%s3 + $0xc8] sm:$0xff]
  %v4984 = vld [vmem:[%s3 + $0xd0] sm:$0xff]
  %v4985 = vld [vmem:[%s3 + $0xd8] sm:$0xff]
  %v4986 = vld [vmem:[%s3 + $0xe0] sm:$0xff]
  %v4987 = vld [vmem:[%s3 + $0xe8] sm:$0xff]
  %v4988 = vld [vmem:[%s3 + $0xf0] sm:$0xff]
  %v4989 = vld [vmem:[%s3 + $0xf8] sm:$0xff]
  %v4990 = vadd.f32 %v4926, 0.001
  %v4991 = vadd.f32 %v4927, 0.001
  %v4992 = vadd.f32 %v4928, 0.001
  %v4993 = vadd.f32 %v4929, 0.001
  %v4994 = vadd.f32 %v4930, 0.001
  %v4995 = vadd.f32 %v4931, 0.001
  %v4996 = vadd.f32 %v4932, 0.001
  %v4997 = vadd.f32 %v4933, 0.001
  %v4998 = vadd.f32 %v4934, 0.001
  %v4999 = vadd.f32 %v4935, 0.001
  %v5000 = vadd.f32 %v4936, 0.001
  %v5001 = vadd.f32 %v4937, 0.001
  %v5002 = vadd.f32 %v4938, 0.001
  %v5003 = vadd.f32 %v4939, 0.001
  %v5004 = vadd.f32 %v4940, 0.001
  %v5005 = vadd.f32 %v4941, 0.001
  %v5006 = vadd.f32 %v4942, 0.001
  %v5007 = vadd.f32 %v4943, 0.001
  %v5008 = vadd.f32 %v4944, 0.001
  %v5009 = vadd.f32 %v4945, 0.001
  %v5010 = vadd.f32 %v4946, 0.001
  %v5011 = vadd.f32 %v4947, 0.001
  %v5012 = vadd.f32 %v4948, 0.001
  %v5013 = vadd.f32 %v4949, 0.001
  %v5014 = vadd.f32 %v4950, 0.001
  %v5015 = vadd.f32 %v4951, 0.001
  %v5016 = vadd.f32 %v4952, 0.001
  %v5017 = vadd.f32 %v4953, 0.001
  %v5018 = vadd.f32 %v4954, 0.001
  %v5019 = vadd.f32 %v4955, 0.001
  %v5020 = vadd.f32 %v4956, 0.001
  %v5021 = vadd.f32 %v4957, 0.001
  %v5022 = vrsqrt.pop %v4990
  %v5023 = vmul.f32 %v5022, %v4990
  %v5024 = vmul.f32 %v5023, %v5022
  %v5025 = vmul.f32 0.5, %v5024
  %v5026 = vsub.f32 1.5, %v5025
  %v5027 = vmul.f32 %v5022, %v5026
  %vm5028 = vweird.f32 %v4990
  %vm5029 = vweird.f32 %v5022
  %vm5030 = vmor %vm5028, %vm5029
  %v5031 = vsel %vm5030, %v5022, %v5027
  %v5032 = vrsqrt.pop %v4991
  %v5033 = vmul.f32 %v5032, %v4991
  %v5034 = vmul.f32 %v5033, %v5032
  %v5035 = vmul.f32 0.5, %v5034
  %v5036 = vsub.f32 1.5, %v5035
  %v5037 = vmul.f32 %v5032, %v5036
  %vm5038 = vweird.f32 %v4991
  %vm5039 = vweird.f32 %v5032
  %vm5040 = vmor %vm5038, %vm5039
  %v5041 = vsel %vm5040, %v5032, %v5037
  %v5042 = vrsqrt.pop %v4992
  %v5043 = vmul.f32 %v5042, %v4992
  %v5044 = vmul.f32 %v5043, %v5042
  %v5045 = vmul.f32 0.5, %v5044
  %v5046 = vsub.f32 1.5, %v5045
  %v5047 = vmul.f32 %v5042, %v5046
  %vm5048 = vweird.f32 %v4992
  %vm5049 = vweird.f32 %v5042
  %vm5050 = vmor %vm5048, %vm5049
  %v5051 = vsel %vm5050, %v5042, %v5047
  %v5052 = vrsqrt.pop %v4993
  %v5053 = vmul.f32 %v5052, %v4993
  %v5054 = vmul.f32 %v5053, %v5052
  %v5055 = vmul.f32 0.5, %v5054
  %v5056 = vsub.f32 1.5, %v5055
  %v5057 = vmul.f32 %v5052, %v5056
  %vm5058 = vweird.f32 %v4993
  %vm5059 = vweird.f32 %v5052
  %vm5060 = vmor %vm5058, %vm5059
  %v5061 = vsel %vm5060, %v5052, %v5057
  %v5062 = vrsqrt.pop %v4994
  %v5063 = vmul.f32 %v5062, %v4994
  %v5064 = vmul.f32 %v5063, %v5062
  %v5065 = vmul.f32 0.5, %v5064
  %v5066 = vsub.f32 1.5, %v5065
  %v5067 = vmul.f32 %v5062, %v5066
  %vm5068 = vweird.f32 %v4994
  %vm5069 = vweird.f32 %v5062
  %vm5070 = vmor %vm5068, %vm5069
  %v5071 = vsel %vm5070, %v5062, %v5067
  %v5072 = vrsqrt.pop %v4995
  %v5073 = vmul.f32 %v5072, %v4995
  %v5074 = vmul.f32 %v5073, %v5072
  %v5075 = vmul.f32 0.5, %v5074
  %v5076 = vsub.f32 1.5, %v5075
  %v5077 = vmul.f32 %v5072, %v5076
  %vm5078 = vweird.f32 %v4995
  %vm5079 = vweird.f32 %v5072
  %vm5080 = vmor %vm5078, %vm5079
  %v5081 = vsel %vm5080, %v5072, %v5077
  %v5082 = vrsqrt.pop %v4996
  %v5083 = vmul.f32 %v5082, %v4996
  %v5084 = vmul.f32 %v5083, %v5082
  %v5085 = vmul.f32 0.5, %v5084
  %v5086 = vsub.f32 1.5, %v5085
  %v5087 = vmul.f32 %v5082, %v5086
  %vm5088 = vweird.f32 %v4996
  %vm5089 = vweird.f32 %v5082
  %vm5090 = vmor %vm5088, %vm5089
  %v5091 = vsel %vm5090, %v5082, %v5087
  %v5092 = vrsqrt.pop %v4997
  %v5093 = vmul.f32 %v5092, %v4997
  %v5094 = vmul.f32 %v5093, %v5092
  %v5095 = vmul.f32 0.5, %v5094
  %v5096 = vsub.f32 1.5, %v5095
  %v5097 = vmul.f32 %v5092, %v5096
  %vm5098 = vweird.f32 %v4997
  %vm5099 = vweird.f32 %v5092
  %vm5100 = vmor %vm5098, %vm5099
  %v5101 = vsel %vm5100, %v5092, %v5097
  %v5102 = vrsqrt.pop %v4998
  %v5103 = vmul.f32 %v5102, %v4998
  %v5104 = vmul.f32 %v5103, %v5102
  %v5105 = vmul.f32 0.5, %v5104
  %v5106 = vsub.f32 1.5, %v5105
  %v5107 = vmul.f32 %v5102, %v5106
  %vm5108 = vweird.f32 %v4998
  %vm5109 = vweird.f32 %v5102
  %vm5110 = vmor %vm5108, %vm5109
  %v5111 = vsel %vm5110, %v5102, %v5107
  %v5112 = vrsqrt.pop %v4999
  %v5113 = vmul.f32 %v5112, %v4999
  %v5114 = vmul.f32 %v5113, %v5112
  %v5115 = vmul.f32 0.5, %v5114
  %v5116 = vsub.f32 1.5, %v5115
  %v5117 = vmul.f32 %v5112, %v5116
  %vm5118 = vweird.f32 %v4999
  %vm5119 = vweird.f32 %v5112
  %vm5120 = vmor %vm5118, %vm5119
  %v5121 = vsel %vm5120, %v5112, %v5117
  %v5122 = vrsqrt.pop %v5000
  %v5123 = vmul.f32 %v5122, %v5000
  %v5124 = vmul.f32 %v5123, %v5122
  %v5125 = vmul.f32 0.5, %v5124
  %v5126 = vsub.f32 1.5, %v5125
  %v5127 = vmul.f32 %v5122, %v5126
  %vm5128 = vweird.f32 %v5000
  %vm5129 = vweird.f32 %v5122
  %vm5130 = vmor %vm5128, %vm5129
  %v5131 = vsel %vm5130, %v5122, %v5127
  %v5132 = vrsqrt.pop %v5001
  %v5133 = vmul.f32 %v5132, %v5001
  %v5134 = vmul.f32 %v5133, %v5132
  %v5135 = vmul.f32 0.5, %v5134
  %v5136 = vsub.f32 1.5, %v5135
  %v5137 = vmul.f32 %v5132, %v5136
  %vm5138 = vweird.f32 %v5001
  %vm5139 = vweird.f32 %v5132
  %vm5140 = vmor %vm5138, %vm5139
  %v5141 = vsel %vm5140, %v5132, %v5137
  %v5142 = vrsqrt.pop %v5002
  %v5143 = vmul.f32 %v5142, %v5002
  %v5144 = vmul.f32 %v5143, %v5142
  %v5145 = vmul.f32 0.5, %v5144
  %v5146 = vsub.f32 1.5, %v5145
  %v5147 = vmul.f32 %v5142, %v5146
  %vm5148 = vweird.f32 %v5002
  %vm5149 = vweird.f32 %v5142
  %vm5150 = vmor %vm5148, %vm5149
  %v5151 = vsel %vm5150, %v5142, %v5147
  %v5152 = vrsqrt.pop %v5003
  %v5153 = vmul.f32 %v5152, %v5003
  %v5154 = vmul.f32 %v5153, %v5152
  %v5155 = vmul.f32 0.5, %v5154
  %v5156 = vsub.f32 1.5, %v5155
  %v5157 = vmul.f32 %v5152, %v5156
  %vm5158 = vweird.f32 %v5003
  %vm5159 = vweird.f32 %v5152
  %vm5160 = vmor %vm5158, %vm5159
  %v5161 = vsel %vm5160, %v5152, %v5157
  %v5162 = vrsqrt.pop %v5004
  %v5163 = vmul.f32 %v5162, %v5004
  %v5164 = vmul.f32 %v5163, %v5162
  %v5165 = vmul.f32 0.5, %v5164
  %v5166 = vsub.f32 1.5, %v5165
  %v5167 = vmul.f32 %v5162, %v5166
  %vm5168 = vweird.f32 %v5004
  %vm5169 = vweird.f32 %v5162
  %vm5170 = vmor %vm5168, %vm5169
  %v5171 = vsel %vm5170, %v5162, %v5167
  %v5172 = vrsqrt.pop %v5005
  %v5173 = vmul.f32 %v5172, %v5005
  %v5174 = vmul.f32 %v5173, %v5172
  %v5175 = vmul.f32 0.5, %v5174
  %v5176 = vsub.f32 1.5, %v5175
  %v5177 = vmul.f32 %v5172, %v5176
  %vm5178 = vweird.f32 %v5005
  %vm5179 = vweird.f32 %v5172
  %vm5180 = vmor %vm5178, %vm5179
  %v5181 = vsel %vm5180, %v5172, %v5177
  %v5182 = vrsqrt.pop %v5006
  %v5183 = vmul.f32 %v5182, %v5006
  %v5184 = vmul.f32 %v5183, %v5182
  %v5185 = vmul.f32 0.5, %v5184
  %v5186 = vsub.f32 1.5, %v5185
  %v5187 = vmul.f32 %v5182, %v5186
  %vm5188 = vweird.f32 %v5006
  %vm5189 = vweird.f32 %v5182
  %vm5190 = vmor %vm5188, %vm5189
  %v5191 = vsel %vm5190, %v5182, %v5187
  %v5192 = vrsqrt.pop %v5007
  %v5193 = vmul.f32 %v5192, %v5007
  %v5194 = vmul.f32 %v5193, %v5192
  %v5195 = vmul.f32 0.5, %v5194
  %v5196 = vsub.f32 1.5, %v5195
  %v5197 = vmul.f32 %v5192, %v5196
  %vm5198 = vweird.f32 %v5007
  %vm5199 = vweird.f32 %v5192
  %vm5200 = vmor %vm5198, %vm5199
  %v5201 = vsel %vm5200, %v5192, %v5197
  %v5202 = vrsqrt.pop %v5008
  %v5203 = vmul.f32 %v5202, %v5008
  %v5204 = vmul.f32 %v5203, %v5202
  %v5205 = vmul.f32 0.5, %v5204
  %v5206 = vsub.f32 1.5, %v5205
  %v5207 = vmul.f32 %v5202, %v5206
  %vm5208 = vweird.f32 %v5008
  %vm5209 = vweird.f32 %v5202
  %vm5210 = vmor %vm5208, %vm5209
  %v5211 = vsel %vm5210, %v5202, %v5207
  %v5212 = vrsqrt.pop %v5009
  %v5213 = vmul.f32 %v5212, %v5009
  %v5214 = vmul.f32 %v5213, %v5212
  %v5215 = vmul.f32 0.5, %v5214
  %v5216 = vsub.f32 1.5, %v5215
  %v5217 = vmul.f32 %v5212, %v5216
  %vm5218 = vweird.f32 %v5009
  %vm5219 = vweird.f32 %v5212
  %vm5220 = vmor %vm5218, %vm5219
  %v5221 = vsel %vm5220, %v5212, %v5217
  %v5222 = vrsqrt.pop %v5010
  %v5223 = vmul.f32 %v5222, %v5010
  %v5224 = vmul.f32 %v5223, %v5222
  %v5225 = vmul.f32 0.5, %v5224
  %v5226 = vsub.f32 1.5, %v5225
  %v5227 = vmul.f32 %v5222, %v5226
  %vm5228 = vweird.f32 %v5010
  %vm5229 = vweird.f32 %v5222
  %vm5230 = vmor %vm5228, %vm5229
  %v5231 = vsel %vm5230, %v5222, %v5227
  %v5232 = vrsqrt.pop %v5011
  %v5233 = vmul.f32 %v5232, %v5011
  %v5234 = vmul.f32 %v5233, %v5232
  %v5235 = vmul.f32 0.5, %v5234
  %v5236 = vsub.f32 1.5, %v5235
  %v5237 = vmul.f32 %v5232, %v5236
  %vm5238 = vweird.f32 %v5011
  %vm5239 = vweird.f32 %v5232
  %vm5240 = vmor %vm5238, %vm5239
  %v5241 = vsel %vm5240, %v5232, %v5237
  %v5242 = vrsqrt.pop %v5012
  %v5243 = vmul.f32 %v5242, %v5012
  %v5244 = vmul.f32 %v5243, %v5242
  %v5245 = vmul.f32 0.5, %v5244
  %v5246 = vsub.f32 1.5, %v5245
  %v5247 = vmul.f32 %v5242, %v5246
  %vm5248 = vweird.f32 %v5012
  %vm5249 = vweird.f32 %v5242
  %vm5250 = vmor %vm5248, %vm5249
  %v5251 = vsel %vm5250, %v5242, %v5247
  %v5252 = vrsqrt.pop %v5013
  %v5253 = vmul.f32 %v5252, %v5013
  %v5254 = vmul.f32 %v5253, %v5252
  %v5255 = vmul.f32 0.5, %v5254
  %v5256 = vsub.f32 1.5, %v5255
  %v5257 = vmul.f32 %v5252, %v5256
  %vm5258 = vweird.f32 %v5013
  %vm5259 = vweird.f32 %v5252
  %vm5260 = vmor %vm5258, %vm5259
  %v5261 = vsel %vm5260, %v5252, %v5257
  %v5262 = vrsqrt.pop %v5014
  %v5263 = vmul.f32 %v5262, %v5014
  %v5264 = vmul.f32 %v5263, %v5262
  %v5265 = vmul.f32 0.5, %v5264
  %v5266 = vsub.f32 1.5, %v5265
  %v5267 = vmul.f32 %v5262, %v5266
  %vm5268 = vweird.f32 %v5014
  %vm5269 = vweird.f32 %v5262
  %vm5270 = vmor %vm5268, %vm5269
  %v5271 = vsel %vm5270, %v5262, %v5267
  %v5272 = vrsqrt.pop %v5015
  %v5273 = vmul.f32 %v5272, %v5015
  %v5274 = vmul.f32 %v5273, %v5272
  %v5275 = vmul.f32 0.5, %v5274
  %v5276 = vsub.f32 1.5, %v5275
  %v5277 = vmul.f32 %v5272, %v5276
  %vm5278 = vweird.f32 %v5015
  %vm5279 = vweird.f32 %v5272
  %vm5280 = vmor %vm5278, %vm5279
  %v5281 = vsel %vm5280, %v5272, %v5277
  %v5282 = vrsqrt.pop %v5016
  %v5283 = vmul.f32 %v5282, %v5016
  %v5284 = vmul.f32 %v5283, %v5282
  %v5285 = vmul.f32 0.5, %v5284
  %v5286 = vsub.f32 1.5, %v5285
  %v5287 = vmul.f32 %v5282, %v5286
  %vm5288 = vweird.f32 %v5016
  %vm5289 = vweird.f32 %v5282
  %vm5290 = vmor %vm5288, %vm5289
  %v5291 = vsel %vm5290, %v5282, %v5287
  %v5292 = vrsqrt.pop %v5017
  %v5293 = vmul.f32 %v5292, %v5017
  %v5294 = vmul.f32 %v5293, %v5292
  %v5295 = vmul.f32 0.5, %v5294
  %v5296 = vsub.f32 1.5, %v5295
  %v5297 = vmul.f32 %v5292, %v5296
  %vm5298 = vweird.f32 %v5017
  %vm5299 = vweird.f32 %v5292
  %vm5300 = vmor %vm5298, %vm5299
  %v5301 = vsel %vm5300, %v5292, %v5297
  %v5302 = vrsqrt.pop %v5018
  %v5303 = vmul.f32 %v5302, %v5018
  %v5304 = vmul.f32 %v5303, %v5302
  %v5305 = vmul.f32 0.5, %v5304
  %v5306 = vsub.f32 1.5, %v5305
  %v5307 = vmul.f32 %v5302, %v5306
  %vm5308 = vweird.f32 %v5018
  %vm5309 = vweird.f32 %v5302
  %vm5310 = vmor %vm5308, %vm5309
  %v5311 = vsel %vm5310, %v5302, %v5307
  %v5312 = vrsqrt.pop %v5019
  %v5313 = vmul.f32 %v5312, %v5019
  %v5314 = vmul.f32 %v5313, %v5312
  %v5315 = vmul.f32 0.5, %v5314
  %v5316 = vsub.f32 1.5, %v5315
  %v5317 = vmul.f32 %v5312, %v5316
  %vm5318 = vweird.f32 %v5019
  %vm5319 = vweird.f32 %v5312
  %vm5320 = vmor %vm5318, %vm5319
  %v5321 = vsel %vm5320, %v5312, %v5317
  %v5322 = vrsqrt.pop %v5020
  %v5323 = vmul.f32 %v5322, %v5020
  %v5324 = vmul.f32 %v5323, %v5322
  %v5325 = vmul.f32 0.5, %v5324
  %v5326 = vsub.f32 1.5, %v5325
  %v5327 = vmul.f32 %v5322, %v5326
  %vm5328 = vweird.f32 %v5020
  %vm5329 = vweird.f32 %v5322
  %vm5330 = vmor %vm5328, %vm5329
  %v5331 = vsel %vm5330, %v5322, %v5327
  %v5332 = vrsqrt.pop %v5021
  %v5333 = vmul.f32 %v5332, %v5021
  %v5334 = vmul.f32 %v5333, %v5332
  %v5335 = vmul.f32 0.5, %v5334
  %v5336 = vsub.f32 1.5, %v5335
  %v5337 = vmul.f32 %v5332, %v5336
  %vm5338 = vweird.f32 %v5021
  %vm5339 = vweird.f32 %v5332
  %vm5340 = vmor %vm5338, %vm5339
  %v5341 = vsel %vm5340, %v5332, %v5337
  %v5342 = vmul.f32 %v4958, %v5031
  %v5343 = vmul.f32 %v4959, %v5041
  %v5344 = vmul.f32 %v4960, %v5051
  %v5345 = vmul.f32 %v4961, %v5061
  %v5346 = vmul.f32 %v4962, %v5071
  %v5347 = vmul.f32 %v4963, %v5081
  %v5348 = vmul.f32 %v4964, %v5091
  %v5349 = vmul.f32 %v4965, %v5101
  %v5350 = vmul.f32 %v4966, %v5111
  %v5351 = vmul.f32 %v4967, %v5121
  %v5352 = vmul.f32 %v4968, %v5131
  %v5353 = vmul.f32 %v4969, %v5141
  %v5354 = vmul.f32 %v4970, %v5151
  %v5355 = vmul.f32 %v4971, %v5161
  %v5356 = vmul.f32 %v4972, %v5171
  %v5357 = vmul.f32 %v4973, %v5181
  %v5358 = vmul.f32 %v4974, %v5191
  %v5359 = vmul.f32 %v4975, %v5201
  %v5360 = vmul.f32 %v4976, %v5211
  %v5361 = vmul.f32 %v4977, %v5221
  %v5362 = vmul.f32 %v4978, %v5231
  %v5363 = vmul.f32 %v4979, %v5241
  %v5364 = vmul.f32 %v4980, %v5251
  %v5365 = vmul.f32 %v4981, %v5261
  %v5366 = vmul.f32 %v4982, %v5271
  %v5367 = vmul.f32 %v4983, %v5281
  %v5368 = vmul.f32 %v4984, %v5291
  %v5369 = vmul.f32 %v4985, %v5301
  %v5370 = vmul.f32 %v4986, %v5311
  %v5371 = vmul.f32 %v4987, %v5321
  %v5372 = vmul.f32 %v4988, %v5331
  %v5373 = vmul.f32 %v4989, %v5341
  %5375 = vset.pattern.permute.xlu0 0
  %5376 = vperm.xlu0 %5375, %v5342
  %v5377 = vpop.permute.xlu0 %5376
  %5380 = vset.pattern.permute.xlu0 0
  %5381 = vperm.xlu0 %5380, %v5343
  %v5382 = vpop.permute.xlu0 %5381
  %5385 = vset.pattern.permute.xlu0 0
  %5386 = vperm.xlu0 %5385, %v5344
  %v5387 = vpop.permute.xlu0 %5386
  %5390 = vset.pattern.permute.xlu0 0
  %5391 = vperm.xlu0 %5390, %v5345
  %v5392 = vpop.permute.xlu0 %5391
  %5395 = vset.pattern.permute.xlu0 0
  %5396 = vperm.xlu0 %5395, %v5346
  %v5397 = vpop.permute.xlu0 %5396
  %5400 = vset.pattern.permute.xlu0 0
  %5401 = vperm.xlu0 %5400, %v5347
  %v5402 = vpop.permute.xlu0 %5401
  %5405 = vset.pattern.permute.xlu0 0
  %5406 = vperm.xlu0 %5405, %v5348
  %v5407 = vpop.permute.xlu0 %5406
  %5410 = vset.pattern.permute.xlu0 0
  %5411 = vperm.xlu0 %5410, %v5349
  %v5412 = vpop.permute.xlu0 %5411
  %5415 = vset.pattern.permute.xlu0 0
  %5416 = vperm.xlu0 %5415, %v5350
  %v5417 = vpop.permute.xlu0 %5416
  %5420 = vset.pattern.permute.xlu0 0
  %5421 = vperm.xlu0 %5420, %v5351
  %v5422 = vpop.permute.xlu0 %5421
  %5425 = vset.pattern.permute.xlu0 0
  %5426 = vperm.xlu0 %5425, %v5352
  %v5427 = vpop.permute.xlu0 %5426
  %5430 = vset.pattern.permute.xlu0 0
  %5431 = vperm.xlu0 %5430, %v5353
  %v5432 = vpop.permute.xlu0 %5431
  %5435 = vset.pattern.permute.xlu0 0
  %5436 = vperm.xlu0 %5435, %v5354
  %v5437 = vpop.permute.xlu0 %5436
  %5440 = vset.pattern.permute.xlu0 0
  %5441 = vperm.xlu0 %5440, %v5355
  %v5442 = vpop.permute.xlu0 %5441
  %5445 = vset.pattern.permute.xlu0 0
  %5446 = vperm.xlu0 %5445, %v5356
  %v5447 = vpop.permute.xlu0 %5446
  %5450 = vset.pattern.permute.xlu0 0
  %5451 = vperm.xlu0 %5450, %v5357
  %v5452 = vpop.permute.xlu0 %5451
  %5455 = vset.pattern.permute.xlu0 0
  %5456 = vperm.xlu0 %5455, %v5358
  %v5457 = vpop.permute.xlu0 %5456
  %5460 = vset.pattern.permute.xlu0 0
  %5461 = vperm.xlu0 %5460, %v5359
  %v5462 = vpop.permute.xlu0 %5461
  %5465 = vset.pattern.permute.xlu0 0
  %5466 = vperm.xlu0 %5465, %v5360
  %v5467 = vpop.permute.xlu0 %5466
  %5470 = vset.pattern.permute.xlu0 0
  %5471 = vperm.xlu0 %5470, %v5361
  %v5472 = vpop.permute.xlu0 %5471
  %5475 = vset.pattern.permute.xlu0 0
  %5476 = vperm.xlu0 %5475, %v5362
  %v5477 = vpop.permute.xlu0 %5476
  %5480 = vset.pattern.permute.xlu0 0
  %5481 = vperm.xlu0 %5480, %v5363
  %v5482 = vpop.permute.xlu0 %5481
  %5485 = vset.pattern.permute.xlu0 0
  %5486 = vperm.xlu0 %5485, %v5364
  %v5487 = vpop.permute.xlu0 %5486
  %5490 = vset.pattern.permute.xlu0 0
  %5491 = vperm.xlu0 %5490, %v5365
  %v5492 = vpop.permute.xlu0 %5491
  %5495 = vset.pattern.permute.xlu0 0
  %5496 = vperm.xlu0 %5495, %v5366
  %v5497 = vpop.permute.xlu0 %5496
  %5500 = vset.pattern.permute.xlu0 0
  %5501 = vperm.xlu0 %5500, %v5367
  %v5502 = vpop.permute.xlu0 %5501
  %5505 = vset.pattern.permute.xlu0 0
  %5506 = vperm.xlu0 %5505, %v5368
  %v5507 = vpop.permute.xlu0 %5506
  %5510 = vset.pattern.permute.xlu0 0
  %5511 = vperm.xlu0 %5510, %v5369
  %v5512 = vpop.permute.xlu0 %5511
  %5515 = vset.pattern.permute.xlu0 0
  %5516 = vperm.xlu0 %5515, %v5370
  %v5517 = vpop.permute.xlu0 %5516
  %5520 = vset.pattern.permute.xlu0 0
  %5521 = vperm.xlu0 %5520, %v5371
  %v5522 = vpop.permute.xlu0 %5521
  %5525 = vset.pattern.permute.xlu0 0
  %5526 = vperm.xlu0 %5525, %v5372
  %v5527 = vpop.permute.xlu0 %5526
  %5530 = vset.pattern.permute.xlu0 0
  %5531 = vperm.xlu0 %5530, %v5373
  %v5532 = vpop.permute.xlu0 %5531
  %v5534 = vmul.f32 %v4766, %v5377
  %v5535 = vmul.f32 %v4767, %v5382
  %v5536 = vmul.f32 %v4768, %v5387
  %v5537 = vmul.f32 %v4769, %v5392
  %v5538 = vmul.f32 %v4770, %v5397
  %v5539 = vmul.f32 %v4771, %v5402
  %v5540 = vmul.f32 %v4772, %v5407
  %v5541 = vmul.f32 %v4773, %v5412
  %v5542 = vmul.f32 %v4774, %v5417
  %v5543 = vmul.f32 %v4775, %v5422
  %v5544 = vmul.f32 %v4776, %v5427
  %v5545 = vmul.f32 %v4777, %v5432
  %v5546 = vmul.f32 %v4778, %v5437
  %v5547 = vmul.f32 %v4779, %v5442
  %v5548 = vmul.f32 %v4780, %v5447
  %v5549 = vmul.f32 %v4781, %v5452
  %v5550 = vmul.f32 %v4782, %v5457
  %v5551 = vmul.f32 %v4783, %v5462
  %v5552 = vmul.f32 %v4784, %v5467
  %v5553 = vmul.f32 %v4785, %v5472
  %v5554 = vmul.f32 %v4786, %v5477
  %v5555 = vmul.f32 %v4787, %v5482
  %v5556 = vmul.f32 %v4788, %v5487
  %v5557 = vmul.f32 %v4789, %v5492
  %v5558 = vmul.f32 %v4790, %v5497
  %v5559 = vmul.f32 %v4791, %v5502
  %v5560 = vmul.f32 %v4792, %v5507
  %v5561 = vmul.f32 %v4793, %v5512
  %v5562 = vmul.f32 %v4794, %v5517
  %v5563 = vmul.f32 %v4795, %v5522
  %v5564 = vmul.f32 %v4796, %v5527
  %v5565 = vmul.f32 %v4797, %v5532
  %5567 = vset.pattern.permute.xlu0 1
  %5568 = vperm.xlu0 %5567, %v4958
  %v5569 = vpop.permute.xlu0 %5568
  %5572 = vset.pattern.permute.xlu0 1
  %5573 = vperm.xlu0 %5572, %v4959
  %v5574 = vpop.permute.xlu0 %5573
  %5577 = vset.pattern.permute.xlu0 1
  %5578 = vperm.xlu0 %5577, %v4960
  %v5579 = vpop.permute.xlu0 %5578
  %5582 = vset.pattern.permute.xlu0 1
  %5583 = vperm.xlu0 %5582, %v4961
  %v5584 = vpop.permute.xlu0 %5583
  %5587 = vset.pattern.permute.xlu0 1
  %5588 = vperm.xlu0 %5587, %v4962
  %v5589 = vpop.permute.xlu0 %5588
  %5592 = vset.pattern.permute.xlu0 1
  %5593 = vperm.xlu0 %5592, %v4963
  %v5594 = vpop.permute.xlu0 %5593
  %5597 = vset.pattern.permute.xlu0 1
  %5598 = vperm.xlu0 %5597, %v4964
  %v5599 = vpop.permute.xlu0 %5598
  %5602 = vset.pattern.permute.xlu0 1
  %5603 = vperm.xlu0 %5602, %v4965
  %v5604 = vpop.permute.xlu0 %5603
  %5607 = vset.pattern.permute.xlu0 1
  %5608 = vperm.xlu0 %5607, %v4966
  %v5609 = vpop.permute.xlu0 %5608
  %5612 = vset.pattern.permute.xlu0 1
  %5613 = vperm.xlu0 %5612, %v4967
  %v5614 = vpop.permute.xlu0 %5613
  %5617 = vset.pattern.permute.xlu0 1
  %5618 = vperm.xlu0 %5617, %v4968
  %v5619 = vpop.permute.xlu0 %5618
  %5622 = vset.pattern.permute.xlu0 1
  %5623 = vperm.xlu0 %5622, %v4969
  %v5624 = vpop.permute.xlu0 %5623
  %5627 = vset.pattern.permute.xlu0 1
  %5628 = vperm.xlu0 %5627, %v4970
  %v5629 = vpop.permute.xlu0 %5628
  %5632 = vset.pattern.permute.xlu0 1
  %5633 = vperm.xlu0 %5632, %v4971
  %v5634 = vpop.permute.xlu0 %5633
  %5637 = vset.pattern.permute.xlu0 1
  %5638 = vperm.xlu0 %5637, %v4972
  %v5639 = vpop.permute.xlu0 %5638
  %5642 = vset.pattern.permute.xlu0 1
  %5643 = vperm.xlu0 %5642, %v4973
  %v5644 = vpop.permute.xlu0 %5643
  %5647 = vset.pattern.permute.xlu0 1
  %5648 = vperm.xlu0 %5647, %v4974
  %v5649 = vpop.permute.xlu0 %5648
  %5652 = vset.pattern.permute.xlu0 1
  %5653 = vperm.xlu0 %5652, %v4975
  %v5654 = vpop.permute.xlu0 %5653
  %5657 = vset.pattern.permute.xlu0 1
  %5658 = vperm.xlu0 %5657, %v4976
  %v5659 = vpop.permute.xlu0 %5658
  %5662 = vset.pattern.permute.xlu0 1
  %5663 = vperm.xlu0 %5662, %v4977
  %v5664 = vpop.permute.xlu0 %5663
  %5667 = vset.pattern.permute.xlu0 1
  %5668 = vperm.xlu0 %5667, %v4978
  %v5669 = vpop.permute.xlu0 %5668
  %5672 = vset.pattern.permute.xlu0 1
  %5673 = vperm.xlu0 %5672, %v4979
  %v5674 = vpop.permute.xlu0 %5673
  %5677 = vset.pattern.permute.xlu0 1
  %5678 = vperm.xlu0 %5677, %v4980
  %v5679 = vpop.permute.xlu0 %5678
  %5682 = vset.pattern.permute.xlu0 1
  %5683 = vperm.xlu0 %5682, %v4981
  %v5684 = vpop.permute.xlu0 %5683
  %5687 = vset.pattern.permute.xlu0 1
  %5688 = vperm.xlu0 %5687, %v4982
  %v5689 = vpop.permute.xlu0 %5688
  %5692 = vset.pattern.permute.xlu0 1
  %5693 = vperm.xlu0 %5692, %v4983
  %v5694 = vpop.permute.xlu0 %5693
  %5697 = vset.pattern.permute.xlu0 1
  %5698 = vperm.xlu0 %5697, %v4984
  %v5699 = vpop.permute.xlu0 %5698
  %5702 = vset.pattern.permute.xlu0 1
  %5703 = vperm.xlu0 %5702, %v4985
  %v5704 = vpop.permute.xlu0 %5703
  %5707 = vset.pattern.permute.xlu0 1
  %5708 = vperm.xlu0 %5707, %v4986
  %v5709 = vpop.permute.xlu0 %5708
  %5712 = vset.pattern.permute.xlu0 1
  %5713 = vperm.xlu0 %5712, %v4987
  %v5714 = vpop.permute.xlu0 %5713
  %5717 = vset.pattern.permute.xlu0 1
  %5718 = vperm.xlu0 %5717, %v4988
  %v5719 = vpop.permute.xlu0 %5718
  %5722 = vset.pattern.permute.xlu0 1
  %5723 = vperm.xlu0 %5722, %v4989
  %v5724 = vpop.permute.xlu0 %5723
  %v5726 = vadd.f32 %v5534, %v5569
  %v5727 = vadd.f32 %v5535, %v5574
  %v5728 = vadd.f32 %v5536, %v5579
  %v5729 = vadd.f32 %v5537, %v5584
  %v5730 = vadd.f32 %v5538, %v5589
  %v5731 = vadd.f32 %v5539, %v5594
  %v5732 = vadd.f32 %v5540, %v5599
  %v5733 = vadd.f32 %v5541, %v5604
  %v5734 = vadd.f32 %v5542, %v5609
  %v5735 = vadd.f32 %v5543, %v5614
  %v5736 = vadd.f32 %v5544, %v5619
  %v5737 = vadd.f32 %v5545, %v5624
  %v5738 = vadd.f32 %v5546, %v5629
  %v5739 = vadd.f32 %v5547, %v5634
  %v5740 = vadd.f32 %v5548, %v5639
  %v5741 = vadd.f32 %v5549, %v5644
  %v5742 = vadd.f32 %v5550, %v5649
  %v5743 = vadd.f32 %v5551, %v5654
  %v5744 = vadd.f32 %v5552, %v5659
  %v5745 = vadd.f32 %v5553, %v5664
  %v5746 = vadd.f32 %v5554, %v5669
  %v5747 = vadd.f32 %v5555, %v5674
  %v5748 = vadd.f32 %v5556, %v5679
  %v5749 = vadd.f32 %v5557, %v5684
  %v5750 = vadd.f32 %v5558, %v5689
  %v5751 = vadd.f32 %v5559, %v5694
  %v5752 = vadd.f32 %v5560, %v5699
  %v5753 = vadd.f32 %v5561, %v5704
  %v5754 = vadd.f32 %v5562, %v5709
  %v5755 = vadd.f32 %v5563, %v5714
  %v5756 = vadd.f32 %v5564, %v5719
  %v5757 = vadd.f32 %v5565, %v5724
  %5758 = vst.msk [vmem:[%s4] sm:$0xff] %vm4637, %v5726
  %5759 = vst.msk [vmem:[%s4 + $0x8] sm:$0xff] %vm4637, %v5727
  %5760 = vst.msk [vmem:[%s4 + $0x10] sm:$0xff] %vm4637, %v5728
  %5761 = vst.msk [vmem:[%s4 + $0x18] sm:$0xff] %vm4637, %v5729
  %5762 = vst.msk [vmem:[%s4 + $0x20] sm:$0xff] %vm4637, %v5730
  %5763 = vst.msk [vmem:[%s4 + $0x28] sm:$0xff] %vm4637, %v5731
  %5764 = vst.msk [vmem:[%s4 + $0x30] sm:$0xff] %vm4637, %v5732
  %5765 = vst.msk [vmem:[%s4 + $0x38] sm:$0xff] %vm4637, %v5733
  %5766 = vst.msk [vmem:[%s4 + $0x40] sm:$0xff] %vm4637, %v5734
  %5767 = vst.msk [vmem:[%s4 + $0x48] sm:$0xff] %vm4637, %v5735
  %5768 = vst.msk [vmem:[%s4 + $0x50] sm:$0xff] %vm4637, %v5736
  %5769 = vst.msk [vmem:[%s4 + $0x58] sm:$0xff] %vm4637, %v5737
  %5770 = vst.msk [vmem:[%s4 + $0x60] sm:$0xff] %vm4637, %v5738
  %5771 = vst.msk [vmem:[%s4 + $0x68] sm:$0xff] %vm4637, %v5739
  %5772 = vst.msk [vmem:[%s4 + $0x70] sm:$0xff] %vm4637, %v5740
  %5773 = vst.msk [vmem:[%s4 + $0x78] sm:$0xff] %vm4637, %v5741
  %5774 = vst.msk [vmem:[%s4 + $0x80] sm:$0xff] %vm4637, %v5742
  %5775 = vst.msk [vmem:[%s4 + $0x88] sm:$0xff] %vm4637, %v5743
  %5776 = vst.msk [vmem:[%s4 + $0x90] sm:$0xff] %vm4637, %v5744
  %5777 = vst.msk [vmem:[%s4 + $0x98] sm:$0xff] %vm4637, %v5745
  %5778 = vst.msk [vmem:[%s4 + $0xa0] sm:$0xff] %vm4637, %v5746
  %5779 = vst.msk [vmem:[%s4 + $0xa8] sm:$0xff] %vm4637, %v5747
  %5780 = vst.msk [vmem:[%s4 + $0xb0] sm:$0xff] %vm4637, %v5748
  %5781 = vst.msk [vmem:[%s4 + $0xb8] sm:$0xff] %vm4637, %v5749
  %5782 = vst.msk [vmem:[%s4 + $0xc0] sm:$0xff] %vm4637, %v5750
  %5783 = vst.msk [vmem:[%s4 + $0xc8] sm:$0xff] %vm4637, %v5751
  %5784 = vst.msk [vmem:[%s4 + $0xd0] sm:$0xff] %vm4637, %v5752
  %5785 = vst.msk [vmem:[%s4 + $0xd8] sm:$0xff] %vm4637, %v5753
  %5786 = vst.msk [vmem:[%s4 + $0xe0] sm:$0xff] %vm4637, %v5754
  %5787 = vst.msk [vmem:[%s4 + $0xe8] sm:$0xff] %vm4637, %v5755
  %5788 = vst.msk [vmem:[%s4 + $0xf0] sm:$0xff] %vm4637, %v5756
  %5789 = vst.msk [vmem:[%s4 + $0xf8] sm:$0xff] %vm4637, %v5757
  // Predicated region
  $region18: #{tpu_custom_call.1} parent=0 // pred_check
    _
  $region19: #{tpu_custom_call.1} parent=0 // pred_check_branch
    %5791 = sbr.rel (0) target = $region21
  $region20: #{tpu_custom_call.1} parent=0 // pred_region
    _
  $region21: #{tpu_custom_call.1} parent=0 // pred_fallthru
    _
  // Predicated region
  $region22: #{tpu_custom_call.1} parent=0 // pred_check
    _
  $region23: #{tpu_custom_call.1} parent=0 // pred_check_branch
    %5793 = sbr.rel (0) target = $region25
  $region24: #{tpu_custom_call.1} parent=0 // pred_region
    _
  $region25: #{tpu_custom_call.1} parent=0 // pred_fallthru
    _

</llo_original>
